<compile_context>
chip_gen: v6e
topology: v6e:2x2x1
jax: 0.10.0
libtpu: 0.0.40
codegen_flags: <defaults>
</compile_context>

<pallas_src>
import jax
import jax.numpy as jnp
from jax.experimental import pallas as pl
from jax.experimental.pallas import tpu as pltpu

# ---- module hyper-parameters (consistent with the PyTorch __init__) ----
BATCH = 2
SEQ_IN = 8                     # input sequence length
CONV_K = 3
SEQ = SEQ_IN - (CONV_K - 1)    # = 6 (valid conv)
EMBED = 32                     # embed_size
ENC = 32                       # enc_size (bidirectional -> 16 per direction)
HIDDEN = ENC // 2
GN_GROUPS = 4                  # norm='GN'
GN_EPS = 1e-5
LEAKY_SLOPE = 0.1              # act='leaky_relu'
TB = SEQ * BATCH               # time-major row count

# ---- layout of the single packed input slab (f32, (SLAB_ROWS, 128)) ----
ROW_BIH = 0        # 1 row   : packed gate bias (b_ih + b_hh), fwd/bwd interleaved per gate
ROW_BETA = 1       # 1 row   : GroupNorm beta (lanes 0:E)
ROW_X = 8          # TB rows : im2col'd input (lanes 0:2K)
ROW_WCONV = 24     # 2K rows : conv weight (lanes 0:E)
ROW_WIH = 32       # E rows  : packed LSTM input weights (128 lanes)
ROW_WHH = 64       # 2H rows : block-diagonal packed recurrent weights (128 lanes)
ROW_SEL = 96       # B rows  : batch selection matrix (lanes 0:TB)
ROW_SELT = 104     # TB rows : its transpose (lanes 0:B)
ROW_GMASK = 120    # E rows  : channel -> group mask (lanes 0:G)
ROW_GMASKT = 152   # G rows  : group -> channel mask (lanes 0:E)
ROW_GMASKTG = 160  # G rows  : group -> channel mask * gamma (lanes 0:E)
SLAB_ROWS = 168
SLAB_LANES = 8 * HIDDEN        # 128


def lane_encoder_kernel(slab_ref, seq_ref):
    # ---- unpack the single slab (static slices, zero extra DMA) ----
    b_gates = slab_ref[ROW_BIH:ROW_BIH + 1, :]                        # (1, 8H)
    beta = slab_ref[ROW_BETA:ROW_BETA + 1, 0:EMBED]                   # (1, E)
    x_cols = slab_ref[ROW_X:ROW_X + TB, 0:2 * CONV_K]                 # (TB, 2K)
    w_conv = slab_ref[ROW_WCONV:ROW_WCONV + 2 * CONV_K, 0:EMBED]      # (2K, E)
    w_ih = slab_ref[ROW_WIH:ROW_WIH + EMBED, :]                       # (E, 8H)
    w_hh = slab_ref[ROW_WHH:ROW_WHH + 2 * HIDDEN, :]                  # (2H, 8H)
    sel = slab_ref[ROW_SEL:ROW_SEL + BATCH, 0:TB]                     # (B, TB)
    selT = slab_ref[ROW_SELT:ROW_SELT + TB, 0:BATCH]                  # (TB, B)
    gmask = slab_ref[ROW_GMASK:ROW_GMASK + EMBED, 0:GN_GROUPS]        # (E, G)
    gmaskT = slab_ref[ROW_GMASKT:ROW_GMASKT + GN_GROUPS, 0:EMBED]     # (G, E)
    gmaskTg = slab_ref[ROW_GMASKTG:ROW_GMASKTG + GN_GROUPS, 0:EMBED]  # (G, E)  (* gamma)

    def mm(a, b):
        # single-pass bf16 MXU matmul, f32 accumulation (data path)
        return jnp.dot(a, b, preferred_element_type=jnp.float32)

    def mmx(a, b):
        # exact f32 matmul for the tiny 0/1 selection matrices (GN statistics)
        return jnp.dot(a, b, precision=jax.lax.Precision.HIGHEST,
                       preferred_element_type=jnp.float32)

    # ---- Conv1d(2 -> E, k=3, valid, no bias): single im2col matmul ----
    conv = mm(x_cols.astype(jnp.bfloat16), w_conv.astype(jnp.bfloat16))   # (TB, E) f32

    # ---- GroupNorm(4, E): one-pass stats, gamma folded into the broadcast matrix ----
    inv_n = 1.0 / float(SEQ * (EMBED // GN_GROUPS))
    s1 = mmx(sel, conv)                               # (B, E)  sum_t x
    s2 = mmx(sel, conv * conv)                        # (B, E)  sum_t x^2
    g1 = mmx(s1, gmask) * inv_n                       # (B, G)  mean
    g2 = mmx(s2, gmask) * inv_n                       # (B, G)  E[x^2]
    ginv = jax.lax.rsqrt(g2 - g1 * g1 + GN_EPS)       # (B, G)  1/sigma
    mean_e = mmx(g1, gmaskT)                          # (B, E)  mu per channel
    scale_e = mmx(ginv, gmaskTg)                      # (B, E)  gamma/sigma per channel
    offset_e = beta - mean_e * scale_e                # (B, E)  beta - mu*gamma/sigma
    scale_rows = mmx(selT, scale_e)                   # (TB, E) broadcast to rows
    offset_rows = mmx(selT, offset_e)                 # (TB, E)
    feat = conv * scale_rows + offset_rows            # (TB, E)

    # ---- LeakyReLU(0.1) ----
    feat = jnp.maximum(feat, LEAKY_SLOPE * feat)

    # ---- bidirectional LSTM ----
    # Packed gate lanes: [i_f i_b | f_f f_b | g_f g_b | o_f o_b], each H=16 wide.
    xproj = mm(feat.astype(jnp.bfloat16), w_ih.astype(jnp.bfloat16)) + b_gates   # (TB, 8H)
    w_hh_bf = w_hh.astype(jnp.bfloat16)

    lanes = jax.lax.broadcasted_iota(jnp.int32, (BATCH, 8 * HIDDEN), 1)
    fwd_mask = (lanes & (2 * HIDDEN - 1)) < HIDDEN                  # fwd half of each gate pair
    tanh_mask = (lanes >= 4 * HIDDEN) & (lanes < 6 * HIDDEN)        # the 'g' gate chunk

    h = jnp.zeros((BATCH, 2 * HIDDEN), jnp.float32)                 # [h_fwd | h_bwd]
    c = jnp.zeros((BATCH, 2 * HIDDEN), jnp.float32)
    h_steps = []
    for s in range(SEQ):                                            # static unroll (SEQ = 6)
        tf = s
        tb = SEQ - 1 - s
        xg = jnp.where(fwd_mask,
                       xproj[tf * BATCH:(tf + 1) * BATCH, :],
                       xproj[tb * BATCH:(tb + 1) * BATCH, :])       # (B, 8H)
        g = xg + mm(h.astype(jnp.bfloat16), w_hh_bf)                # (B, 8H), one MXU push
        act = jnp.where(tanh_mask, jnp.tanh(g), jax.nn.sigmoid(g))  # 2 full-vreg EUP ops
        i_g = act[:, 0:2 * HIDDEN]
        f_g = act[:, 2 * HIDDEN:4 * HIDDEN]
        g_g = act[:, 4 * HIDDEN:6 * HIDDEN]
        o_g = act[:, 6 * HIDDEN:8 * HIDDEN]
        c = f_g * c + i_g * g_g                                     # cell state stays f32
        h = o_g * jnp.tanh(c)
        h_steps.append(h)

    # ---- consolidated output stores: 6 full-width (B, ENC) stores ----
    half_mask = jax.lax.broadcasted_iota(jnp.int32, (BATCH, ENC), 1) < HIDDEN
    for t in range(SEQ):
        # fwd half of h after step t   -> h_fwd(time t)
        # bwd half of h after step SEQ-1-t -> h_bwd(time t)
        seq_ref[t * BATCH:(t + 1) * BATCH, :] = jnp.where(
            half_mask, h_steps[t], h_steps[SEQ - 1 - t])


def _build_slab(x, w_conv, gamma, beta,
                w_ih_f, w_hh_f, b_ih_f, b_hh_f,
                w_ih_b, w_hh_b, b_ih_b, b_hh_b):
    """Host-side layout plumbing: pack everything into one lane-dense f32 slab."""
    E, H, G, K, B = EMBED, HIDDEN, GN_GROUPS, CONV_K, BATCH

    # im2col: row = t*B + b, col = k*2 + c  ->  x[b, t+k, c]
    x_tm = jnp.transpose(x, (1, 0, 2))                                          # (L, B, 2)
    x_cols = jnp.concatenate([x_tm[k:k + SEQ] for k in range(K)],
                             axis=2).reshape(TB, 2 * K)

    # conv weight: row = k*2 + c, col = e
    w_conv_p = jnp.transpose(w_conv, (2, 1, 0)).reshape(2 * K, E)

    # LSTM input weights / biases, gate-major with fwd/bwd interleaved per gate
    def pack_ih(wf, wb):
        a = wf.T.reshape(E, 4, H)
        b = wb.T.reshape(E, 4, H)
        return jnp.stack([a, b], axis=2).reshape(E, 8 * H)
    w_ih_p = pack_ih(w_ih_f, w_ih_b)
    b_p = jnp.stack([(b_ih_f + b_hh_f).reshape(4, H),
                     (b_ih_b + b_hh_b).reshape(4, H)], axis=1).reshape(8 * H)

    # recurrent weights: block-diagonal over directions, same gate-major column order
    whf = w_hh_f.T.reshape(H, 4, H)
    whb = w_hh_b.T.reshape(H, 4, H)
    zero = jnp.zeros_like(whf)
    w_hh_p = jnp.concatenate(
        [jnp.stack([whf, zero], axis=2).reshape(H, 8 * H),
         jnp.stack([zero, whb], axis=2).reshape(H, 8 * H)], axis=0)             # (2H, 8H)

    # GroupNorm selection / broadcast matrices
    rows_idx = jnp.arange(TB)
    sel = (rows_idx[None, :] % B == jnp.arange(B)[:, None]).astype(jnp.float32)   # (B, TB)
    ch = jnp.arange(E)
    gmask = (ch[:, None] // (E // G)
             == jnp.arange(G)[None, :]).astype(jnp.float32)                       # (E, G)
    gmaskT = gmask.T                                                               # (G, E)
    gmaskTg = gmaskT * gamma[None, :]                                              # fold gamma

    slab = jnp.zeros((SLAB_ROWS, SLAB_LANES), jnp.float32)
    slab = slab.at[ROW_BIH, :].set(b_p)
    slab = slab.at[ROW_BETA, 0:E].set(beta)
    slab = slab.at[ROW_X:ROW_X + TB, 0:2 * K].set(x_cols)
    slab = slab.at[ROW_WCONV:ROW_WCONV + 2 * K, 0:E].set(w_conv_p)
    slab = slab.at[ROW_WIH:ROW_WIH + E, :].set(w_ih_p)
    slab = slab.at[ROW_WHH:ROW_WHH + 2 * H, :].set(w_hh_p)
    slab = slab.at[ROW_SEL:ROW_SEL + B, 0:TB].set(sel)
    slab = slab.at[ROW_SELT:ROW_SELT + TB, 0:B].set(sel.T)
    slab = slab.at[ROW_GMASK:ROW_GMASK + E, 0:G].set(gmask)
    slab = slab.at[ROW_GMASKT:ROW_GMASKT + G, 0:E].set(gmaskT)
    slab = slab.at[ROW_GMASKTG:ROW_GMASKTG + G, 0:E].set(gmaskTg)
    return slab


@jax.jit
def lane_encoder(x, w_conv, gamma, beta,
                 w_ih_f, w_hh_f, b_ih_f, b_hh_f,
                 w_ih_b, w_hh_b, b_ih_b, b_hh_b):
    """x: (B, L, 2); weights in native PyTorch shapes. Returns (seq_states, final_state)."""
    slab = _build_slab(x, w_conv, gamma, beta,
                       w_ih_f, w_hh_f, b_ih_f, b_hh_f,
                       w_ih_b, w_hh_b, b_ih_b, b_hh_b)

    grid_spec = pltpu.PrefetchScalarGridSpec(
        num_scalar_prefetch=0,
        grid=(1,),
        in_specs=[pl.BlockSpec((SLAB_ROWS, SLAB_LANES), lambda i: (0, 0))],
        out_specs=pl.BlockSpec((TB, ENC), lambda i: (0, 0)),
    )
    seq_tm = pl.pallas_call(
        lane_encoder_kernel,
        out_shape=jax.ShapeDtypeStruct((TB, ENC), jnp.float32),   # time-major rows t*B+b
        grid_spec=grid_spec,
        compiler_params=pltpu.CompilerParams(dimension_semantics=("arbitrary",)),
    )(slab)

    seq_states = jnp.transpose(seq_tm.reshape(SEQ, BATCH, ENC), (1, 0, 2))     # (B, T, ENC)
    # final fwd state = fwd lanes at t = T-1; final bwd state = bwd lanes at t = 0
    final_state = jnp.concatenate(
        [seq_tm[(SEQ - 1) * BATCH:SEQ * BATCH, 0:HIDDEN],
         seq_tm[0:BATCH, HIDDEN:ENC]], axis=1)                                  # (B, ENC)
    return seq_states, final_state


def reference(x, w_conv, gamma, beta,
              w_ih_f, w_hh_f, b_ih_f, b_hh_f,
              w_ih_b, w_hh_b, b_ih_b, b_hh_b):
    """Pure-JAX reference mirroring the PyTorch LaneEncoder forward (eval mode).

    Matmul operands are cast to bf16 with f32 accumulation so that the operand rounding
    matches the kernel's single-pass MXU matmuls; statistics / elementwise math stay f32.
    """
    B, L, _ = x.shape
    T = L - (CONV_K - 1)
    E = w_conv.shape[0]
    H = w_hh_f.shape[1]
    G = GN_GROUPS

    def bdot(a, b):
        return jnp.dot(a.astype(jnp.bfloat16), b.astype(jnp.bfloat16),
                       preferred_element_type=jnp.float32)

    # Conv1d(2->E, k=3, valid, no bias), tap by tap
    conv = jnp.zeros((B, T, E), jnp.float32)
    for k in range(CONV_K):
        xk = x[:, k:k + T, :].reshape(B * T, 2)
        conv = conv + bdot(xk, w_conv[:, :, k].T).reshape(B, T, E)

    # GroupNorm(4, E), eps=1e-5, affine (stats over channels-in-group x time, per sample)
    cg = conv.reshape(B, T, G, E // G)
    mean = cg.mean(axis=(1, 3), keepdims=True)
    var = ((cg - mean) ** 2).mean(axis=(1, 3), keepdims=True)
    normed = ((cg - mean) * jax.lax.rsqrt(var + GN_EPS)).reshape(B, T, E)
    normed = normed * gamma[None, None, :] + beta[None, None, :]
    act = jnp.where(normed >= 0, normed, LEAKY_SLOPE * normed)      # (B, T, E)

    seq = jnp.transpose(act, (1, 0, 2))                             # (T, B, E)

    def run_dir(seq_dir, w_ih, w_hh, b_ih, b_hh):
        h = jnp.zeros((B, H), jnp.float32)
        c = jnp.zeros((B, H), jnp.float32)
        outs = []
        for t in range(T):
            g = bdot(seq_dir[t], w_ih.T) + b_ih + bdot(h, w_hh.T) + b_hh
            i = jax.nn.sigmoid(g[:, 0:H])
            f = jax.nn.sigmoid(g[:, H:2 * H])
            gg = jnp.tanh(g[:, 2 * H:3 * H])
            o = jax.nn.sigmoid(g[:, 3 * H:4 * H])
            c = f * c + i * gg
            h = o * jnp.tanh(c)
            outs.append(h)
        return jnp.stack(outs, axis=0), h

    out_f, hf = run_dir(seq, w_ih_f, w_hh_f, b_ih_f, b_hh_f)
    out_b_rev, hb = run_dir(seq[::-1], w_ih_b, w_hh_b, b_ih_b, b_hh_b)
    out_b = out_b_rev[::-1]
    seq_states = jnp.transpose(jnp.concatenate([out_f, out_b], axis=-1), (1, 0, 2))
    final_state = jnp.concatenate([hf, hb], axis=-1)
    return seq_states, final_state


if __name__ == "__main__":
    key = jax.random.PRNGKey(0)
    keys = jax.random.split(key, 12)

    x = jax.random.normal(keys[0], (BATCH, SEQ_IN, 2), dtype=jnp.float32)

    w_conv = jax.random.normal(keys[1], (EMBED, 2, CONV_K), dtype=jnp.float32) * 0.3
    gamma = 1.0 + 0.1 * jax.random.normal(keys[2], (EMBED,), dtype=jnp.float32)
    beta = 0.1 * jax.random.normal(keys[3], (EMBED,), dtype=jnp.float32)

    def w(k, shape):
        return jax.random.normal(k, shape, dtype=jnp.float32) * 0.2

    w_ih_f = w(keys[4], (4 * HIDDEN, EMBED))
    w_hh_f = w(keys[5], (4 * HIDDEN, HIDDEN))
    b_ih_f = w(keys[6], (4 * HIDDEN,))
    b_hh_f = w(keys[7], (4 * HIDDEN,))
    w_ih_b = w(keys[8], (4 * HIDDEN, EMBED))
    w_hh_b = w(keys[9], (4 * HIDDEN, HIDDEN))
    b_ih_b = w(keys[10], (4 * HIDDEN,))
    b_hh_b = w(keys[11], (4 * HIDDEN,))

    args = (x, w_conv, gamma, beta,
            w_ih_f, w_hh_f, b_ih_f, b_hh_f,
            w_ih_b, w_hh_b, b_ih_b, b_hh_b)

    seq_states, final_state = lane_encoder(*args)
    seq_states = jax.block_until_ready(seq_states)
    final_state = jax.block_until_ready(final_state)

    seq_ref, final_ref = reference(*args)
    # Tolerance covers rare 1-ulp bf16 operand-rounding divergences between the fused kernel
    # and the reference (both single-pass bf16 on the MXU); semantic bugs would be O(0.1-1).
    assert jnp.allclose(seq_states, seq_ref, atol=2e-3, rtol=2e-3), "seq_states mismatch"
    assert jnp.allclose(final_state, final_ref, atol=2e-3, rtol=2e-3), "final_state mismatch"

    print("KERNEL_OK")
</pallas_src>

<mosaic_0001>
module attributes {stable_mosaic.version = 11 : i64} {
  func.func @lane_encoder_kernel(%arg0: i32, %arg1: memref<168x128xf32, #tpu.memory_space<vmem>>, %arg2: memref<12x32xf32, #tpu.memory_space<vmem>>) attributes {dimension_semantics = [#tpu.dimension_semantics<arbitrary>], iteration_bounds = array<i64: 1>, scalar_prefetch = 0 : i64, scratch_operands = 0 : i64, tpu.core_type = #tpu.core_type<tc>, window_params = [{pipeline_mode = #tpu.pipeline_mode<synchronous>, transform_indices = @transform_0, window_bounds = array<i64: 168, 128>}, {pipeline_mode = #tpu.pipeline_mode<synchronous>, transform_indices = @transform_1, window_bounds = array<i64: 12, 32>}]} {
    %c0 = arith.constant 0 : index
    %c0_0 = arith.constant 0 : index
    %0 = vector.load %arg1[%c0, %c0_0] : memref<168x128xf32, #tpu.memory_space<vmem>>, vector<1x128xf32>
    %c1 = arith.constant 1 : index
    %c0_1 = arith.constant 0 : index
    %1 = vector.load %arg1[%c1, %c0_1] : memref<168x128xf32, #tpu.memory_space<vmem>>, vector<1x32xf32>
    %c8 = arith.constant 8 : index
    %c0_2 = arith.constant 0 : index
    %2 = vector.load %arg1[%c8, %c0_2] : memref<168x128xf32, #tpu.memory_space<vmem>>, vector<12x6xf32>
    %c24 = arith.constant 24 : index
    %c0_3 = arith.constant 0 : index
    %3 = vector.load %arg1[%c24, %c0_3] : memref<168x128xf32, #tpu.memory_space<vmem>>, vector<6x32xf32>
    %c32 = arith.constant 32 : index
    %c0_4 = arith.constant 0 : index
    %4 = vector.load %arg1[%c32, %c0_4] : memref<168x128xf32, #tpu.memory_space<vmem>>, vector<32x128xf32>
    %c64 = arith.constant 64 : index
    %c0_5 = arith.constant 0 : index
    %5 = vector.load %arg1[%c64, %c0_5] : memref<168x128xf32, #tpu.memory_space<vmem>>, vector<32x128xf32>
    %c96 = arith.constant 96 : index
    %c0_6 = arith.constant 0 : index
    %6 = vector.load %arg1[%c96, %c0_6] : memref<168x128xf32, #tpu.memory_space<vmem>>, vector<2x12xf32>
    %c104 = arith.constant 104 : index
    %c0_7 = arith.constant 0 : index
    %7 = vector.load %arg1[%c104, %c0_7] : memref<168x128xf32, #tpu.memory_space<vmem>>, vector<12x2xf32>
    %c120 = arith.constant 120 : index
    %c0_8 = arith.constant 0 : index
    %8 = vector.load %arg1[%c120, %c0_8] : memref<168x128xf32, #tpu.memory_space<vmem>>, vector<32x4xf32>
    %c152 = arith.constant 152 : index
    %c0_9 = arith.constant 0 : index
    %9 = vector.load %arg1[%c152, %c0_9] : memref<168x128xf32, #tpu.memory_space<vmem>>, vector<4x32xf32>
    %c160 = arith.constant 160 : index
    %c0_10 = arith.constant 0 : index
    %10 = vector.load %arg1[%c160, %c0_10] : memref<168x128xf32, #tpu.memory_space<vmem>>, vector<4x32xf32>
    %11 = arith.truncf %2 : vector<12x6xf32> to vector<12x6xbf16>
    %12 = arith.truncf %3 : vector<6x32xf32> to vector<6x32xbf16>
    %cst = arith.constant dense<0.000000e+00> : vector<12x32xf32>
    %13 = tpu.matmul %11, %12, %cst {dimension_numbers = #tpu.dot_dimension_numbers<[1], [0], [0], [1], [0, 0, 1, 1], [], []>} : vector<12x6xbf16>, vector<6x32xbf16>, vector<12x32xf32> -> vector<12x32xf32>
    %cst_11 = arith.constant dense<0.000000e+00> : vector<2x32xf32>
    %14 = tpu.matmul %6, %13, %cst_11 {dimension_numbers = #tpu.dot_dimension_numbers<[1], [0], [0], [1], [0, 0, 1, 1], [], []>, precision = #tpu.contract_precision<fp32>} : vector<2x12xf32>, vector<12x32xf32>, vector<2x32xf32> -> vector<2x32xf32>
    %15 = arith.mulf %13, %13 : vector<12x32xf32>
    %cst_12 = arith.constant dense<0.000000e+00> : vector<2x32xf32>
    %16 = tpu.matmul %6, %15, %cst_12 {dimension_numbers = #tpu.dot_dimension_numbers<[1], [0], [0], [1], [0, 0, 1, 1], [], []>, precision = #tpu.contract_precision<fp32>} : vector<2x12xf32>, vector<12x32xf32>, vector<2x32xf32> -> vector<2x32xf32>
    %cst_13 = arith.constant dense<0.000000e+00> : vector<2x4xf32>
    %17 = tpu.matmul %14, %8, %cst_13 {dimension_numbers = #tpu.dot_dimension_numbers<[1], [0], [0], [1], [0, 0, 1, 1], [], []>, precision = #tpu.contract_precision<fp32>} : vector<2x32xf32>, vector<32x4xf32>, vector<2x4xf32> -> vector<2x4xf32>
    %cst_14 = arith.constant 0.020833334 : f32
    %18 = vector.broadcast %cst_14 : f32 to vector<2x4xf32>
    %19 = arith.mulf %17, %18 : vector<2x4xf32>
    %cst_15 = arith.constant dense<0.000000e+00> : vector<2x4xf32>
    %20 = tpu.matmul %16, %8, %cst_15 {dimension_numbers = #tpu.dot_dimension_numbers<[1], [0], [0], [1], [0, 0, 1, 1], [], []>, precision = #tpu.contract_precision<fp32>} : vector<2x32xf32>, vector<32x4xf32>, vector<2x4xf32> -> vector<2x4xf32>
    %cst_16 = arith.constant 0.020833334 : f32
    %21 = vector.broadcast %cst_16 : f32 to vector<2x4xf32>
    %22 = arith.mulf %20, %21 : vector<2x4xf32>
    %23 = arith.mulf %19, %19 : vector<2x4xf32>
    %24 = arith.subf %22, %23 : vector<2x4xf32>
    %cst_17 = arith.constant 9.99999974E-6 : f32
    %25 = vector.broadcast %cst_17 : f32 to vector<2x4xf32>
    %26 = arith.addf %24, %25 : vector<2x4xf32>
    %27 = math.rsqrt %26 : vector<2x4xf32>
    %cst_18 = arith.constant dense<0.000000e+00> : vector<2x32xf32>
    %28 = tpu.matmul %19, %9, %cst_18 {dimension_numbers = #tpu.dot_dimension_numbers<[1], [0], [0], [1], [0, 0, 1, 1], [], []>, precision = #tpu.contract_precision<fp32>} : vector<2x4xf32>, vector<4x32xf32>, vector<2x32xf32> -> vector<2x32xf32>
    %cst_19 = arith.constant dense<0.000000e+00> : vector<2x32xf32>
    %29 = tpu.matmul %27, %10, %cst_19 {dimension_numbers = #tpu.dot_dimension_numbers<[1], [0], [0], [1], [0, 0, 1, 1], [], []>, precision = #tpu.contract_precision<fp32>} : vector<2x4xf32>, vector<4x32xf32>, vector<2x32xf32> -> vector<2x32xf32>
    %30 = arith.mulf %28, %29 : vector<2x32xf32>
    %31 = vector.broadcast %1 : vector<1x32xf32> to vector<2x32xf32>
    %32 = arith.subf %31, %30 : vector<2x32xf32>
    %cst_20 = arith.constant dense<0.000000e+00> : vector<12x32xf32>
    %33 = tpu.matmul %7, %29, %cst_20 {dimension_numbers = #tpu.dot_dimension_numbers<[1], [0], [0], [1], [0, 0, 1, 1], [], []>, precision = #tpu.contract_precision<fp32>} : vector<12x2xf32>, vector<2x32xf32>, vector<12x32xf32> -> vector<12x32xf32>
    %cst_21 = arith.constant dense<0.000000e+00> : vector<12x32xf32>
    %34 = tpu.matmul %7, %32, %cst_21 {dimension_numbers = #tpu.dot_dimension_numbers<[1], [0], [0], [1], [0, 0, 1, 1], [], []>, precision = #tpu.contract_precision<fp32>} : vector<12x2xf32>, vector<2x32xf32>, vector<12x32xf32> -> vector<12x32xf32>
    %35 = arith.mulf %13, %33 : vector<12x32xf32>
    %36 = arith.addf %35, %34 : vector<12x32xf32>
    %cst_22 = arith.constant 1.000000e-01 : f32
    %37 = vector.broadcast %cst_22 : f32 to vector<12x32xf32>
    %38 = arith.mulf %37, %36 : vector<12x32xf32>
    %39 = arith.maximumf %36, %38 : vector<12x32xf32>
    %40 = arith.truncf %39 : vector<12x32xf32> to vector<12x32xbf16>
    %41 = arith.truncf %4 : vector<32x128xf32> to vector<32x128xbf16>
    %cst_23 = arith.constant dense<0.000000e+00> : vector<12x128xf32>
    %42 = tpu.matmul %40, %41, %cst_23 {dimension_numbers = #tpu.dot_dimension_numbers<[1], [0], [0], [1], [0, 0, 1, 1], [], []>} : vector<12x32xbf16>, vector<32x128xbf16>, vector<12x128xf32> -> vector<12x128xf32>
    %43 = vector.broadcast %0 : vector<1x128xf32> to vector<12x128xf32>
    %44 = arith.addf %42, %43 : vector<12x128xf32>
    %45 = arith.truncf %5 : vector<32x128xf32> to vector<32x128xbf16>
    %46 = tpu.iota {dimensions = array<i32: 1>} : vector<2x128xi32>
    %c31_i32 = arith.constant 31 : i32
    %47 = vector.broadcast %c31_i32 : i32 to vector<2x128xi32>
    %48 = arith.andi %46, %47 : vector<2x128xi32>
    %c16_i32 = arith.constant 16 : i32
    %49 = vector.broadcast %c16_i32 : i32 to vector<2x128xi32>
    %50 = arith.cmpi slt, %48, %49 : vector<2x128xi32>
    %c64_i32 = arith.constant 64 : i32
    %51 = vector.broadcast %c64_i32 : i32 to vector<2x128xi32>
    %52 = arith.cmpi sge, %46, %51 : vector<2x128xi32>
    %c96_i32 = arith.constant 96 : i32
    %53 = vector.broadcast %c96_i32 : i32 to vector<2x128xi32>
    %54 = arith.cmpi slt, %46, %53 : vector<2x128xi32>
    %55 = arith.andi %52, %54 : vector<2x128xi1>
    %cst_24 = arith.constant 0.000000e+00 : f32
    %56 = vector.broadcast %cst_24 : f32 to vector<2x32xf32>
    %cst_25 = arith.constant 0.000000e+00 : f32
    %57 = vector.broadcast %cst_25 : f32 to vector<2x32xf32>
    %58 = vector.extract_strided_slice %44 {offsets = [0, 0], sizes = [2, 128], strides = [1, 1]} : vector<12x128xf32> to vector<2x128xf32>
    %59 = vector.extract_strided_slice %44 {offsets = [10, 0], sizes = [2, 128], strides = [1, 1]} : vector<12x128xf32> to vector<2x128xf32>
    %60 = arith.select %50, %58, %59 : vector<2x128xi1>, vector<2x128xf32>
    %61 = arith.truncf %56 : vector<2x32xf32> to vector<2x32xbf16>
    %cst_26 = arith.constant dense<0.000000e+00> : vector<2x128xf32>
    %62 = tpu.matmul %61, %45, %cst_26 {dimension_numbers = #tpu.dot_dimension_numbers<[1], [0], [0], [1], [0, 0, 1, 1], [], []>} : vector<2x32xbf16>, vector<32x128xbf16>, vector<2x128xf32> -> vector<2x128xf32>
    %63 = arith.addf %60, %62 : vector<2x128xf32>
    %64 = math.tanh %63 : vector<2x128xf32>
    %65 = arith.negf %63 : vector<2x128xf32>
    %66 = math.exp %65 : vector<2x128xf32>
    %cst_27 = arith.constant 1.000000e+00 : f32
    %67 = vector.broadcast %cst_27 : f32 to vector<2x128xf32>
    %68 = arith.addf %67, %66 : vector<2x128xf32>
    %69 = arith.divf %67, %68 : vector<2x128xf32>
    %70 = arith.select %55, %64, %69 : vector<2x128xi1>, vector<2x128xf32>
    %71 = vector.extract_strided_slice %70 {offsets = [0, 0], sizes = [2, 32], strides = [1, 1]} : vector<2x128xf32> to vector<2x32xf32>
    %72 = vector.extract_strided_slice %70 {offsets = [0, 32], sizes = [2, 32], strides = [1, 1]} : vector<2x128xf32> to vector<2x32xf32>
    %73 = vector.extract_strided_slice %70 {offsets = [0, 64], sizes = [2, 32], strides = [1, 1]} : vector<2x128xf32> to vector<2x32xf32>
    %74 = vector.extract_strided_slice %70 {offsets = [0, 96], sizes = [2, 32], strides = [1, 1]} : vector<2x128xf32> to vector<2x32xf32>
    %75 = arith.mulf %72, %57 : vector<2x32xf32>
    %76 = arith.mulf %71, %73 : vector<2x32xf32>
    %77 = arith.addf %75, %76 : vector<2x32xf32>
    %78 = math.tanh %77 : vector<2x32xf32>
    %79 = arith.mulf %74, %78 : vector<2x32xf32>
    %80 = vector.extract_strided_slice %44 {offsets = [2, 0], sizes = [2, 128], strides = [1, 1]} : vector<12x128xf32> to vector<2x128xf32>
    %81 = vector.extract_strided_slice %44 {offsets = [8, 0], sizes = [2, 128], strides = [1, 1]} : vector<12x128xf32> to vector<2x128xf32>
    %82 = arith.select %50, %80, %81 : vector<2x128xi1>, vector<2x128xf32>
    %83 = arith.truncf %79 : vector<2x32xf32> to vector<2x32xbf16>
    %cst_28 = arith.constant dense<0.000000e+00> : vector<2x128xf32>
    %84 = tpu.matmul %83, %45, %cst_28 {dimension_numbers = #tpu.dot_dimension_numbers<[1], [0], [0], [1], [0, 0, 1, 1], [], []>} : vector<2x32xbf16>, vector<32x128xbf16>, vector<2x128xf32> -> vector<2x128xf32>
    %85 = arith.addf %82, %84 : vector<2x128xf32>
    %86 = math.tanh %85 : vector<2x128xf32>
    %87 = arith.negf %85 : vector<2x128xf32>
    %88 = math.exp %87 : vector<2x128xf32>
    %cst_29 = arith.constant 1.000000e+00 : f32
    %89 = vector.broadcast %cst_29 : f32 to vector<2x128xf32>
    %90 = arith.addf %89, %88 : vector<2x128xf32>
    %91 = arith.divf %89, %90 : vector<2x128xf32>
    %92 = arith.select %55, %86, %91 : vector<2x128xi1>, vector<2x128xf32>
    %93 = vector.extract_strided_slice %92 {offsets = [0, 0], sizes = [2, 32], strides = [1, 1]} : vector<2x128xf32> to vector<2x32xf32>
    %94 = vector.extract_strided_slice %92 {offsets = [0, 32], sizes = [2, 32], strides = [1, 1]} : vector<2x128xf32> to vector<2x32xf32>
    %95 = vector.extract_strided_slice %92 {offsets = [0, 64], sizes = [2, 32], strides = [1, 1]} : vector<2x128xf32> to vector<2x32xf32>
    %96 = vector.extract_strided_slice %92 {offsets = [0, 96], sizes = [2, 32], strides = [1, 1]} : vector<2x128xf32> to vector<2x32xf32>
    %97 = arith.mulf %94, %77 : vector<2x32xf32>
    %98 = arith.mulf %93, %95 : vector<2x32xf32>
    %99 = arith.addf %97, %98 : vector<2x32xf32>
    %100 = math.tanh %99 : vector<2x32xf32>
    %101 = arith.mulf %96, %100 : vector<2x32xf32>
    %102 = vector.extract_strided_slice %44 {offsets = [4, 0], sizes = [2, 128], strides = [1, 1]} : vector<12x128xf32> to vector<2x128xf32>
    %103 = vector.extract_strided_slice %44 {offsets = [6, 0], sizes = [2, 128], strides = [1, 1]} : vector<12x128xf32> to vector<2x128xf32>
    %104 = arith.select %50, %102, %103 : vector<2x128xi1>, vector<2x128xf32>
    %105 = arith.truncf %101 : vector<2x32xf32> to vector<2x32xbf16>
    %cst_30 = arith.constant dense<0.000000e+00> : vector<2x128xf32>
    %106 = tpu.matmul %105, %45, %cst_30 {dimension_numbers = #tpu.dot_dimension_numbers<[1], [0], [0], [1], [0, 0, 1, 1], [], []>} : vector<2x32xbf16>, vector<32x128xbf16>, vector<2x128xf32> -> vector<2x128xf32>
    %107 = arith.addf %104, %106 : vector<2x128xf32>
    %108 = math.tanh %107 : vector<2x128xf32>
    %109 = arith.negf %107 : vector<2x128xf32>
    %110 = math.exp %109 : vector<2x128xf32>
    %cst_31 = arith.constant 1.000000e+00 : f32
    %111 = vector.broadcast %cst_31 : f32 to vector<2x128xf32>
    %112 = arith.addf %111, %110 : vector<2x128xf32>
    %113 = arith.divf %111, %112 : vector<2x128xf32>
    %114 = arith.select %55, %108, %113 : vector<2x128xi1>, vector<2x128xf32>
    %115 = vector.extract_strided_slice %114 {offsets = [0, 0], sizes = [2, 32], strides = [1, 1]} : vector<2x128xf32> to vector<2x32xf32>
    %116 = vector.extract_strided_slice %114 {offsets = [0, 32], sizes = [2, 32], strides = [1, 1]} : vector<2x128xf32> to vector<2x32xf32>
    %117 = vector.extract_strided_slice %114 {offsets = [0, 64], sizes = [2, 32], strides = [1, 1]} : vector<2x128xf32> to vector<2x32xf32>
    %118 = vector.extract_strided_slice %114 {offsets = [0, 96], sizes = [2, 32], strides = [1, 1]} : vector<2x128xf32> to vector<2x32xf32>
    %119 = arith.mulf %116, %99 : vector<2x32xf32>
    %120 = arith.mulf %115, %117 : vector<2x32xf32>
    %121 = arith.addf %119, %120 : vector<2x32xf32>
    %122 = math.tanh %121 : vector<2x32xf32>
    %123 = arith.mulf %118, %122 : vector<2x32xf32>
    %124 = vector.extract_strided_slice %44 {offsets = [6, 0], sizes = [2, 128], strides = [1, 1]} : vector<12x128xf32> to vector<2x128xf32>
    %125 = vector.extract_strided_slice %44 {offsets = [4, 0], sizes = [2, 128], strides = [1, 1]} : vector<12x128xf32> to vector<2x128xf32>
    %126 = arith.select %50, %124, %125 : vector<2x128xi1>, vector<2x128xf32>
    %127 = arith.truncf %123 : vector<2x32xf32> to vector<2x32xbf16>
    %cst_32 = arith.constant dense<0.000000e+00> : vector<2x128xf32>
    %128 = tpu.matmul %127, %45, %cst_32 {dimension_numbers = #tpu.dot_dimension_numbers<[1], [0], [0], [1], [0, 0, 1, 1], [], []>} : vector<2x32xbf16>, vector<32x128xbf16>, vector<2x128xf32> -> vector<2x128xf32>
    %129 = arith.addf %126, %128 : vector<2x128xf32>
    %130 = math.tanh %129 : vector<2x128xf32>
    %131 = arith.negf %129 : vector<2x128xf32>
    %132 = math.exp %131 : vector<2x128xf32>
    %cst_33 = arith.constant 1.000000e+00 : f32
    %133 = vector.broadcast %cst_33 : f32 to vector<2x128xf32>
    %134 = arith.addf %133, %132 : vector<2x128xf32>
    %135 = arith.divf %133, %134 : vector<2x128xf32>
    %136 = arith.select %55, %130, %135 : vector<2x128xi1>, vector<2x128xf32>
    %137 = vector.extract_strided_slice %136 {offsets = [0, 0], sizes = [2, 32], strides = [1, 1]} : vector<2x128xf32> to vector<2x32xf32>
    %138 = vector.extract_strided_slice %136 {offsets = [0, 32], sizes = [2, 32], strides = [1, 1]} : vector<2x128xf32> to vector<2x32xf32>
    %139 = vector.extract_strided_slice %136 {offsets = [0, 64], sizes = [2, 32], strides = [1, 1]} : vector<2x128xf32> to vector<2x32xf32>
    %140 = vector.extract_strided_slice %136 {offsets = [0, 96], sizes = [2, 32], strides = [1, 1]} : vector<2x128xf32> to vector<2x32xf32>
    %141 = arith.mulf %138, %121 : vector<2x32xf32>
    %142 = arith.mulf %137, %139 : vector<2x32xf32>
    %143 = arith.addf %141, %142 : vector<2x32xf32>
    %144 = math.tanh %143 : vector<2x32xf32>
    %145 = arith.mulf %140, %144 : vector<2x32xf32>
    %146 = vector.extract_strided_slice %44 {offsets = [8, 0], sizes = [2, 128], strides = [1, 1]} : vector<12x128xf32> to vector<2x128xf32>
    %147 = vector.extract_strided_slice %44 {offsets = [2, 0], sizes = [2, 128], strides = [1, 1]} : vector<12x128xf32> to vector<2x128xf32>
    %148 = arith.select %50, %146, %147 : vector<2x128xi1>, vector<2x128xf32>
    %149 = arith.truncf %145 : vector<2x32xf32> to vector<2x32xbf16>
    %cst_34 = arith.constant dense<0.000000e+00> : vector<2x128xf32>
    %150 = tpu.matmul %149, %45, %cst_34 {dimension_numbers = #tpu.dot_dimension_numbers<[1], [0], [0], [1], [0, 0, 1, 1], [], []>} : vector<2x32xbf16>, vector<32x128xbf16>, vector<2x128xf32> -> vector<2x128xf32>
    %151 = arith.addf %148, %150 : vector<2x128xf32>
    %152 = math.tanh %151 : vector<2x128xf32>
    %153 = arith.negf %151 : vector<2x128xf32>
    %154 = math.exp %153 : vector<2x128xf32>
    %cst_35 = arith.constant 1.000000e+00 : f32
    %155 = vector.broadcast %cst_35 : f32 to vector<2x128xf32>
    %156 = arith.addf %155, %154 : vector<2x128xf32>
    %157 = arith.divf %155, %156 : vector<2x128xf32>
    %158 = arith.select %55, %152, %157 : vector<2x128xi1>, vector<2x128xf32>
    %159 = vector.extract_strided_slice %158 {offsets = [0, 0], sizes = [2, 32], strides = [1, 1]} : vector<2x128xf32> to vector<2x32xf32>
    %160 = vector.extract_strided_slice %158 {offsets = [0, 32], sizes = [2, 32], strides = [1, 1]} : vector<2x128xf32> to vector<2x32xf32>
    %161 = vector.extract_strided_slice %158 {offsets = [0, 64], sizes = [2, 32], strides = [1, 1]} : vector<2x128xf32> to vector<2x32xf32>
    %162 = vector.extract_strided_slice %158 {offsets = [0, 96], sizes = [2, 32], strides = [1, 1]} : vector<2x128xf32> to vector<2x32xf32>
    %163 = arith.mulf %160, %143 : vector<2x32xf32>
    %164 = arith.mulf %159, %161 : vector<2x32xf32>
    %165 = arith.addf %163, %164 : vector<2x32xf32>
    %166 = math.tanh %165 : vector<2x32xf32>
    %167 = arith.mulf %162, %166 : vector<2x32xf32>
    %168 = vector.extract_strided_slice %44 {offsets = [10, 0], sizes = [2, 128], strides = [1, 1]} : vector<12x128xf32> to vector<2x128xf32>
    %169 = vector.extract_strided_slice %44 {offsets = [0, 0], sizes = [2, 128], strides = [1, 1]} : vector<12x128xf32> to vector<2x128xf32>
    %170 = arith.select %50, %168, %169 : vector<2x128xi1>, vector<2x128xf32>
    %171 = arith.truncf %167 : vector<2x32xf32> to vector<2x32xbf16>
    %cst_36 = arith.constant dense<0.000000e+00> : vector<2x128xf32>
    %172 = tpu.matmul %171, %45, %cst_36 {dimension_numbers = #tpu.dot_dimension_numbers<[1], [0], [0], [1], [0, 0, 1, 1], [], []>} : vector<2x32xbf16>, vector<32x128xbf16>, vector<2x128xf32> -> vector<2x128xf32>
    %173 = arith.addf %170, %172 : vector<2x128xf32>
    %174 = math.tanh %173 : vector<2x128xf32>
    %175 = arith.negf %173 : vector<2x128xf32>
    %176 = math.exp %175 : vector<2x128xf32>
    %cst_37 = arith.constant 1.000000e+00 : f32
    %177 = vector.broadcast %cst_37 : f32 to vector<2x128xf32>
    %178 = arith.addf %177, %176 : vector<2x128xf32>
    %179 = arith.divf %177, %178 : vector<2x128xf32>
    %180 = arith.select %55, %174, %179 : vector<2x128xi1>, vector<2x128xf32>
    %181 = vector.extract_strided_slice %180 {offsets = [0, 0], sizes = [2, 32], strides = [1, 1]} : vector<2x128xf32> to vector<2x32xf32>
    %182 = vector.extract_strided_slice %180 {offsets = [0, 32], sizes = [2, 32], strides = [1, 1]} : vector<2x128xf32> to vector<2x32xf32>
    %183 = vector.extract_strided_slice %180 {offsets = [0, 64], sizes = [2, 32], strides = [1, 1]} : vector<2x128xf32> to vector<2x32xf32>
    %184 = vector.extract_strided_slice %180 {offsets = [0, 96], sizes = [2, 32], strides = [1, 1]} : vector<2x128xf32> to vector<2x32xf32>
    %185 = arith.mulf %182, %165 : vector<2x32xf32>
    %186 = arith.mulf %181, %183 : vector<2x32xf32>
    %187 = arith.addf %185, %186 : vector<2x32xf32>
    %188 = math.tanh %187 : vector<2x32xf32>
    %189 = arith.mulf %184, %188 : vector<2x32xf32>
    %190 = tpu.iota {dimensions = array<i32: 1>} : vector<2x32xi32>
    %c16_i32_38 = arith.constant 16 : i32
    %191 = vector.broadcast %c16_i32_38 : i32 to vector<2x32xi32>
    %192 = arith.cmpi slt, %190, %191 : vector<2x32xi32>
    %193 = arith.select %192, %79, %189 : vector<2x32xi1>, vector<2x32xf32>
    %c0_39 = arith.constant 0 : index
    %c0_40 = arith.constant 0 : index
    %194 = vector.load %arg2[%c0_39, %c0_40] : memref<12x32xf32, #tpu.memory_space<vmem>>, vector<2x32xf32>
    tpu.vector_store %arg2[%c0_39, %c0_40], %193 {strides = array<i32>} : memref<12x32xf32, #tpu.memory_space<vmem>>, vector<2x32xf32>,
    %195 = arith.select %192, %101, %167 : vector<2x32xi1>, vector<2x32xf32>
    %c2 = arith.constant 2 : index
    %c0_41 = arith.constant 0 : index
    %196 = vector.load %arg2[%c2, %c0_41] : memref<12x32xf32, #tpu.memory_space<vmem>>, vector<2x32xf32>
    tpu.vector_store %arg2[%c2, %c0_41], %195 {strides = array<i32>} : memref<12x32xf32, #tpu.memory_space<vmem>>, vector<2x32xf32>,
    %197 = arith.select %192, %123, %145 : vector<2x32xi1>, vector<2x32xf32>
    %c4 = arith.constant 4 : index
    %c0_42 = arith.constant 0 : index
    %198 = vector.load %arg2[%c4, %c0_42] : memref<12x32xf32, #tpu.memory_space<vmem>>, vector<2x32xf32>
    tpu.vector_store %arg2[%c4, %c0_42], %197 {strides = array<i32>} : memref<12x32xf32, #tpu.memory_space<vmem>>, vector<2x32xf32>,
    %199 = arith.select %192, %145, %123 : vector<2x32xi1>, vector<2x32xf32>
    %c6 = arith.constant 6 : index
    %c0_43 = arith.constant 0 : index
    %200 = vector.load %arg2[%c6, %c0_43] : memref<12x32xf32, #tpu.memory_space<vmem>>, vector<2x32xf32>
    tpu.vector_store %arg2[%c6, %c0_43], %199 {strides = array<i32>} : memref<12x32xf32, #tpu.memory_space<vmem>>, vector<2x32xf32>,
    %201 = arith.select %192, %167, %101 : vector<2x32xi1>, vector<2x32xf32>
    %c8_44 = arith.constant 8 : index
    %c0_45 = arith.constant 0 : index
    %202 = vector.load %arg2[%c8_44, %c0_45] : memref<12x32xf32, #tpu.memory_space<vmem>>, vector<2x32xf32>
    tpu.vector_store %arg2[%c8_44, %c0_45], %201 {strides = array<i32>} : memref<12x32xf32, #tpu.memory_space<vmem>>, vector<2x32xf32>,
    %203 = arith.select %192, %189, %79 : vector<2x32xi1>, vector<2x32xf32>
    %c10 = arith.constant 10 : index
    %c0_46 = arith.constant 0 : index
    %204 = vector.load %arg2[%c10, %c0_46] : memref<12x32xf32, #tpu.memory_space<vmem>>, vector<2x32xf32>
    tpu.vector_store %arg2[%c10, %c0_46], %203 {strides = array<i32>} : memref<12x32xf32, #tpu.memory_space<vmem>>, vector<2x32xf32>,
    return
  }
  func.func @transform_0(%arg0: i32) -> (i32, i32) {
    %c0_i32 = arith.constant 0 : i32
    %c0_i32_0 = arith.constant 0 : i32
    %c0_i32_1 = arith.constant 0 : i32
    return %c0_i32, %c0_i32_0 : i32, i32
  }
  func.func @transform_1(%arg0: i32) -> (i32, i32) {
    %c0_i32 = arith.constant 0 : i32
    %c0_i32_0 = arith.constant 0 : i32
    %c0_i32_1 = arith.constant 0 : i32
    return %c0_i32, %c0_i32_0 : i32, i32
  }
}

</mosaic_0001>

<llo_original>
// kernel: lane_encoder.1
$region0: #{lane_encoder.1}
  #allocation0 [shape = 'u32[]', space=smem, size = 0x4, offset = 0x4, fixed_abs, tag = 'smem constant byte address 0x4 - core index']
  #allocation1 [shape = 'u32[144,128]{1,0:T(1,128)}', space=vmem, size = 0x12000, scoped, tag = 'internal scratch']
  %s0 = inlined_call_operand.vmem [shape: f32[168,128], index: 0, kind: input, shape index: {}]
  %s1 = inlined_call_operand.vmem [shape: f32[12,32], index: 1, kind: output, shape index: {}]
  %s2 = sld [smem:[#allocation0]]
  $region14: #{lane_encoder.1} parent=0
    _
  %s4 = ssub.s32 1, %s2
  %s5 = scalar_select 0, %s4, %s2
  // Predicated region
  $region2: #{lane_encoder.1} parent=0 // pred_check
    _
  $region3: #{lane_encoder.1} parent=0 // pred_check_branch
    %7 = sbr.rel (0) target = $region5
  $region4: #{lane_encoder.1} parent=0 // pred_region
    _
  $region5: #{lane_encoder.1} parent=0 // pred_fallthru
    _
  %v9 = vld [vmem:[%s0] sm:$0x1]
  %v10 = vld [vmem:[%s0 + $0x1] sm:$0x1]
  %v11 = vld [vmem:[%s0 + $0x8] sm:$0xff]
  %v12 = vld [vmem:[%s0 + $0x10] sm:$0xf]
  %v13 = vld [vmem:[%s0 + $0x18] sm:$0x3f]
  %v14 = vld [vmem:[%s0 + $0x20] sm:$0xff]
  %v15 = vld [vmem:[%s0 + $0x28] sm:$0xff]
  %v16 = vld [vmem:[%s0 + $0x30] sm:$0xff]
  %v17 = vld [vmem:[%s0 + $0x38] sm:$0xff]
  %v18 = vld [vmem:[%s0 + $0x40] sm:$0xff]
  %v19 = vld [vmem:[%s0 + $0x48] sm:$0xff]
  %v20 = vld [vmem:[%s0 + $0x50] sm:$0xff]
  %v21 = vld [vmem:[%s0 + $0x58] sm:$0xff]
  %v22 = vld [vmem:[%s0 + $0x60] sm:$0x3]
  %v23 = vld [vmem:[%s0 + $0x68] sm:$0xff]
  %v24 = vld [vmem:[%s0 + $0x70] sm:$0xf]
  %v25 = vld [vmem:[%s0 + $0x78] sm:$0xff]
  %v26 = vld [vmem:[%s0 + $0x80] sm:$0xff]
  %v27 = vld [vmem:[%s0 + $0x88] sm:$0xff]
  %v28 = vld [vmem:[%s0 + $0x90] sm:$0xff]
  %v29 = vld [vmem:[%s0 + $0x98] sm:$0xf]
  %v30 = vld [vmem:[%s0 + $0xa0] sm:$0xf]
  %v31 = vpack.c.bf16 %v12, %v11
  %v32 = vpack.c.bf16 %v13, %v13
  %vm33 = vcmask 48128
  %v35 = vsel %vm33, %v31, 0
  %vm37 = vcmask 1042432
  %v39 = vsel %vm37, %v32, 0
  %41 = vmatprep.subr.bf16.mxu0 0
  %42 = vmatpush1.bf16.msra.mxu0 0
  %43 = vmatprep.subr.bf16.mxu0 0
  %44 = vmatpush1.bf16.msra.mxu0 0
  %45 = vmatprep.subr.bf16.mxu0 0
  %46 = vmatpush1.bf16.msra.mxu0 0
  %47 = vmatprep.subr.bf16.mxu0 0
  %48 = vmatpush1.bf16.msra.mxu0 0
  %49 = vmatprep.subr.bf16.mxu0 0
  %50 = vmatpush1.bf16.msra.mxu0 0
  %51 = vmatprep.subr.bf16.mxu0 0
  %52 = vmatpush1.bf16.msra.mxu0 0
  %53 = vmatprep.subr.bf16.mxu0 0
  %54 = vmatpush1.bf16.msra.mxu0 0
  %55 = vmatprep.subr.bf16.mxu0 0
  %56 = vmatpush1.bf16.msra.mxu0 %v39
  %57 = vmatprep.subr.bf16.mxu0 0
  %58 = vmatpush2.bf16.msra.mxu0 0
  %59 = vmatprep.subr.bf16.mxu0 0
  %60 = vmatpush2.bf16.msra.mxu0 0
  %61 = vmatprep.subr.bf16.mxu0 0
  %62 = vmatpush2.bf16.msra.mxu0 0
  %63 = vmatprep.subr.bf16.mxu0 0
  %64 = vmatpush2.bf16.msra.mxu0 0
  %65 = vmatprep.subr.bf16.mxu0 0
  %66 = vmatpush2.bf16.msra.mxu0 0
  %67 = vmatprep.subr.bf16.mxu0 0
  %68 = vmatpush2.bf16.msra.mxu0 0
  %69 = vmatprep.subr.bf16.mxu0 0
  %70 = vmatpush2.bf16.msra.mxu0 0
  %71 = vmatprep.subr.bf16.mxu0 0
  %72 = vmatpush2.bf16.msra.mxu0 0
  %73 = vmatprep.mubr.bf16.mxu0 0
  %74 = vmatmul.mubr.bf16.gmra.mxu0 %v35
  %v75 = vpop.f32.mrf.mxu0
  %v76 = vadd.f32 0.0, %v75
  %v77 = vpop.f32.mrf.mxu0
  %v78 = vpop.f32.mrf.mxu0
  %v79 = vadd.f32 0.0, %v78
  %v80 = vpop.f32.mrf.mxu0
  %81 = vdwg.mxu0
  %vm82 = vcmask 97280
  %v84 = vsel %vm82, %v22, 0
  %vm86 = vcmask 1043456
  %v88 = vsel %vm86, %v79, 0
  %90 = vmatprep.subr.mxu0 0.0
  %91 = vmatpush1.msra.mxu0 0.0
  %92 = vmatprep.subr.mxu0 0.0
  %93 = vmatpush1.msra.mxu0 0.0
  %94 = vmatprep.subr.mxu0 0.0
  %95 = vmatpush1.msra.mxu0 0.0
  %96 = vmatprep.subr.mxu0 0.0
  %97 = vmatpush1.msra.mxu0 0.0
  %98 = vmatprep.subr.mxu0 0.0
  %99 = vmatpush1.msra.mxu0 0.0
  %100 = vmatprep.subr.mxu0 0.0
  %101 = vmatpush1.msra.mxu0 0.0
  %102 = vmatprep.subr.mxu0 0.0
  %103 = vmatpush1.msra.mxu0 0.0
  %104 = vmatprep.subr.mxu0 0.0
  %105 = vmatpush1.msra.mxu0 0.0
  %106 = vmatprep.subr.mxu0 0.0
  %107 = vmatpush1.msra.mxu0 0.0
  %108 = vmatprep.subr.mxu0 0.0
  %109 = vmatpush1.msra.mxu0 0.0
  %110 = vmatprep.subr.mxu0 0.0
  %111 = vmatpush1.msra.mxu0 0.0
  %112 = vmatprep.subr.mxu0 0.0
  %113 = vmatpush1.msra.mxu0 0.0
  %114 = vmatprep.subr.mxu0 0.0
  %115 = vmatpush1.msra.mxu0 0.0
  %116 = vmatprep.subr.mxu0 0.0
  %117 = vmatpush1.msra.mxu0 0.0
  %118 = vmatprep.subr.mxu0 0.0
  %v119 = vand.u32 %v88, 4294901760
  %120 = vmatpush1.msra.mxu0 %v119
  %121 = vmatprep.subr.mxu0 0.0
  %v122 = vand.u32 %v76, 4294901760
  %123 = vmatpush1.msra.mxu0 %v122
  %124 = vmatprep.subr.mxu0 0.0
  %125 = vmatpush2.msra.mxu0 0.0
  %126 = vmatprep.subr.mxu0 0.0
  %127 = vmatpush2.msra.mxu0 0.0
  %128 = vmatprep.subr.mxu0 0.0
  %129 = vmatpush2.msra.mxu0 0.0
  %130 = vmatprep.subr.mxu0 0.0
  %131 = vmatpush2.msra.mxu0 0.0
  %132 = vmatprep.subr.mxu0 0.0
  %133 = vmatpush2.msra.mxu0 0.0
  %134 = vmatprep.subr.mxu0 0.0
  %135 = vmatpush2.msra.mxu0 0.0
  %136 = vmatprep.subr.mxu0 0.0
  %137 = vmatpush2.msra.mxu0 0.0
  %138 = vmatprep.subr.mxu0 0.0
  %139 = vmatpush2.msra.mxu0 0.0
  %140 = vmatprep.subr.mxu0 0.0
  %141 = vmatpush2.msra.mxu0 0.0
  %142 = vmatprep.subr.mxu0 0.0
  %143 = vmatpush2.msra.mxu0 0.0
  %144 = vmatprep.subr.mxu0 0.0
  %145 = vmatpush2.msra.mxu0 0.0
  %146 = vmatprep.subr.mxu0 0.0
  %147 = vmatpush2.msra.mxu0 0.0
  %148 = vmatprep.subr.mxu0 0.0
  %149 = vmatpush2.msra.mxu0 0.0
  %150 = vmatprep.subr.mxu0 0.0
  %151 = vmatpush2.msra.mxu0 0.0
  %152 = vmatprep.subr.mxu0 0.0
  %153 = vmatpush2.msra.mxu0 0.0
  %154 = vmatprep.subr.mxu0 0.0
  %155 = vmatpush2.msra.mxu0 0.0
  %156 = vmatprep.mubr.f32.mxu0 0.0
  %v157 = vand.u32 %v84, 4294901760
  %v158 = vsub.f32 %v84, %v157
  %v159 = vand.u32 %v158, 4294901760
  %v160 = vsub.f32 %v158, %v159
  %v161 = vand.u32 %v160, 4294901760
  %162 = vmatmul.mubr.f32.gmra.mxu0 %v161
  %v163 = vpop.f32.mrf.mxu0
  %v164 = vadd.f32 0.0, %v163
  %v165 = vpop.f32.mrf.mxu0
  %166 = vdwg.mxu0
  %167 = vmatprep.subr.mxu0 0.0
  %168 = vmatpush1.msra.mxu0 0.0
  %169 = vmatprep.subr.mxu0 0.0
  %170 = vmatpush1.msra.mxu0 0.0
  %171 = vmatprep.subr.mxu0 0.0
  %172 = vmatpush1.msra.mxu0 0.0
  %173 = vmatprep.subr.mxu0 0.0
  %174 = vmatpush1.msra.mxu0 0.0
  %175 = vmatprep.subr.mxu0 0.0
  %176 = vmatpush1.msra.mxu0 0.0
  %177 = vmatprep.subr.mxu0 0.0
  %178 = vmatpush1.msra.mxu0 0.0
  %179 = vmatprep.subr.mxu0 0.0
  %180 = vmatpush1.msra.mxu0 0.0
  %181 = vmatprep.subr.mxu0 0.0
  %182 = vmatpush1.msra.mxu0 0.0
  %183 = vmatprep.subr.mxu0 0.0
  %184 = vmatpush1.msra.mxu0 0.0
  %185 = vmatprep.subr.mxu0 0.0
  %186 = vmatpush1.msra.mxu0 0.0
  %187 = vmatprep.subr.mxu0 0.0
  %188 = vmatpush1.msra.mxu0 0.0
  %189 = vmatprep.subr.mxu0 0.0
  %190 = vmatpush1.msra.mxu0 0.0
  %191 = vmatprep.subr.mxu0 0.0
  %192 = vmatpush1.msra.mxu0 0.0
  %193 = vmatprep.subr.mxu0 0.0
  %194 = vmatpush1.msra.mxu0 0.0
  %195 = vmatprep.subr.mxu0 0.0
  %v196 = vand.u32 %v88, 4294901760
  %v197 = vsub.f32 %v88, %v196
  %v198 = vand.u32 %v197, 4294901760
  %v199 = vsub.f32 %v197, %v198
  %v200 = vand.u32 %v199, 4294901760
  %201 = vmatpush1.msra.mxu0 %v200
  %202 = vmatprep.subr.mxu0 0.0
  %v203 = vand.u32 %v76, 4294901760
  %v204 = vsub.f32 %v76, %v203
  %v205 = vand.u32 %v204, 4294901760
  %v206 = vsub.f32 %v204, %v205
  %v207 = vand.u32 %v206, 4294901760
  %208 = vmatpush1.msra.mxu0 %v207
  %209 = vmatprep.subr.mxu0 0.0
  %210 = vmatpush2.msra.mxu0 0.0
  %211 = vmatprep.subr.mxu0 0.0
  %212 = vmatpush2.msra.mxu0 0.0
  %213 = vmatprep.subr.mxu0 0.0
  %214 = vmatpush2.msra.mxu0 0.0
  %215 = vmatprep.subr.mxu0 0.0
  %216 = vmatpush2.msra.mxu0 0.0
  %217 = vmatprep.subr.mxu0 0.0
  %218 = vmatpush2.msra.mxu0 0.0
  %219 = vmatprep.subr.mxu0 0.0
  %220 = vmatpush2.msra.mxu0 0.0
  %221 = vmatprep.subr.mxu0 0.0
  %222 = vmatpush2.msra.mxu0 0.0
  %223 = vmatprep.subr.mxu0 0.0
  %224 = vmatpush2.msra.mxu0 0.0
  %225 = vmatprep.subr.mxu0 0.0
  %226 = vmatpush2.msra.mxu0 0.0
  %227 = vmatprep.subr.mxu0 0.0
  %228 = vmatpush2.msra.mxu0 0.0
  %229 = vmatprep.subr.mxu0 0.0
  %230 = vmatpush2.msra.mxu0 0.0
  %231 = vmatprep.subr.mxu0 0.0
  %232 = vmatpush2.msra.mxu0 0.0
  %233 = vmatprep.subr.mxu0 0.0
  %234 = vmatpush2.msra.mxu0 0.0
  %235 = vmatprep.subr.mxu0 0.0
  %236 = vmatpush2.msra.mxu0 0.0
  %237 = vmatprep.subr.mxu0 0.0
  %238 = vmatpush2.msra.mxu0 0.0
  %239 = vmatprep.subr.mxu0 0.0
  %240 = vmatpush2.msra.mxu0 0.0
  %241 = vmatprep.mubr.f32.mxu0 0.0
  %v242 = vand.u32 %v84, 4294901760
  %243 = vmatmul.mubr.f32.gmra.mxu0 %v242
  %v244 = vpop.f32.mrf.mxu0
  %v245 = vadd.f32 %v164, %v244
  %v246 = vpop.f32.mrf.mxu0
  %247 = vdwg.mxu0
  %248 = vmatprep.subr.mxu0 0.0
  %249 = vmatpush1.msra.mxu0 0.0
  %250 = vmatprep.subr.mxu0 0.0
  %251 = vmatpush1.msra.mxu0 0.0
  %252 = vmatprep.subr.mxu0 0.0
  %253 = vmatpush1.msra.mxu0 0.0
  %254 = vmatprep.subr.mxu0 0.0
  %255 = vmatpush1.msra.mxu0 0.0
  %256 = vmatprep.subr.mxu0 0.0
  %257 = vmatpush1.msra.mxu0 0.0
  %258 = vmatprep.subr.mxu0 0.0
  %259 = vmatpush1.msra.mxu0 0.0
  %260 = vmatprep.subr.mxu0 0.0
  %261 = vmatpush1.msra.mxu0 0.0
  %262 = vmatprep.subr.mxu0 0.0
  %263 = vmatpush1.msra.mxu0 0.0
  %264 = vmatprep.subr.mxu0 0.0
  %265 = vmatpush1.msra.mxu0 0.0
  %266 = vmatprep.subr.mxu0 0.0
  %267 = vmatpush1.msra.mxu0 0.0
  %268 = vmatprep.subr.mxu0 0.0
  %269 = vmatpush1.msra.mxu0 0.0
  %270 = vmatprep.subr.mxu0 0.0
  %271 = vmatpush1.msra.mxu0 0.0
  %272 = vmatprep.subr.mxu0 0.0
  %273 = vmatpush1.msra.mxu0 0.0
  %274 = vmatprep.subr.mxu0 0.0
  %275 = vmatpush1.msra.mxu0 0.0
  %276 = vmatprep.subr.mxu0 0.0
  %v277 = vand.u32 %v88, 4294901760
  %v278 = vsub.f32 %v88, %v277
  %279 = vmatpush1.msra.mxu0 %v278
  %280 = vmatprep.subr.mxu0 0.0
  %v281 = vand.u32 %v76, 4294901760
  %v282 = vsub.f32 %v76, %v281
  %283 = vmatpush1.msra.mxu0 %v282
  %284 = vmatprep.subr.mxu0 0.0
  %285 = vmatpush2.msra.mxu0 0.0
  %286 = vmatprep.subr.mxu0 0.0
  %287 = vmatpush2.msra.mxu0 0.0
  %288 = vmatprep.subr.mxu0 0.0
  %289 = vmatpush2.msra.mxu0 0.0
  %290 = vmatprep.subr.mxu0 0.0
  %291 = vmatpush2.msra.mxu0 0.0
  %292 = vmatprep.subr.mxu0 0.0
  %293 = vmatpush2.msra.mxu0 0.0
  %294 = vmatprep.subr.mxu0 0.0
  %295 = vmatpush2.msra.mxu0 0.0
  %296 = vmatprep.subr.mxu0 0.0
  %297 = vmatpush2.msra.mxu0 0.0
  %298 = vmatprep.subr.mxu0 0.0
  %299 = vmatpush2.msra.mxu0 0.0
  %300 = vmatprep.subr.mxu0 0.0
  %301 = vmatpush2.msra.mxu0 0.0
  %302 = vmatprep.subr.mxu0 0.0
  %303 = vmatpush2.msra.mxu0 0.0
  %304 = vmatprep.subr.mxu0 0.0
  %305 = vmatpush2.msra.mxu0 0.0
  %306 = vmatprep.subr.mxu0 0.0
  %307 = vmatpush2.msra.mxu0 0.0
  %308 = vmatprep.subr.mxu0 0.0
  %309 = vmatpush2.msra.mxu0 0.0
  %310 = vmatprep.subr.mxu0 0.0
  %311 = vmatpush2.msra.mxu0 0.0
  %312 = vmatprep.subr.mxu0 0.0
  %313 = vmatpush2.msra.mxu0 0.0
  %314 = vmatprep.subr.mxu0 0.0
  %315 = vmatpush2.msra.mxu0 0.0
  %316 = vmatprep.mubr.f32.mxu0 0.0
  %v317 = vand.u32 %v84, 4294901760
  %v318 = vsub.f32 %v84, %v317
  %319 = vmatmul.mubr.f32.gmra.mxu0 %v318
  %v320 = vpop.f32.mrf.mxu0
  %v321 = vadd.f32 %v245, %v320
  %v322 = vpop.f32.mrf.mxu0
  %323 = vdwg.mxu0
  %324 = vmatprep.subr.mxu0 0.0
  %325 = vmatpush1.msra.mxu0 0.0
  %326 = vmatprep.subr.mxu0 0.0
  %327 = vmatpush1.msra.mxu0 0.0
  %328 = vmatprep.subr.mxu0 0.0
  %329 = vmatpush1.msra.mxu0 0.0
  %330 = vmatprep.subr.mxu0 0.0
  %331 = vmatpush1.msra.mxu0 0.0
  %332 = vmatprep.subr.mxu0 0.0
  %333 = vmatpush1.msra.mxu0 0.0
  %334 = vmatprep.subr.mxu0 0.0
  %335 = vmatpush1.msra.mxu0 0.0
  %336 = vmatprep.subr.mxu0 0.0
  %337 = vmatpush1.msra.mxu0 0.0
  %338 = vmatprep.subr.mxu0 0.0
  %339 = vmatpush1.msra.mxu0 0.0
  %340 = vmatprep.subr.mxu0 0.0
  %341 = vmatpush1.msra.mxu0 0.0
  %342 = vmatprep.subr.mxu0 0.0
  %343 = vmatpush1.msra.mxu0 0.0
  %344 = vmatprep.subr.mxu0 0.0
  %345 = vmatpush1.msra.mxu0 0.0
  %346 = vmatprep.subr.mxu0 0.0
  %347 = vmatpush1.msra.mxu0 0.0
  %348 = vmatprep.subr.mxu0 0.0
  %349 = vmatpush1.msra.mxu0 0.0
  %350 = vmatprep.subr.mxu0 0.0
  %351 = vmatpush1.msra.mxu0 0.0
  %352 = vmatprep.subr.mxu0 0.0
  %v353 = vand.u32 %v88, 4294901760
  %354 = vmatpush1.msra.mxu0 %v353
  %355 = vmatprep.subr.mxu0 0.0
  %v356 = vand.u32 %v76, 4294901760
  %357 = vmatpush1.msra.mxu0 %v356
  %358 = vmatprep.subr.mxu0 0.0
  %359 = vmatpush2.msra.mxu0 0.0
  %360 = vmatprep.subr.mxu0 0.0
  %361 = vmatpush2.msra.mxu0 0.0
  %362 = vmatprep.subr.mxu0 0.0
  %363 = vmatpush2.msra.mxu0 0.0
  %364 = vmatprep.subr.mxu0 0.0
  %365 = vmatpush2.msra.mxu0 0.0
  %366 = vmatprep.subr.mxu0 0.0
  %367 = vmatpush2.msra.mxu0 0.0
  %368 = vmatprep.subr.mxu0 0.0
  %369 = vmatpush2.msra.mxu0 0.0
  %370 = vmatprep.subr.mxu0 0.0
  %371 = vmatpush2.msra.mxu0 0.0
  %372 = vmatprep.subr.mxu0 0.0
  %373 = vmatpush2.msra.mxu0 0.0
  %374 = vmatprep.subr.mxu0 0.0
  %375 = vmatpush2.msra.mxu0 0.0
  %376 = vmatprep.subr.mxu0 0.0
  %377 = vmatpush2.msra.mxu0 0.0
  %378 = vmatprep.subr.mxu0 0.0
  %379 = vmatpush2.msra.mxu0 0.0
  %380 = vmatprep.subr.mxu0 0.0
  %381 = vmatpush2.msra.mxu0 0.0
  %382 = vmatprep.subr.mxu0 0.0
  %383 = vmatpush2.msra.mxu0 0.0
  %384 = vmatprep.subr.mxu0 0.0
  %385 = vmatpush2.msra.mxu0 0.0
  %386 = vmatprep.subr.mxu0 0.0
  %387 = vmatpush2.msra.mxu0 0.0
  %388 = vmatprep.subr.mxu0 0.0
  %389 = vmatpush2.msra.mxu0 0.0
  %390 = vmatprep.mubr.f32.mxu0 0.0
  %v391 = vand.u32 %v84, 4294901760
  %v392 = vsub.f32 %v84, %v391
  %v393 = vand.u32 %v392, 4294901760
  %394 = vmatmul.mubr.f32.gmra.mxu0 %v393
  %v395 = vpop.f32.mrf.mxu0
  %v396 = vadd.f32 %v321, %v395
  %v397 = vpop.f32.mrf.mxu0
  %398 = vdwg.mxu0
  %399 = vmatprep.subr.mxu0 0.0
  %400 = vmatpush1.msra.mxu0 0.0
  %401 = vmatprep.subr.mxu0 0.0
  %402 = vmatpush1.msra.mxu0 0.0
  %403 = vmatprep.subr.mxu0 0.0
  %404 = vmatpush1.msra.mxu0 0.0
  %405 = vmatprep.subr.mxu0 0.0
  %406 = vmatpush1.msra.mxu0 0.0
  %407 = vmatprep.subr.mxu0 0.0
  %408 = vmatpush1.msra.mxu0 0.0
  %409 = vmatprep.subr.mxu0 0.0
  %410 = vmatpush1.msra.mxu0 0.0
  %411 = vmatprep.subr.mxu0 0.0
  %412 = vmatpush1.msra.mxu0 0.0
  %413 = vmatprep.subr.mxu0 0.0
  %414 = vmatpush1.msra.mxu0 0.0
  %415 = vmatprep.subr.mxu0 0.0
  %416 = vmatpush1.msra.mxu0 0.0
  %417 = vmatprep.subr.mxu0 0.0
  %418 = vmatpush1.msra.mxu0 0.0
  %419 = vmatprep.subr.mxu0 0.0
  %420 = vmatpush1.msra.mxu0 0.0
  %421 = vmatprep.subr.mxu0 0.0
  %422 = vmatpush1.msra.mxu0 0.0
  %423 = vmatprep.subr.mxu0 0.0
  %424 = vmatpush1.msra.mxu0 0.0
  %425 = vmatprep.subr.mxu0 0.0
  %426 = vmatpush1.msra.mxu0 0.0
  %427 = vmatprep.subr.mxu0 0.0
  %v428 = vand.u32 %v88, 4294901760
  %v429 = vsub.f32 %v88, %v428
  %v430 = vand.u32 %v429, 4294901760
  %431 = vmatpush1.msra.mxu0 %v430
  %432 = vmatprep.subr.mxu0 0.0
  %v433 = vand.u32 %v76, 4294901760
  %v434 = vsub.f32 %v76, %v433
  %v435 = vand.u32 %v434, 4294901760
  %436 = vmatpush1.msra.mxu0 %v435
  %437 = vmatprep.subr.mxu0 0.0
  %438 = vmatpush2.msra.mxu0 0.0
  %439 = vmatprep.subr.mxu0 0.0
  %440 = vmatpush2.msra.mxu0 0.0
  %441 = vmatprep.subr.mxu0 0.0
  %442 = vmatpush2.msra.mxu0 0.0
  %443 = vmatprep.subr.mxu0 0.0
  %444 = vmatpush2.msra.mxu0 0.0
  %445 = vmatprep.subr.mxu0 0.0
  %446 = vmatpush2.msra.mxu0 0.0
  %447 = vmatprep.subr.mxu0 0.0
  %448 = vmatpush2.msra.mxu0 0.0
  %449 = vmatprep.subr.mxu0 0.0
  %450 = vmatpush2.msra.mxu0 0.0
  %451 = vmatprep.subr.mxu0 0.0
  %452 = vmatpush2.msra.mxu0 0.0
  %453 = vmatprep.subr.mxu0 0.0
  %454 = vmatpush2.msra.mxu0 0.0
  %455 = vmatprep.subr.mxu0 0.0
  %456 = vmatpush2.msra.mxu0 0.0
  %457 = vmatprep.subr.mxu0 0.0
  %458 = vmatpush2.msra.mxu0 0.0
  %459 = vmatprep.subr.mxu0 0.0
  %460 = vmatpush2.msra.mxu0 0.0
  %461 = vmatprep.subr.mxu0 0.0
  %462 = vmatpush2.msra.mxu0 0.0
  %463 = vmatprep.subr.mxu0 0.0
  %464 = vmatpush2.msra.mxu0 0.0
  %465 = vmatprep.subr.mxu0 0.0
  %466 = vmatpush2.msra.mxu0 0.0
  %467 = vmatprep.subr.mxu0 0.0
  %468 = vmatpush2.msra.mxu0 0.0
  %469 = vmatprep.mubr.f32.mxu0 0.0
  %v470 = vand.u32 %v84, 4294901760
  %471 = vmatmul.mubr.f32.gmra.mxu0 %v470
  %v472 = vpop.f32.mrf.mxu0
  %v473 = vadd.f32 %v396, %v472
  %v474 = vpop.f32.mrf.mxu0
  %475 = vdwg.mxu0
  %476 = vmatprep.subr.mxu0 0.0
  %477 = vmatpush1.msra.mxu0 0.0
  %478 = vmatprep.subr.mxu0 0.0
  %479 = vmatpush1.msra.mxu0 0.0
  %480 = vmatprep.subr.mxu0 0.0
  %481 = vmatpush1.msra.mxu0 0.0
  %482 = vmatprep.subr.mxu0 0.0
  %483 = vmatpush1.msra.mxu0 0.0
  %484 = vmatprep.subr.mxu0 0.0
  %485 = vmatpush1.msra.mxu0 0.0
  %486 = vmatprep.subr.mxu0 0.0
  %487 = vmatpush1.msra.mxu0 0.0
  %488 = vmatprep.subr.mxu0 0.0
  %489 = vmatpush1.msra.mxu0 0.0
  %490 = vmatprep.subr.mxu0 0.0
  %491 = vmatpush1.msra.mxu0 0.0
  %492 = vmatprep.subr.mxu0 0.0
  %493 = vmatpush1.msra.mxu0 0.0
  %494 = vmatprep.subr.mxu0 0.0
  %495 = vmatpush1.msra.mxu0 0.0
  %496 = vmatprep.subr.mxu0 0.0
  %497 = vmatpush1.msra.mxu0 0.0
  %498 = vmatprep.subr.mxu0 0.0
  %499 = vmatpush1.msra.mxu0 0.0
  %500 = vmatprep.subr.mxu0 0.0
  %501 = vmatpush1.msra.mxu0 0.0
  %502 = vmatprep.subr.mxu0 0.0
  %503 = vmatpush1.msra.mxu0 0.0
  %504 = vmatprep.subr.mxu0 0.0
  %v505 = vand.u32 %v88, 4294901760
  %506 = vmatpush1.msra.mxu0 %v505
  %507 = vmatprep.subr.mxu0 0.0
  %v508 = vand.u32 %v76, 4294901760
  %509 = vmatpush1.msra.mxu0 %v508
  %510 = vmatprep.subr.mxu0 0.0
  %511 = vmatpush2.msra.mxu0 0.0
  %512 = vmatprep.subr.mxu0 0.0
  %513 = vmatpush2.msra.mxu0 0.0
  %514 = vmatprep.subr.mxu0 0.0
  %515 = vmatpush2.msra.mxu0 0.0
  %516 = vmatprep.subr.mxu0 0.0
  %517 = vmatpush2.msra.mxu0 0.0
  %518 = vmatprep.subr.mxu0 0.0
  %519 = vmatpush2.msra.mxu0 0.0
  %520 = vmatprep.subr.mxu0 0.0
  %521 = vmatpush2.msra.mxu0 0.0
  %522 = vmatprep.subr.mxu0 0.0
  %523 = vmatpush2.msra.mxu0 0.0
  %524 = vmatprep.subr.mxu0 0.0
  %525 = vmatpush2.msra.mxu0 0.0
  %526 = vmatprep.subr.mxu0 0.0
  %527 = vmatpush2.msra.mxu0 0.0
  %528 = vmatprep.subr.mxu0 0.0
  %529 = vmatpush2.msra.mxu0 0.0
  %530 = vmatprep.subr.mxu0 0.0
  %531 = vmatpush2.msra.mxu0 0.0
  %532 = vmatprep.subr.mxu0 0.0
  %533 = vmatpush2.msra.mxu0 0.0
  %534 = vmatprep.subr.mxu0 0.0
  %535 = vmatpush2.msra.mxu0 0.0
  %536 = vmatprep.subr.mxu0 0.0
  %537 = vmatpush2.msra.mxu0 0.0
  %538 = vmatprep.subr.mxu0 0.0
  %539 = vmatpush2.msra.mxu0 0.0
  %540 = vmatprep.subr.mxu0 0.0
  %541 = vmatpush2.msra.mxu0 0.0
  %542 = vmatprep.mubr.f32.mxu0 0.0
  %v543 = vand.u32 %v84, 4294901760
  %544 = vmatmul.mubr.f32.gmra.mxu0 %v543
  %v545 = vpop.f32.mrf.mxu0
  %v546 = vadd.f32 %v473, %v545
  %v547 = vpop.f32.mrf.mxu0
  %548 = vdwg.mxu0
  %v549 = vmul.f32 %v76, %v76
  %v550 = vmul.f32 %v79, %v79
  %v552 = vsel %vm86, %v550, 0
  %554 = vmatprep.subr.mxu0 0.0
  %555 = vmatpush1.msra.mxu0 0.0
  %556 = vmatprep.subr.mxu0 0.0
  %557 = vmatpush1.msra.mxu0 0.0
  %558 = vmatprep.subr.mxu0 0.0
  %559 = vmatpush1.msra.mxu0 0.0
  %560 = vmatprep.subr.mxu0 0.0
  %561 = vmatpush1.msra.mxu0 0.0
  %562 = vmatprep.subr.mxu0 0.0
  %563 = vmatpush1.msra.mxu0 0.0
  %564 = vmatprep.subr.mxu0 0.0
  %565 = vmatpush1.msra.mxu0 0.0
  %566 = vmatprep.subr.mxu0 0.0
  %567 = vmatpush1.msra.mxu0 0.0
  %568 = vmatprep.subr.mxu0 0.0
  %569 = vmatpush1.msra.mxu0 0.0
  %570 = vmatprep.subr.mxu0 0.0
  %571 = vmatpush1.msra.mxu0 0.0
  %572 = vmatprep.subr.mxu0 0.0
  %573 = vmatpush1.msra.mxu0 0.0
  %574 = vmatprep.subr.mxu0 0.0
  %575 = vmatpush1.msra.mxu0 0.0
  %576 = vmatprep.subr.mxu0 0.0
  %577 = vmatpush1.msra.mxu0 0.0
  %578 = vmatprep.subr.mxu0 0.0
  %579 = vmatpush1.msra.mxu0 0.0
  %580 = vmatprep.subr.mxu0 0.0
  %581 = vmatpush1.msra.mxu0 0.0
  %582 = vmatprep.subr.mxu0 0.0
  %v583 = vand.u32 %v552, 4294901760
  %584 = vmatpush1.msra.mxu0 %v583
  %585 = vmatprep.subr.mxu0 0.0
  %v586 = vand.u32 %v549, 4294901760
  %587 = vmatpush1.msra.mxu0 %v586
  %588 = vmatprep.subr.mxu0 0.0
  %589 = vmatpush2.msra.mxu0 0.0
  %590 = vmatprep.subr.mxu0 0.0
  %591 = vmatpush2.msra.mxu0 0.0
  %592 = vmatprep.subr.mxu0 0.0
  %593 = vmatpush2.msra.mxu0 0.0
  %594 = vmatprep.subr.mxu0 0.0
  %595 = vmatpush2.msra.mxu0 0.0
  %596 = vmatprep.subr.mxu0 0.0
  %597 = vmatpush2.msra.mxu0 0.0
  %598 = vmatprep.subr.mxu0 0.0
  %599 = vmatpush2.msra.mxu0 0.0
  %600 = vmatprep.subr.mxu0 0.0
  %601 = vmatpush2.msra.mxu0 0.0
  %602 = vmatprep.subr.mxu0 0.0
  %603 = vmatpush2.msra.mxu0 0.0
  %604 = vmatprep.subr.mxu0 0.0
  %605 = vmatpush2.msra.mxu0 0.0
  %606 = vmatprep.subr.mxu0 0.0
  %607 = vmatpush2.msra.mxu0 0.0
  %608 = vmatprep.subr.mxu0 0.0
  %609 = vmatpush2.msra.mxu0 0.0
  %610 = vmatprep.subr.mxu0 0.0
  %611 = vmatpush2.msra.mxu0 0.0
  %612 = vmatprep.subr.mxu0 0.0
  %613 = vmatpush2.msra.mxu0 0.0
  %614 = vmatprep.subr.mxu0 0.0
  %615 = vmatpush2.msra.mxu0 0.0
  %616 = vmatprep.subr.mxu0 0.0
  %617 = vmatpush2.msra.mxu0 0.0
  %618 = vmatprep.subr.mxu0 0.0
  %619 = vmatpush2.msra.mxu0 0.0
  %620 = vmatprep.mubr.f32.mxu0 0.0
  %v621 = vand.u32 %v84, 4294901760
  %v622 = vsub.f32 %v84, %v621
  %v623 = vand.u32 %v622, 4294901760
  %v624 = vsub.f32 %v622, %v623
  %v625 = vand.u32 %v624, 4294901760
  %626 = vmatmul.mubr.f32.gmra.mxu0 %v625
  %v627 = vpop.f32.mrf.mxu0
  %v628 = vadd.f32 0.0, %v627
  %v629 = vpop.f32.mrf.mxu0
  %630 = vdwg.mxu0
  %631 = vmatprep.subr.mxu0 0.0
  %632 = vmatpush1.msra.mxu0 0.0
  %633 = vmatprep.subr.mxu0 0.0
  %634 = vmatpush1.msra.mxu0 0.0
  %635 = vmatprep.subr.mxu0 0.0
  %636 = vmatpush1.msra.mxu0 0.0
  %637 = vmatprep.subr.mxu0 0.0
  %638 = vmatpush1.msra.mxu0 0.0
  %639 = vmatprep.subr.mxu0 0.0
  %640 = vmatpush1.msra.mxu0 0.0
  %641 = vmatprep.subr.mxu0 0.0
  %642 = vmatpush1.msra.mxu0 0.0
  %643 = vmatprep.subr.mxu0 0.0
  %644 = vmatpush1.msra.mxu0 0.0
  %645 = vmatprep.subr.mxu0 0.0
  %646 = vmatpush1.msra.mxu0 0.0
  %647 = vmatprep.subr.mxu0 0.0
  %648 = vmatpush1.msra.mxu0 0.0
  %649 = vmatprep.subr.mxu0 0.0
  %650 = vmatpush1.msra.mxu0 0.0
  %651 = vmatprep.subr.mxu0 0.0
  %652 = vmatpush1.msra.mxu0 0.0
  %653 = vmatprep.subr.mxu0 0.0
  %654 = vmatpush1.msra.mxu0 0.0
  %655 = vmatprep.subr.mxu0 0.0
  %656 = vmatpush1.msra.mxu0 0.0
  %657 = vmatprep.subr.mxu0 0.0
  %658 = vmatpush1.msra.mxu0 0.0
  %659 = vmatprep.subr.mxu0 0.0
  %v660 = vand.u32 %v552, 4294901760
  %v661 = vsub.f32 %v552, %v660
  %v662 = vand.u32 %v661, 4294901760
  %v663 = vsub.f32 %v661, %v662
  %v664 = vand.u32 %v663, 4294901760
  %665 = vmatpush1.msra.mxu0 %v664
  %666 = vmatprep.subr.mxu0 0.0
  %v667 = vand.u32 %v549, 4294901760
  %v668 = vsub.f32 %v549, %v667
  %v669 = vand.u32 %v668, 4294901760
  %v670 = vsub.f32 %v668, %v669
  %v671 = vand.u32 %v670, 4294901760
  %672 = vmatpush1.msra.mxu0 %v671
  %673 = vmatprep.subr.mxu0 0.0
  %674 = vmatpush2.msra.mxu0 0.0
  %675 = vmatprep.subr.mxu0 0.0
  %676 = vmatpush2.msra.mxu0 0.0
  %677 = vmatprep.subr.mxu0 0.0
  %678 = vmatpush2.msra.mxu0 0.0
  %679 = vmatprep.subr.mxu0 0.0
  %680 = vmatpush2.msra.mxu0 0.0
  %681 = vmatprep.subr.mxu0 0.0
  %682 = vmatpush2.msra.mxu0 0.0
  %683 = vmatprep.subr.mxu0 0.0
  %684 = vmatpush2.msra.mxu0 0.0
  %685 = vmatprep.subr.mxu0 0.0
  %686 = vmatpush2.msra.mxu0 0.0
  %687 = vmatprep.subr.mxu0 0.0
  %688 = vmatpush2.msra.mxu0 0.0
  %689 = vmatprep.subr.mxu0 0.0
  %690 = vmatpush2.msra.mxu0 0.0
  %691 = vmatprep.subr.mxu0 0.0
  %692 = vmatpush2.msra.mxu0 0.0
  %693 = vmatprep.subr.mxu0 0.0
  %694 = vmatpush2.msra.mxu0 0.0
  %695 = vmatprep.subr.mxu0 0.0
  %696 = vmatpush2.msra.mxu0 0.0
  %697 = vmatprep.subr.mxu0 0.0
  %698 = vmatpush2.msra.mxu0 0.0
  %699 = vmatprep.subr.mxu0 0.0
  %700 = vmatpush2.msra.mxu0 0.0
  %701 = vmatprep.subr.mxu0 0.0
  %702 = vmatpush2.msra.mxu0 0.0
  %703 = vmatprep.subr.mxu0 0.0
  %704 = vmatpush2.msra.mxu0 0.0
  %705 = vmatprep.mubr.f32.mxu0 0.0
  %v706 = vand.u32 %v84, 4294901760
  %707 = vmatmul.mubr.f32.gmra.mxu0 %v706
  %v708 = vpop.f32.mrf.mxu0
  %v709 = vadd.f32 %v628, %v708
  %v710 = vpop.f32.mrf.mxu0
  %711 = vdwg.mxu0
  %712 = vmatprep.subr.mxu0 0.0
  %713 = vmatpush1.msra.mxu0 0.0
  %714 = vmatprep.subr.mxu0 0.0
  %715 = vmatpush1.msra.mxu0 0.0
  %716 = vmatprep.subr.mxu0 0.0
  %717 = vmatpush1.msra.mxu0 0.0
  %718 = vmatprep.subr.mxu0 0.0
  %719 = vmatpush1.msra.mxu0 0.0
  %720 = vmatprep.subr.mxu0 0.0
  %721 = vmatpush1.msra.mxu0 0.0
  %722 = vmatprep.subr.mxu0 0.0
  %723 = vmatpush1.msra.mxu0 0.0
  %724 = vmatprep.subr.mxu0 0.0
  %725 = vmatpush1.msra.mxu0 0.0
  %726 = vmatprep.subr.mxu0 0.0
  %727 = vmatpush1.msra.mxu0 0.0
  %728 = vmatprep.subr.mxu0 0.0
  %729 = vmatpush1.msra.mxu0 0.0
  %730 = vmatprep.subr.mxu0 0.0
  %731 = vmatpush1.msra.mxu0 0.0
  %732 = vmatprep.subr.mxu0 0.0
  %733 = vmatpush1.msra.mxu0 0.0
  %734 = vmatprep.subr.mxu0 0.0
  %735 = vmatpush1.msra.mxu0 0.0
  %736 = vmatprep.subr.mxu0 0.0
  %737 = vmatpush1.msra.mxu0 0.0
  %738 = vmatprep.subr.mxu0 0.0
  %739 = vmatpush1.msra.mxu0 0.0
  %740 = vmatprep.subr.mxu0 0.0
  %v741 = vand.u32 %v552, 4294901760
  %v742 = vsub.f32 %v552, %v741
  %743 = vmatpush1.msra.mxu0 %v742
  %744 = vmatprep.subr.mxu0 0.0
  %v745 = vand.u32 %v549, 4294901760
  %v746 = vsub.f32 %v549, %v745
  %747 = vmatpush1.msra.mxu0 %v746
  %748 = vmatprep.subr.mxu0 0.0
  %749 = vmatpush2.msra.mxu0 0.0
  %750 = vmatprep.subr.mxu0 0.0
  %751 = vmatpush2.msra.mxu0 0.0
  %752 = vmatprep.subr.mxu0 0.0
  %753 = vmatpush2.msra.mxu0 0.0
  %754 = vmatprep.subr.mxu0 0.0
  %755 = vmatpush2.msra.mxu0 0.0
  %756 = vmatprep.subr.mxu0 0.0
  %757 = vmatpush2.msra.mxu0 0.0
  %758 = vmatprep.subr.mxu0 0.0
  %759 = vmatpush2.msra.mxu0 0.0
  %760 = vmatprep.subr.mxu0 0.0
  %761 = vmatpush2.msra.mxu0 0.0
  %762 = vmatprep.subr.mxu0 0.0
  %763 = vmatpush2.msra.mxu0 0.0
  %764 = vmatprep.subr.mxu0 0.0
  %765 = vmatpush2.msra.mxu0 0.0
  %766 = vmatprep.subr.mxu0 0.0
  %767 = vmatpush2.msra.mxu0 0.0
  %768 = vmatprep.subr.mxu0 0.0
  %769 = vmatpush2.msra.mxu0 0.0
  %770 = vmatprep.subr.mxu0 0.0
  %771 = vmatpush2.msra.mxu0 0.0
  %772 = vmatprep.subr.mxu0 0.0
  %773 = vmatpush2.msra.mxu0 0.0
  %774 = vmatprep.subr.mxu0 0.0
  %775 = vmatpush2.msra.mxu0 0.0
  %776 = vmatprep.subr.mxu0 0.0
  %777 = vmatpush2.msra.mxu0 0.0
  %778 = vmatprep.subr.mxu0 0.0
  %779 = vmatpush2.msra.mxu0 0.0
  %780 = vmatprep.mubr.f32.mxu0 0.0
  %v781 = vand.u32 %v84, 4294901760
  %v782 = vsub.f32 %v84, %v781
  %783 = vmatmul.mubr.f32.gmra.mxu0 %v782
  %v784 = vpop.f32.mrf.mxu0
  %v785 = vadd.f32 %v709, %v784
  %v786 = vpop.f32.mrf.mxu0
  %787 = vdwg.mxu0
  %788 = vmatprep.subr.mxu0 0.0
  %789 = vmatpush1.msra.mxu0 0.0
  %790 = vmatprep.subr.mxu0 0.0
  %791 = vmatpush1.msra.mxu0 0.0
  %792 = vmatprep.subr.mxu0 0.0
  %793 = vmatpush1.msra.mxu0 0.0
  %794 = vmatprep.subr.mxu0 0.0
  %795 = vmatpush1.msra.mxu0 0.0
  %796 = vmatprep.subr.mxu0 0.0
  %797 = vmatpush1.msra.mxu0 0.0
  %798 = vmatprep.subr.mxu0 0.0
  %799 = vmatpush1.msra.mxu0 0.0
  %800 = vmatprep.subr.mxu0 0.0
  %801 = vmatpush1.msra.mxu0 0.0
  %802 = vmatprep.subr.mxu0 0.0
  %803 = vmatpush1.msra.mxu0 0.0
  %804 = vmatprep.subr.mxu0 0.0
  %805 = vmatpush1.msra.mxu0 0.0
  %806 = vmatprep.subr.mxu0 0.0
  %807 = vmatpush1.msra.mxu0 0.0
  %808 = vmatprep.subr.mxu0 0.0
  %809 = vmatpush1.msra.mxu0 0.0
  %810 = vmatprep.subr.mxu0 0.0
  %811 = vmatpush1.msra.mxu0 0.0
  %812 = vmatprep.subr.mxu0 0.0
  %813 = vmatpush1.msra.mxu0 0.0
  %814 = vmatprep.subr.mxu0 0.0
  %815 = vmatpush1.msra.mxu0 0.0
  %816 = vmatprep.subr.mxu0 0.0
  %v817 = vand.u32 %v552, 4294901760
  %818 = vmatpush1.msra.mxu0 %v817
  %819 = vmatprep.subr.mxu0 0.0
  %v820 = vand.u32 %v549, 4294901760
  %821 = vmatpush1.msra.mxu0 %v820
  %822 = vmatprep.subr.mxu0 0.0
  %823 = vmatpush2.msra.mxu0 0.0
  %824 = vmatprep.subr.mxu0 0.0
  %825 = vmatpush2.msra.mxu0 0.0
  %826 = vmatprep.subr.mxu0 0.0
  %827 = vmatpush2.msra.mxu0 0.0
  %828 = vmatprep.subr.mxu0 0.0
  %829 = vmatpush2.msra.mxu0 0.0
  %830 = vmatprep.subr.mxu0 0.0
  %831 = vmatpush2.msra.mxu0 0.0
  %832 = vmatprep.subr.mxu0 0.0
  %833 = vmatpush2.msra.mxu0 0.0
  %834 = vmatprep.subr.mxu0 0.0
  %835 = vmatpush2.msra.mxu0 0.0
  %836 = vmatprep.subr.mxu0 0.0
  %837 = vmatpush2.msra.mxu0 0.0
  %838 = vmatprep.subr.mxu0 0.0
  %839 = vmatpush2.msra.mxu0 0.0
  %840 = vmatprep.subr.mxu0 0.0
  %841 = vmatpush2.msra.mxu0 0.0
  %842 = vmatprep.subr.mxu0 0.0
  %843 = vmatpush2.msra.mxu0 0.0
  %844 = vmatprep.subr.mxu0 0.0
  %845 = vmatpush2.msra.mxu0 0.0
  %846 = vmatprep.subr.mxu0 0.0
  %847 = vmatpush2.msra.mxu0 0.0
  %848 = vmatprep.subr.mxu0 0.0
  %849 = vmatpush2.msra.mxu0 0.0
  %850 = vmatprep.subr.mxu0 0.0
  %851 = vmatpush2.msra.mxu0 0.0
  %852 = vmatprep.subr.mxu0 0.0
  %853 = vmatpush2.msra.mxu0 0.0
  %854 = vmatprep.mubr.f32.mxu0 0.0
  %v855 = vand.u32 %v84, 4294901760
  %v856 = vsub.f32 %v84, %v855
  %v857 = vand.u32 %v856, 4294901760
  %858 = vmatmul.mubr.f32.gmra.mxu0 %v857
  %v859 = vpop.f32.mrf.mxu0
  %v860 = vadd.f32 %v785, %v859
  %v861 = vpop.f32.mrf.mxu0
  %862 = vdwg.mxu0
  %863 = vmatprep.subr.mxu0 0.0
  %864 = vmatpush1.msra.mxu0 0.0
  %865 = vmatprep.subr.mxu0 0.0
  %866 = vmatpush1.msra.mxu0 0.0
  %867 = vmatprep.subr.mxu0 0.0
  %868 = vmatpush1.msra.mxu0 0.0
  %869 = vmatprep.subr.mxu0 0.0
  %870 = vmatpush1.msra.mxu0 0.0
  %871 = vmatprep.subr.mxu0 0.0
  %872 = vmatpush1.msra.mxu0 0.0
  %873 = vmatprep.subr.mxu0 0.0
  %874 = vmatpush1.msra.mxu0 0.0
  %875 = vmatprep.subr.mxu0 0.0
  %876 = vmatpush1.msra.mxu0 0.0
  %877 = vmatprep.subr.mxu0 0.0
  %878 = vmatpush1.msra.mxu0 0.0
  %879 = vmatprep.subr.mxu0 0.0
  %880 = vmatpush1.msra.mxu0 0.0
  %881 = vmatprep.subr.mxu0 0.0
  %882 = vmatpush1.msra.mxu0 0.0
  %883 = vmatprep.subr.mxu0 0.0
  %884 = vmatpush1.msra.mxu0 0.0
  %885 = vmatprep.subr.mxu0 0.0
  %886 = vmatpush1.msra.mxu0 0.0
  %887 = vmatprep.subr.mxu0 0.0
  %888 = vmatpush1.msra.mxu0 0.0
  %889 = vmatprep.subr.mxu0 0.0
  %890 = vmatpush1.msra.mxu0 0.0
  %891 = vmatprep.subr.mxu0 0.0
  %v892 = vand.u32 %v552, 4294901760
  %v893 = vsub.f32 %v552, %v892
  %v894 = vand.u32 %v893, 4294901760
  %895 = vmatpush1.msra.mxu0 %v894
  %896 = vmatprep.subr.mxu0 0.0
  %v897 = vand.u32 %v549, 4294901760
  %v898 = vsub.f32 %v549, %v897
  %v899 = vand.u32 %v898, 4294901760
  %900 = vmatpush1.msra.mxu0 %v899
  %901 = vmatprep.subr.mxu0 0.0
  %902 = vmatpush2.msra.mxu0 0.0
  %903 = vmatprep.subr.mxu0 0.0
  %904 = vmatpush2.msra.mxu0 0.0
  %905 = vmatprep.subr.mxu0 0.0
  %906 = vmatpush2.msra.mxu0 0.0
  %907 = vmatprep.subr.mxu0 0.0
  %908 = vmatpush2.msra.mxu0 0.0
  %909 = vmatprep.subr.mxu0 0.0
  %910 = vmatpush2.msra.mxu0 0.0
  %911 = vmatprep.subr.mxu0 0.0
  %912 = vmatpush2.msra.mxu0 0.0
  %913 = vmatprep.subr.mxu0 0.0
  %914 = vmatpush2.msra.mxu0 0.0
  %915 = vmatprep.subr.mxu0 0.0
  %916 = vmatpush2.msra.mxu0 0.0
  %917 = vmatprep.subr.mxu0 0.0
  %918 = vmatpush2.msra.mxu0 0.0
  %919 = vmatprep.subr.mxu0 0.0
  %920 = vmatpush2.msra.mxu0 0.0
  %921 = vmatprep.subr.mxu0 0.0
  %922 = vmatpush2.msra.mxu0 0.0
  %923 = vmatprep.subr.mxu0 0.0
  %924 = vmatpush2.msra.mxu0 0.0
  %925 = vmatprep.subr.mxu0 0.0
  %926 = vmatpush2.msra.mxu0 0.0
  %927 = vmatprep.subr.mxu0 0.0
  %928 = vmatpush2.msra.mxu0 0.0
  %929 = vmatprep.subr.mxu0 0.0
  %930 = vmatpush2.msra.mxu0 0.0
  %931 = vmatprep.subr.mxu0 0.0
  %932 = vmatpush2.msra.mxu0 0.0
  %933 = vmatprep.mubr.f32.mxu0 0.0
  %v934 = vand.u32 %v84, 4294901760
  %935 = vmatmul.mubr.f32.gmra.mxu0 %v934
  %v936 = vpop.f32.mrf.mxu0
  %v937 = vadd.f32 %v860, %v936
  %v938 = vpop.f32.mrf.mxu0
  %939 = vdwg.mxu0
  %940 = vmatprep.subr.mxu0 0.0
  %941 = vmatpush1.msra.mxu0 0.0
  %942 = vmatprep.subr.mxu0 0.0
  %943 = vmatpush1.msra.mxu0 0.0
  %944 = vmatprep.subr.mxu0 0.0
  %945 = vmatpush1.msra.mxu0 0.0
  %946 = vmatprep.subr.mxu0 0.0
  %947 = vmatpush1.msra.mxu0 0.0
  %948 = vmatprep.subr.mxu0 0.0
  %949 = vmatpush1.msra.mxu0 0.0
  %950 = vmatprep.subr.mxu0 0.0
  %951 = vmatpush1.msra.mxu0 0.0
  %952 = vmatprep.subr.mxu0 0.0
  %953 = vmatpush1.msra.mxu0 0.0
  %954 = vmatprep.subr.mxu0 0.0
  %955 = vmatpush1.msra.mxu0 0.0
  %956 = vmatprep.subr.mxu0 0.0
  %957 = vmatpush1.msra.mxu0 0.0
  %958 = vmatprep.subr.mxu0 0.0
  %959 = vmatpush1.msra.mxu0 0.0
  %960 = vmatprep.subr.mxu0 0.0
  %961 = vmatpush1.msra.mxu0 0.0
  %962 = vmatprep.subr.mxu0 0.0
  %963 = vmatpush1.msra.mxu0 0.0
  %964 = vmatprep.subr.mxu0 0.0
  %965 = vmatpush1.msra.mxu0 0.0
  %966 = vmatprep.subr.mxu0 0.0
  %967 = vmatpush1.msra.mxu0 0.0
  %968 = vmatprep.subr.mxu0 0.0
  %v969 = vand.u32 %v552, 4294901760
  %970 = vmatpush1.msra.mxu0 %v969
  %971 = vmatprep.subr.mxu0 0.0
  %v972 = vand.u32 %v549, 4294901760
  %973 = vmatpush1.msra.mxu0 %v972
  %974 = vmatprep.subr.mxu0 0.0
  %975 = vmatpush2.msra.mxu0 0.0
  %976 = vmatprep.subr.mxu0 0.0
  %977 = vmatpush2.msra.mxu0 0.0
  %978 = vmatprep.subr.mxu0 0.0
  %979 = vmatpush2.msra.mxu0 0.0
  %980 = vmatprep.subr.mxu0 0.0
  %981 = vmatpush2.msra.mxu0 0.0
  %982 = vmatprep.subr.mxu0 0.0
  %983 = vmatpush2.msra.mxu0 0.0
  %984 = vmatprep.subr.mxu0 0.0
  %985 = vmatpush2.msra.mxu0 0.0
  %986 = vmatprep.subr.mxu0 0.0
  %987 = vmatpush2.msra.mxu0 0.0
  %988 = vmatprep.subr.mxu0 0.0
  %989 = vmatpush2.msra.mxu0 0.0
  %990 = vmatprep.subr.mxu0 0.0
  %991 = vmatpush2.msra.mxu0 0.0
  %992 = vmatprep.subr.mxu0 0.0
  %993 = vmatpush2.msra.mxu0 0.0
  %994 = vmatprep.subr.mxu0 0.0
  %995 = vmatpush2.msra.mxu0 0.0
  %996 = vmatprep.subr.mxu0 0.0
  %997 = vmatpush2.msra.mxu0 0.0
  %998 = vmatprep.subr.mxu0 0.0
  %999 = vmatpush2.msra.mxu0 0.0
  %1000 = vmatprep.subr.mxu0 0.0
  %1001 = vmatpush2.msra.mxu0 0.0
  %1002 = vmatprep.subr.mxu0 0.0
  %1003 = vmatpush2.msra.mxu0 0.0
  %1004 = vmatprep.subr.mxu0 0.0
  %1005 = vmatpush2.msra.mxu0 0.0
  %1006 = vmatprep.mubr.f32.mxu0 0.0
  %v1007 = vand.u32 %v84, 4294901760
  %1008 = vmatmul.mubr.f32.gmra.mxu0 %v1007
  %v1009 = vpop.f32.mrf.mxu0
  %v1010 = vadd.f32 %v937, %v1009
  %v1011 = vpop.f32.mrf.mxu0
  %1012 = vdwg.mxu0
  %vm1013 = vcmask 261120
  %v1015 = vsel %vm1013, %v546, 0
  %1017 = vmatprep.subr.mxu0 0.0
  %1018 = vmatpush1.msra.mxu0 0.0
  %1019 = vmatprep.subr.mxu0 0.0
  %1020 = vmatpush1.msra.mxu0 0.0
  %1021 = vmatprep.subr.mxu0 0.0
  %1022 = vmatpush1.msra.mxu0 0.0
  %1023 = vmatprep.subr.mxu0 0.0
  %1024 = vmatpush1.msra.mxu0 0.0
  %1025 = vmatprep.subr.mxu0 0.0
  %1026 = vmatpush1.msra.mxu0 0.0
  %1027 = vmatprep.subr.mxu0 0.0
  %1028 = vmatpush1.msra.mxu0 0.0
  %1029 = vmatprep.subr.mxu0 0.0
  %1030 = vmatpush1.msra.mxu0 0.0
  %1031 = vmatprep.subr.mxu0 0.0
  %1032 = vmatpush1.msra.mxu0 0.0
  %1033 = vmatprep.subr.mxu0 0.0
  %1034 = vmatpush1.msra.mxu0 0.0
  %1035 = vmatprep.subr.mxu0 0.0
  %1036 = vmatpush1.msra.mxu0 0.0
  %1037 = vmatprep.subr.mxu0 0.0
  %1038 = vmatpush1.msra.mxu0 0.0
  %1039 = vmatprep.subr.mxu0 0.0
  %1040 = vmatpush1.msra.mxu0 0.0
  %1041 = vmatprep.subr.mxu0 0.0
  %v1042 = vand.u32 %v28, 4294901760
  %1043 = vmatpush1.msra.mxu0 %v1042
  %1044 = vmatprep.subr.mxu0 0.0
  %v1045 = vand.u32 %v27, 4294901760
  %1046 = vmatpush1.msra.mxu0 %v1045
  %1047 = vmatprep.subr.mxu0 0.0
  %v1048 = vand.u32 %v26, 4294901760
  %1049 = vmatpush1.msra.mxu0 %v1048
  %1050 = vmatprep.subr.mxu0 0.0
  %v1051 = vand.u32 %v25, 4294901760
  %1052 = vmatpush1.msra.mxu0 %v1051
  %1053 = vmatprep.subr.mxu0 0.0
  %1054 = vmatpush2.msra.mxu0 0.0
  %1055 = vmatprep.subr.mxu0 0.0
  %1056 = vmatpush2.msra.mxu0 0.0
  %1057 = vmatprep.subr.mxu0 0.0
  %1058 = vmatpush2.msra.mxu0 0.0
  %1059 = vmatprep.subr.mxu0 0.0
  %1060 = vmatpush2.msra.mxu0 0.0
  %1061 = vmatprep.subr.mxu0 0.0
  %1062 = vmatpush2.msra.mxu0 0.0
  %1063 = vmatprep.subr.mxu0 0.0
  %1064 = vmatpush2.msra.mxu0 0.0
  %1065 = vmatprep.subr.mxu0 0.0
  %1066 = vmatpush2.msra.mxu0 0.0
  %1067 = vmatprep.subr.mxu0 0.0
  %1068 = vmatpush2.msra.mxu0 0.0
  %1069 = vmatprep.subr.mxu0 0.0
  %1070 = vmatpush2.msra.mxu0 0.0
  %1071 = vmatprep.subr.mxu0 0.0
  %1072 = vmatpush2.msra.mxu0 0.0
  %1073 = vmatprep.subr.mxu0 0.0
  %1074 = vmatpush2.msra.mxu0 0.0
  %1075 = vmatprep.subr.mxu0 0.0
  %1076 = vmatpush2.msra.mxu0 0.0
  %1077 = vmatprep.subr.mxu0 0.0
  %1078 = vmatpush2.msra.mxu0 0.0
  %1079 = vmatprep.subr.mxu0 0.0
  %1080 = vmatpush2.msra.mxu0 0.0
  %1081 = vmatprep.subr.mxu0 0.0
  %1082 = vmatpush2.msra.mxu0 0.0
  %1083 = vmatprep.subr.mxu0 0.0
  %1084 = vmatpush2.msra.mxu0 0.0
  %1085 = vmatprep.mubr.f32.mxu0 0.0
  %v1086 = vand.u32 %v1015, 4294901760
  %v1087 = vsub.f32 %v1015, %v1086
  %v1088 = vand.u32 %v1087, 4294901760
  %v1089 = vsub.f32 %v1087, %v1088
  %v1090 = vand.u32 %v1089, 4294901760
  %1091 = vmatmul.mubr.f32.gmra.mxu0 %v1090
  %v1092 = vpop.f32.mrf.mxu0
  %v1093 = vadd.f32 0.0, %v1092
  %v1094 = vpop.f32.mrf.mxu0
  %1095 = vdwg.mxu0
  %1096 = vmatprep.subr.mxu0 0.0
  %1097 = vmatpush1.msra.mxu0 0.0
  %1098 = vmatprep.subr.mxu0 0.0
  %1099 = vmatpush1.msra.mxu0 0.0
  %1100 = vmatprep.subr.mxu0 0.0
  %1101 = vmatpush1.msra.mxu0 0.0
  %1102 = vmatprep.subr.mxu0 0.0
  %1103 = vmatpush1.msra.mxu0 0.0
  %1104 = vmatprep.subr.mxu0 0.0
  %1105 = vmatpush1.msra.mxu0 0.0
  %1106 = vmatprep.subr.mxu0 0.0
  %1107 = vmatpush1.msra.mxu0 0.0
  %1108 = vmatprep.subr.mxu0 0.0
  %1109 = vmatpush1.msra.mxu0 0.0
  %1110 = vmatprep.subr.mxu0 0.0
  %1111 = vmatpush1.msra.mxu0 0.0
  %1112 = vmatprep.subr.mxu0 0.0
  %1113 = vmatpush1.msra.mxu0 0.0
  %1114 = vmatprep.subr.mxu0 0.0
  %1115 = vmatpush1.msra.mxu0 0.0
  %1116 = vmatprep.subr.mxu0 0.0
  %1117 = vmatpush1.msra.mxu0 0.0
  %1118 = vmatprep.subr.mxu0 0.0
  %1119 = vmatpush1.msra.mxu0 0.0
  %1120 = vmatprep.subr.mxu0 0.0
  %v1121 = vand.u32 %v28, 4294901760
  %v1122 = vsub.f32 %v28, %v1121
  %v1123 = vand.u32 %v1122, 4294901760
  %v1124 = vsub.f32 %v1122, %v1123
  %v1125 = vand.u32 %v1124, 4294901760
  %1126 = vmatpush1.msra.mxu0 %v1125
  %1127 = vmatprep.subr.mxu0 0.0
  %v1128 = vand.u32 %v27, 4294901760
  %v1129 = vsub.f32 %v27, %v1128
  %v1130 = vand.u32 %v1129, 4294901760
  %v1131 = vsub.f32 %v1129, %v1130
  %v1132 = vand.u32 %v1131, 4294901760
  %1133 = vmatpush1.msra.mxu0 %v1132
  %1134 = vmatprep.subr.mxu0 0.0
  %v1135 = vand.u32 %v26, 4294901760
  %v1136 = vsub.f32 %v26, %v1135
  %v1137 = vand.u32 %v1136, 4294901760
  %v1138 = vsub.f32 %v1136, %v1137
  %v1139 = vand.u32 %v1138, 4294901760
  %1140 = vmatpush1.msra.mxu0 %v1139
  %1141 = vmatprep.subr.mxu0 0.0
  %v1142 = vand.u32 %v25, 4294901760
  %v1143 = vsub.f32 %v25, %v1142
  %v1144 = vand.u32 %v1143, 4294901760
  %v1145 = vsub.f32 %v1143, %v1144
  %v1146 = vand.u32 %v1145, 4294901760
  %1147 = vmatpush1.msra.mxu0 %v1146
  %1148 = vmatprep.subr.mxu0 0.0
  %1149 = vmatpush2.msra.mxu0 0.0
  %1150 = vmatprep.subr.mxu0 0.0
  %1151 = vmatpush2.msra.mxu0 0.0
  %1152 = vmatprep.subr.mxu0 0.0
  %1153 = vmatpush2.msra.mxu0 0.0
  %1154 = vmatprep.subr.mxu0 0.0
  %1155 = vmatpush2.msra.mxu0 0.0
  %1156 = vmatprep.subr.mxu0 0.0
  %1157 = vmatpush2.msra.mxu0 0.0
  %1158 = vmatprep.subr.mxu0 0.0
  %1159 = vmatpush2.msra.mxu0 0.0
  %1160 = vmatprep.subr.mxu0 0.0
  %1161 = vmatpush2.msra.mxu0 0.0
  %1162 = vmatprep.subr.mxu0 0.0
  %1163 = vmatpush2.msra.mxu0 0.0
  %1164 = vmatprep.subr.mxu0 0.0
  %1165 = vmatpush2.msra.mxu0 0.0
  %1166 = vmatprep.subr.mxu0 0.0
  %1167 = vmatpush2.msra.mxu0 0.0
  %1168 = vmatprep.subr.mxu0 0.0
  %1169 = vmatpush2.msra.mxu0 0.0
  %1170 = vmatprep.subr.mxu0 0.0
  %1171 = vmatpush2.msra.mxu0 0.0
  %1172 = vmatprep.subr.mxu0 0.0
  %1173 = vmatpush2.msra.mxu0 0.0
  %1174 = vmatprep.subr.mxu0 0.0
  %1175 = vmatpush2.msra.mxu0 0.0
  %1176 = vmatprep.subr.mxu0 0.0
  %1177 = vmatpush2.msra.mxu0 0.0
  %1178 = vmatprep.subr.mxu0 0.0
  %1179 = vmatpush2.msra.mxu0 0.0
  %1180 = vmatprep.mubr.f32.mxu0 0.0
  %v1181 = vand.u32 %v1015, 4294901760
  %1182 = vmatmul.mubr.f32.gmra.mxu0 %v1181
  %v1183 = vpop.f32.mrf.mxu0
  %v1184 = vadd.f32 %v1093, %v1183
  %v1185 = vpop.f32.mrf.mxu0
  %1186 = vdwg.mxu0
  %1187 = vmatprep.subr.mxu0 0.0
  %1188 = vmatpush1.msra.mxu0 0.0
  %1189 = vmatprep.subr.mxu0 0.0
  %1190 = vmatpush1.msra.mxu0 0.0
  %1191 = vmatprep.subr.mxu0 0.0
  %1192 = vmatpush1.msra.mxu0 0.0
  %1193 = vmatprep.subr.mxu0 0.0
  %1194 = vmatpush1.msra.mxu0 0.0
  %1195 = vmatprep.subr.mxu0 0.0
  %1196 = vmatpush1.msra.mxu0 0.0
  %1197 = vmatprep.subr.mxu0 0.0
  %1198 = vmatpush1.msra.mxu0 0.0
  %1199 = vmatprep.subr.mxu0 0.0
  %1200 = vmatpush1.msra.mxu0 0.0
  %1201 = vmatprep.subr.mxu0 0.0
  %1202 = vmatpush1.msra.mxu0 0.0
  %1203 = vmatprep.subr.mxu0 0.0
  %1204 = vmatpush1.msra.mxu0 0.0
  %1205 = vmatprep.subr.mxu0 0.0
  %1206 = vmatpush1.msra.mxu0 0.0
  %1207 = vmatprep.subr.mxu0 0.0
  %1208 = vmatpush1.msra.mxu0 0.0
  %1209 = vmatprep.subr.mxu0 0.0
  %1210 = vmatpush1.msra.mxu0 0.0
  %1211 = vmatprep.subr.mxu0 0.0
  %v1212 = vand.u32 %v28, 4294901760
  %v1213 = vsub.f32 %v28, %v1212
  %1214 = vmatpush1.msra.mxu0 %v1213
  %1215 = vmatprep.subr.mxu0 0.0
  %v1216 = vand.u32 %v27, 4294901760
  %v1217 = vsub.f32 %v27, %v1216
  %1218 = vmatpush1.msra.mxu0 %v1217
  %1219 = vmatprep.subr.mxu0 0.0
  %v1220 = vand.u32 %v26, 4294901760
  %v1221 = vsub.f32 %v26, %v1220
  %1222 = vmatpush1.msra.mxu0 %v1221
  %1223 = vmatprep.subr.mxu0 0.0
  %v1224 = vand.u32 %v25, 4294901760
  %v1225 = vsub.f32 %v25, %v1224
  %1226 = vmatpush1.msra.mxu0 %v1225
  %1227 = vmatprep.subr.mxu0 0.0
  %1228 = vmatpush2.msra.mxu0 0.0
  %1229 = vmatprep.subr.mxu0 0.0
  %1230 = vmatpush2.msra.mxu0 0.0
  %1231 = vmatprep.subr.mxu0 0.0
  %1232 = vmatpush2.msra.mxu0 0.0
  %1233 = vmatprep.subr.mxu0 0.0
  %1234 = vmatpush2.msra.mxu0 0.0
  %1235 = vmatprep.subr.mxu0 0.0
  %1236 = vmatpush2.msra.mxu0 0.0
  %1237 = vmatprep.subr.mxu0 0.0
  %1238 = vmatpush2.msra.mxu0 0.0
  %1239 = vmatprep.subr.mxu0 0.0
  %1240 = vmatpush2.msra.mxu0 0.0
  %1241 = vmatprep.subr.mxu0 0.0
  %1242 = vmatpush2.msra.mxu0 0.0
  %1243 = vmatprep.subr.mxu0 0.0
  %1244 = vmatpush2.msra.mxu0 0.0
  %1245 = vmatprep.subr.mxu0 0.0
  %1246 = vmatpush2.msra.mxu0 0.0
  %1247 = vmatprep.subr.mxu0 0.0
  %1248 = vmatpush2.msra.mxu0 0.0
  %1249 = vmatprep.subr.mxu0 0.0
  %1250 = vmatpush2.msra.mxu0 0.0
  %1251 = vmatprep.subr.mxu0 0.0
  %1252 = vmatpush2.msra.mxu0 0.0
  %1253 = vmatprep.subr.mxu0 0.0
  %1254 = vmatpush2.msra.mxu0 0.0
  %1255 = vmatprep.subr.mxu0 0.0
  %1256 = vmatpush2.msra.mxu0 0.0
  %1257 = vmatprep.subr.mxu0 0.0
  %1258 = vmatpush2.msra.mxu0 0.0
  %1259 = vmatprep.mubr.f32.mxu0 0.0
  %v1260 = vand.u32 %v1015, 4294901760
  %v1261 = vsub.f32 %v1015, %v1260
  %1262 = vmatmul.mubr.f32.gmra.mxu0 %v1261
  %v1263 = vpop.f32.mrf.mxu0
  %v1264 = vadd.f32 %v1184, %v1263
  %v1265 = vpop.f32.mrf.mxu0
  %1266 = vdwg.mxu0
  %1267 = vmatprep.subr.mxu0 0.0
  %1268 = vmatpush1.msra.mxu0 0.0
  %1269 = vmatprep.subr.mxu0 0.0
  %1270 = vmatpush1.msra.mxu0 0.0
  %1271 = vmatprep.subr.mxu0 0.0
  %1272 = vmatpush1.msra.mxu0 0.0
  %1273 = vmatprep.subr.mxu0 0.0
  %1274 = vmatpush1.msra.mxu0 0.0
  %1275 = vmatprep.subr.mxu0 0.0
  %1276 = vmatpush1.msra.mxu0 0.0
  %1277 = vmatprep.subr.mxu0 0.0
  %1278 = vmatpush1.msra.mxu0 0.0
  %1279 = vmatprep.subr.mxu0 0.0
  %1280 = vmatpush1.msra.mxu0 0.0
  %1281 = vmatprep.subr.mxu0 0.0
  %1282 = vmatpush1.msra.mxu0 0.0
  %1283 = vmatprep.subr.mxu0 0.0
  %1284 = vmatpush1.msra.mxu0 0.0
  %1285 = vmatprep.subr.mxu0 0.0
  %1286 = vmatpush1.msra.mxu0 0.0
  %1287 = vmatprep.subr.mxu0 0.0
  %1288 = vmatpush1.msra.mxu0 0.0
  %1289 = vmatprep.subr.mxu0 0.0
  %1290 = vmatpush1.msra.mxu0 0.0
  %1291 = vmatprep.subr.mxu0 0.0
  %v1292 = vand.u32 %v28, 4294901760
  %1293 = vmatpush1.msra.mxu0 %v1292
  %1294 = vmatprep.subr.mxu0 0.0
  %v1295 = vand.u32 %v27, 4294901760
  %1296 = vmatpush1.msra.mxu0 %v1295
  %1297 = vmatprep.subr.mxu0 0.0
  %v1298 = vand.u32 %v26, 4294901760
  %1299 = vmatpush1.msra.mxu0 %v1298
  %1300 = vmatprep.subr.mxu0 0.0
  %v1301 = vand.u32 %v25, 4294901760
  %1302 = vmatpush1.msra.mxu0 %v1301
  %1303 = vmatprep.subr.mxu0 0.0
  %1304 = vmatpush2.msra.mxu0 0.0
  %1305 = vmatprep.subr.mxu0 0.0
  %1306 = vmatpush2.msra.mxu0 0.0
  %1307 = vmatprep.subr.mxu0 0.0
  %1308 = vmatpush2.msra.mxu0 0.0
  %1309 = vmatprep.subr.mxu0 0.0
  %1310 = vmatpush2.msra.mxu0 0.0
  %1311 = vmatprep.subr.mxu0 0.0
  %1312 = vmatpush2.msra.mxu0 0.0
  %1313 = vmatprep.subr.mxu0 0.0
  %1314 = vmatpush2.msra.mxu0 0.0
  %1315 = vmatprep.subr.mxu0 0.0
  %1316 = vmatpush2.msra.mxu0 0.0
  %1317 = vmatprep.subr.mxu0 0.0
  %1318 = vmatpush2.msra.mxu0 0.0
  %1319 = vmatprep.subr.mxu0 0.0
  %1320 = vmatpush2.msra.mxu0 0.0
  %1321 = vmatprep.subr.mxu0 0.0
  %1322 = vmatpush2.msra.mxu0 0.0
  %1323 = vmatprep.subr.mxu0 0.0
  %1324 = vmatpush2.msra.mxu0 0.0
  %1325 = vmatprep.subr.mxu0 0.0
  %1326 = vmatpush2.msra.mxu0 0.0
  %1327 = vmatprep.subr.mxu0 0.0
  %1328 = vmatpush2.msra.mxu0 0.0
  %1329 = vmatprep.subr.mxu0 0.0
  %1330 = vmatpush2.msra.mxu0 0.0
  %1331 = vmatprep.subr.mxu0 0.0
  %1332 = vmatpush2.msra.mxu0 0.0
  %1333 = vmatprep.subr.mxu0 0.0
  %1334 = vmatpush2.msra.mxu0 0.0
  %1335 = vmatprep.mubr.f32.mxu0 0.0
  %v1336 = vand.u32 %v1015, 4294901760
  %v1337 = vsub.f32 %v1015, %v1336
  %v1338 = vand.u32 %v1337, 4294901760
  %1339 = vmatmul.mubr.f32.gmra.mxu0 %v1338
  %v1340 = vpop.f32.mrf.mxu0
  %v1341 = vadd.f32 %v1264, %v1340
  %v1342 = vpop.f32.mrf.mxu0
  %1343 = vdwg.mxu0
  %1344 = vmatprep.subr.mxu0 0.0
  %1345 = vmatpush1.msra.mxu0 0.0
  %1346 = vmatprep.subr.mxu0 0.0
  %1347 = vmatpush1.msra.mxu0 0.0
  %1348 = vmatprep.subr.mxu0 0.0
  %1349 = vmatpush1.msra.mxu0 0.0
  %1350 = vmatprep.subr.mxu0 0.0
  %1351 = vmatpush1.msra.mxu0 0.0
  %1352 = vmatprep.subr.mxu0 0.0
  %1353 = vmatpush1.msra.mxu0 0.0
  %1354 = vmatprep.subr.mxu0 0.0
  %1355 = vmatpush1.msra.mxu0 0.0
  %1356 = vmatprep.subr.mxu0 0.0
  %1357 = vmatpush1.msra.mxu0 0.0
  %1358 = vmatprep.subr.mxu0 0.0
  %1359 = vmatpush1.msra.mxu0 0.0
  %1360 = vmatprep.subr.mxu0 0.0
  %1361 = vmatpush1.msra.mxu0 0.0
  %1362 = vmatprep.subr.mxu0 0.0
  %1363 = vmatpush1.msra.mxu0 0.0
  %1364 = vmatprep.subr.mxu0 0.0
  %1365 = vmatpush1.msra.mxu0 0.0
  %1366 = vmatprep.subr.mxu0 0.0
  %1367 = vmatpush1.msra.mxu0 0.0
  %1368 = vmatprep.subr.mxu0 0.0
  %v1369 = vand.u32 %v28, 4294901760
  %v1370 = vsub.f32 %v28, %v1369
  %v1371 = vand.u32 %v1370, 4294901760
  %1372 = vmatpush1.msra.mxu0 %v1371
  %1373 = vmatprep.subr.mxu0 0.0
  %v1374 = vand.u32 %v27, 4294901760
  %v1375 = vsub.f32 %v27, %v1374
  %v1376 = vand.u32 %v1375, 4294901760
  %1377 = vmatpush1.msra.mxu0 %v1376
  %1378 = vmatprep.subr.mxu0 0.0
  %v1379 = vand.u32 %v26, 4294901760
  %v1380 = vsub.f32 %v26, %v1379
  %v1381 = vand.u32 %v1380, 4294901760
  %1382 = vmatpush1.msra.mxu0 %v1381
  %1383 = vmatprep.subr.mxu0 0.0
  %v1384 = vand.u32 %v25, 4294901760
  %v1385 = vsub.f32 %v25, %v1384
  %v1386 = vand.u32 %v1385, 4294901760
  %1387 = vmatpush1.msra.mxu0 %v1386
  %1388 = vmatprep.subr.mxu0 0.0
  %1389 = vmatpush2.msra.mxu0 0.0
  %1390 = vmatprep.subr.mxu0 0.0
  %1391 = vmatpush2.msra.mxu0 0.0
  %1392 = vmatprep.subr.mxu0 0.0
  %1393 = vmatpush2.msra.mxu0 0.0
  %1394 = vmatprep.subr.mxu0 0.0
  %1395 = vmatpush2.msra.mxu0 0.0
  %1396 = vmatprep.subr.mxu0 0.0
  %1397 = vmatpush2.msra.mxu0 0.0
  %1398 = vmatprep.subr.mxu0 0.0
  %1399 = vmatpush2.msra.mxu0 0.0
  %1400 = vmatprep.subr.mxu0 0.0
  %1401 = vmatpush2.msra.mxu0 0.0
  %1402 = vmatprep.subr.mxu0 0.0
  %1403 = vmatpush2.msra.mxu0 0.0
  %1404 = vmatprep.subr.mxu0 0.0
  %1405 = vmatpush2.msra.mxu0 0.0
  %1406 = vmatprep.subr.mxu0 0.0
  %1407 = vmatpush2.msra.mxu0 0.0
  %1408 = vmatprep.subr.mxu0 0.0
  %1409 = vmatpush2.msra.mxu0 0.0
  %1410 = vmatprep.subr.mxu0 0.0
  %1411 = vmatpush2.msra.mxu0 0.0
  %1412 = vmatprep.subr.mxu0 0.0
  %1413 = vmatpush2.msra.mxu0 0.0
  %1414 = vmatprep.subr.mxu0 0.0
  %1415 = vmatpush2.msra.mxu0 0.0
  %1416 = vmatprep.subr.mxu0 0.0
  %1417 = vmatpush2.msra.mxu0 0.0
  %1418 = vmatprep.subr.mxu0 0.0
  %1419 = vmatpush2.msra.mxu0 0.0
  %1420 = vmatprep.mubr.f32.mxu0 0.0
  %v1421 = vand.u32 %v1015, 4294901760
  %1422 = vmatmul.mubr.f32.gmra.mxu0 %v1421
  %v1423 = vpop.f32.mrf.mxu0
  %v1424 = vadd.f32 %v1341, %v1423
  %v1425 = vpop.f32.mrf.mxu0
  %1426 = vdwg.mxu0
  %1427 = vmatprep.subr.mxu0 0.0
  %1428 = vmatpush1.msra.mxu0 0.0
  %1429 = vmatprep.subr.mxu0 0.0
  %1430 = vmatpush1.msra.mxu0 0.0
  %1431 = vmatprep.subr.mxu0 0.0
  %1432 = vmatpush1.msra.mxu0 0.0
  %1433 = vmatprep.subr.mxu0 0.0
  %1434 = vmatpush1.msra.mxu0 0.0
  %1435 = vmatprep.subr.mxu0 0.0
  %1436 = vmatpush1.msra.mxu0 0.0
  %1437 = vmatprep.subr.mxu0 0.0
  %1438 = vmatpush1.msra.mxu0 0.0
  %1439 = vmatprep.subr.mxu0 0.0
  %1440 = vmatpush1.msra.mxu0 0.0
  %1441 = vmatprep.subr.mxu0 0.0
  %1442 = vmatpush1.msra.mxu0 0.0
  %1443 = vmatprep.subr.mxu0 0.0
  %1444 = vmatpush1.msra.mxu0 0.0
  %1445 = vmatprep.subr.mxu0 0.0
  %1446 = vmatpush1.msra.mxu0 0.0
  %1447 = vmatprep.subr.mxu0 0.0
  %1448 = vmatpush1.msra.mxu0 0.0
  %1449 = vmatprep.subr.mxu0 0.0
  %1450 = vmatpush1.msra.mxu0 0.0
  %1451 = vmatprep.subr.mxu0 0.0
  %v1452 = vand.u32 %v28, 4294901760
  %1453 = vmatpush1.msra.mxu0 %v1452
  %1454 = vmatprep.subr.mxu0 0.0
  %v1455 = vand.u32 %v27, 4294901760
  %1456 = vmatpush1.msra.mxu0 %v1455
  %1457 = vmatprep.subr.mxu0 0.0
  %v1458 = vand.u32 %v26, 4294901760
  %1459 = vmatpush1.msra.mxu0 %v1458
  %1460 = vmatprep.subr.mxu0 0.0
  %v1461 = vand.u32 %v25, 4294901760
  %1462 = vmatpush1.msra.mxu0 %v1461
  %1463 = vmatprep.subr.mxu0 0.0
  %1464 = vmatpush2.msra.mxu0 0.0
  %1465 = vmatprep.subr.mxu0 0.0
  %1466 = vmatpush2.msra.mxu0 0.0
  %1467 = vmatprep.subr.mxu0 0.0
  %1468 = vmatpush2.msra.mxu0 0.0
  %1469 = vmatprep.subr.mxu0 0.0
  %1470 = vmatpush2.msra.mxu0 0.0
  %1471 = vmatprep.subr.mxu0 0.0
  %1472 = vmatpush2.msra.mxu0 0.0
  %1473 = vmatprep.subr.mxu0 0.0
  %1474 = vmatpush2.msra.mxu0 0.0
  %1475 = vmatprep.subr.mxu0 0.0
  %1476 = vmatpush2.msra.mxu0 0.0
  %1477 = vmatprep.subr.mxu0 0.0
  %1478 = vmatpush2.msra.mxu0 0.0
  %1479 = vmatprep.subr.mxu0 0.0
  %1480 = vmatpush2.msra.mxu0 0.0
  %1481 = vmatprep.subr.mxu0 0.0
  %1482 = vmatpush2.msra.mxu0 0.0
  %1483 = vmatprep.subr.mxu0 0.0
  %1484 = vmatpush2.msra.mxu0 0.0
  %1485 = vmatprep.subr.mxu0 0.0
  %1486 = vmatpush2.msra.mxu0 0.0
  %1487 = vmatprep.subr.mxu0 0.0
  %1488 = vmatpush2.msra.mxu0 0.0
  %1489 = vmatprep.subr.mxu0 0.0
  %1490 = vmatpush2.msra.mxu0 0.0
  %1491 = vmatprep.subr.mxu0 0.0
  %1492 = vmatpush2.msra.mxu0 0.0
  %1493 = vmatprep.subr.mxu0 0.0
  %1494 = vmatpush2.msra.mxu0 0.0
  %1495 = vmatprep.mubr.f32.mxu0 0.0
  %v1496 = vand.u32 %v1015, 4294901760
  %1497 = vmatmul.mubr.f32.gmra.mxu0 %v1496
  %v1498 = vpop.f32.mrf.mxu0
  %v1499 = vadd.f32 %v1424, %v1498
  %v1500 = vpop.f32.mrf.mxu0
  %1501 = vdwg.mxu0
  %v1502 = vmul.f32 %v1499, 0.020833334
  %v1504 = vsel %vm1013, %v1010, 0
  %1506 = vmatprep.subr.mxu0 0.0
  %1507 = vmatpush1.msra.mxu0 0.0
  %1508 = vmatprep.subr.mxu0 0.0
  %1509 = vmatpush1.msra.mxu0 0.0
  %1510 = vmatprep.subr.mxu0 0.0
  %1511 = vmatpush1.msra.mxu0 0.0
  %1512 = vmatprep.subr.mxu0 0.0
  %1513 = vmatpush1.msra.mxu0 0.0
  %1514 = vmatprep.subr.mxu0 0.0
  %1515 = vmatpush1.msra.mxu0 0.0
  %1516 = vmatprep.subr.mxu0 0.0
  %1517 = vmatpush1.msra.mxu0 0.0
  %1518 = vmatprep.subr.mxu0 0.0
  %1519 = vmatpush1.msra.mxu0 0.0
  %1520 = vmatprep.subr.mxu0 0.0
  %1521 = vmatpush1.msra.mxu0 0.0
  %1522 = vmatprep.subr.mxu0 0.0
  %1523 = vmatpush1.msra.mxu0 0.0
  %1524 = vmatprep.subr.mxu0 0.0
  %1525 = vmatpush1.msra.mxu0 0.0
  %1526 = vmatprep.subr.mxu0 0.0
  %1527 = vmatpush1.msra.mxu0 0.0
  %1528 = vmatprep.subr.mxu0 0.0
  %1529 = vmatpush1.msra.mxu0 0.0
  %1530 = vmatprep.subr.mxu0 0.0
  %v1531 = vand.u32 %v28, 4294901760
  %1532 = vmatpush1.msra.mxu0 %v1531
  %1533 = vmatprep.subr.mxu0 0.0
  %v1534 = vand.u32 %v27, 4294901760
  %1535 = vmatpush1.msra.mxu0 %v1534
  %1536 = vmatprep.subr.mxu0 0.0
  %v1537 = vand.u32 %v26, 4294901760
  %1538 = vmatpush1.msra.mxu0 %v1537
  %1539 = vmatprep.subr.mxu0 0.0
  %v1540 = vand.u32 %v25, 4294901760
  %1541 = vmatpush1.msra.mxu0 %v1540
  %1542 = vmatprep.subr.mxu0 0.0
  %1543 = vmatpush2.msra.mxu0 0.0
  %1544 = vmatprep.subr.mxu0 0.0
  %1545 = vmatpush2.msra.mxu0 0.0
  %1546 = vmatprep.subr.mxu0 0.0
  %1547 = vmatpush2.msra.mxu0 0.0
  %1548 = vmatprep.subr.mxu0 0.0
  %1549 = vmatpush2.msra.mxu0 0.0
  %1550 = vmatprep.subr.mxu0 0.0
  %1551 = vmatpush2.msra.mxu0 0.0
  %1552 = vmatprep.subr.mxu0 0.0
  %1553 = vmatpush2.msra.mxu0 0.0
  %1554 = vmatprep.subr.mxu0 0.0
  %1555 = vmatpush2.msra.mxu0 0.0
  %1556 = vmatprep.subr.mxu0 0.0
  %1557 = vmatpush2.msra.mxu0 0.0
  %1558 = vmatprep.subr.mxu0 0.0
  %1559 = vmatpush2.msra.mxu0 0.0
  %1560 = vmatprep.subr.mxu0 0.0
  %1561 = vmatpush2.msra.mxu0 0.0
  %1562 = vmatprep.subr.mxu0 0.0
  %1563 = vmatpush2.msra.mxu0 0.0
  %1564 = vmatprep.subr.mxu0 0.0
  %1565 = vmatpush2.msra.mxu0 0.0
  %1566 = vmatprep.subr.mxu0 0.0
  %1567 = vmatpush2.msra.mxu0 0.0
  %1568 = vmatprep.subr.mxu0 0.0
  %1569 = vmatpush2.msra.mxu0 0.0
  %1570 = vmatprep.subr.mxu0 0.0
  %1571 = vmatpush2.msra.mxu0 0.0
  %1572 = vmatprep.subr.mxu0 0.0
  %1573 = vmatpush2.msra.mxu0 0.0
  %1574 = vmatprep.mubr.f32.mxu0 0.0
  %v1575 = vand.u32 %v1504, 4294901760
  %v1576 = vsub.f32 %v1504, %v1575
  %v1577 = vand.u32 %v1576, 4294901760
  %v1578 = vsub.f32 %v1576, %v1577
  %v1579 = vand.u32 %v1578, 4294901760
  %1580 = vmatmul.mubr.f32.gmra.mxu0 %v1579
  %v1581 = vpop.f32.mrf.mxu0
  %v1582 = vadd.f32 0.0, %v1581
  %v1583 = vpop.f32.mrf.mxu0
  %1584 = vdwg.mxu0
  %1585 = vmatprep.subr.mxu0 0.0
  %1586 = vmatpush1.msra.mxu0 0.0
  %1587 = vmatprep.subr.mxu0 0.0
  %1588 = vmatpush1.msra.mxu0 0.0
  %1589 = vmatprep.subr.mxu0 0.0
  %1590 = vmatpush1.msra.mxu0 0.0
  %1591 = vmatprep.subr.mxu0 0.0
  %1592 = vmatpush1.msra.mxu0 0.0
  %1593 = vmatprep.subr.mxu0 0.0
  %1594 = vmatpush1.msra.mxu0 0.0
  %1595 = vmatprep.subr.mxu0 0.0
  %1596 = vmatpush1.msra.mxu0 0.0
  %1597 = vmatprep.subr.mxu0 0.0
  %1598 = vmatpush1.msra.mxu0 0.0
  %1599 = vmatprep.subr.mxu0 0.0
  %1600 = vmatpush1.msra.mxu0 0.0
  %1601 = vmatprep.subr.mxu0 0.0
  %1602 = vmatpush1.msra.mxu0 0.0
  %1603 = vmatprep.subr.mxu0 0.0
  %1604 = vmatpush1.msra.mxu0 0.0
  %1605 = vmatprep.subr.mxu0 0.0
  %1606 = vmatpush1.msra.mxu0 0.0
  %1607 = vmatprep.subr.mxu0 0.0
  %1608 = vmatpush1.msra.mxu0 0.0
  %1609 = vmatprep.subr.mxu0 0.0
  %v1610 = vand.u32 %v28, 4294901760
  %v1611 = vsub.f32 %v28, %v1610
  %v1612 = vand.u32 %v1611, 4294901760
  %v1613 = vsub.f32 %v1611, %v1612
  %v1614 = vand.u32 %v1613, 4294901760
  %1615 = vmatpush1.msra.mxu0 %v1614
  %1616 = vmatprep.subr.mxu0 0.0
  %v1617 = vand.u32 %v27, 4294901760
  %v1618 = vsub.f32 %v27, %v1617
  %v1619 = vand.u32 %v1618, 4294901760
  %v1620 = vsub.f32 %v1618, %v1619
  %v1621 = vand.u32 %v1620, 4294901760
  %1622 = vmatpush1.msra.mxu0 %v1621
  %1623 = vmatprep.subr.mxu0 0.0
  %v1624 = vand.u32 %v26, 4294901760
  %v1625 = vsub.f32 %v26, %v1624
  %v1626 = vand.u32 %v1625, 4294901760
  %v1627 = vsub.f32 %v1625, %v1626
  %v1628 = vand.u32 %v1627, 4294901760
  %1629 = vmatpush1.msra.mxu0 %v1628
  %1630 = vmatprep.subr.mxu0 0.0
  %v1631 = vand.u32 %v25, 4294901760
  %v1632 = vsub.f32 %v25, %v1631
  %v1633 = vand.u32 %v1632, 4294901760
  %v1634 = vsub.f32 %v1632, %v1633
  %v1635 = vand.u32 %v1634, 4294901760
  %1636 = vmatpush1.msra.mxu0 %v1635
  %1637 = vmatprep.subr.mxu0 0.0
  %1638 = vmatpush2.msra.mxu0 0.0
  %1639 = vmatprep.subr.mxu0 0.0
  %1640 = vmatpush2.msra.mxu0 0.0
  %1641 = vmatprep.subr.mxu0 0.0
  %1642 = vmatpush2.msra.mxu0 0.0
  %1643 = vmatprep.subr.mxu0 0.0
  %1644 = vmatpush2.msra.mxu0 0.0
  %1645 = vmatprep.subr.mxu0 0.0
  %1646 = vmatpush2.msra.mxu0 0.0
  %1647 = vmatprep.subr.mxu0 0.0
  %1648 = vmatpush2.msra.mxu0 0.0
  %1649 = vmatprep.subr.mxu0 0.0
  %1650 = vmatpush2.msra.mxu0 0.0
  %1651 = vmatprep.subr.mxu0 0.0
  %1652 = vmatpush2.msra.mxu0 0.0
  %1653 = vmatprep.subr.mxu0 0.0
  %1654 = vmatpush2.msra.mxu0 0.0
  %1655 = vmatprep.subr.mxu0 0.0
  %1656 = vmatpush2.msra.mxu0 0.0
  %1657 = vmatprep.subr.mxu0 0.0
  %1658 = vmatpush2.msra.mxu0 0.0
  %1659 = vmatprep.subr.mxu0 0.0
  %1660 = vmatpush2.msra.mxu0 0.0
  %1661 = vmatprep.subr.mxu0 0.0
  %1662 = vmatpush2.msra.mxu0 0.0
  %1663 = vmatprep.subr.mxu0 0.0
  %1664 = vmatpush2.msra.mxu0 0.0
  %1665 = vmatprep.subr.mxu0 0.0
  %1666 = vmatpush2.msra.mxu0 0.0
  %1667 = vmatprep.subr.mxu0 0.0
  %1668 = vmatpush2.msra.mxu0 0.0
  %1669 = vmatprep.mubr.f32.mxu0 0.0
  %v1670 = vand.u32 %v1504, 4294901760
  %1671 = vmatmul.mubr.f32.gmra.mxu0 %v1670
  %v1672 = vpop.f32.mrf.mxu0
  %v1673 = vadd.f32 %v1582, %v1672
  %v1674 = vpop.f32.mrf.mxu0
  %1675 = vdwg.mxu0
  %1676 = vmatprep.subr.mxu0 0.0
  %1677 = vmatpush1.msra.mxu0 0.0
  %1678 = vmatprep.subr.mxu0 0.0
  %1679 = vmatpush1.msra.mxu0 0.0
  %1680 = vmatprep.subr.mxu0 0.0
  %1681 = vmatpush1.msra.mxu0 0.0
  %1682 = vmatprep.subr.mxu0 0.0
  %1683 = vmatpush1.msra.mxu0 0.0
  %1684 = vmatprep.subr.mxu0 0.0
  %1685 = vmatpush1.msra.mxu0 0.0
  %1686 = vmatprep.subr.mxu0 0.0
  %1687 = vmatpush1.msra.mxu0 0.0
  %1688 = vmatprep.subr.mxu0 0.0
  %1689 = vmatpush1.msra.mxu0 0.0
  %1690 = vmatprep.subr.mxu0 0.0
  %1691 = vmatpush1.msra.mxu0 0.0
  %1692 = vmatprep.subr.mxu0 0.0
  %1693 = vmatpush1.msra.mxu0 0.0
  %1694 = vmatprep.subr.mxu0 0.0
  %1695 = vmatpush1.msra.mxu0 0.0
  %1696 = vmatprep.subr.mxu0 0.0
  %1697 = vmatpush1.msra.mxu0 0.0
  %1698 = vmatprep.subr.mxu0 0.0
  %1699 = vmatpush1.msra.mxu0 0.0
  %1700 = vmatprep.subr.mxu0 0.0
  %v1701 = vand.u32 %v28, 4294901760
  %v1702 = vsub.f32 %v28, %v1701
  %1703 = vmatpush1.msra.mxu0 %v1702
  %1704 = vmatprep.subr.mxu0 0.0
  %v1705 = vand.u32 %v27, 4294901760
  %v1706 = vsub.f32 %v27, %v1705
  %1707 = vmatpush1.msra.mxu0 %v1706
  %1708 = vmatprep.subr.mxu0 0.0
  %v1709 = vand.u32 %v26, 4294901760
  %v1710 = vsub.f32 %v26, %v1709
  %1711 = vmatpush1.msra.mxu0 %v1710
  %1712 = vmatprep.subr.mxu0 0.0
  %v1713 = vand.u32 %v25, 4294901760
  %v1714 = vsub.f32 %v25, %v1713
  %1715 = vmatpush1.msra.mxu0 %v1714
  %1716 = vmatprep.subr.mxu0 0.0
  %1717 = vmatpush2.msra.mxu0 0.0
  %1718 = vmatprep.subr.mxu0 0.0
  %1719 = vmatpush2.msra.mxu0 0.0
  %1720 = vmatprep.subr.mxu0 0.0
  %1721 = vmatpush2.msra.mxu0 0.0
  %1722 = vmatprep.subr.mxu0 0.0
  %1723 = vmatpush2.msra.mxu0 0.0
  %1724 = vmatprep.subr.mxu0 0.0
  %1725 = vmatpush2.msra.mxu0 0.0
  %1726 = vmatprep.subr.mxu0 0.0
  %1727 = vmatpush2.msra.mxu0 0.0
  %1728 = vmatprep.subr.mxu0 0.0
  %1729 = vmatpush2.msra.mxu0 0.0
  %1730 = vmatprep.subr.mxu0 0.0
  %1731 = vmatpush2.msra.mxu0 0.0
  %1732 = vmatprep.subr.mxu0 0.0
  %1733 = vmatpush2.msra.mxu0 0.0
  %1734 = vmatprep.subr.mxu0 0.0
  %1735 = vmatpush2.msra.mxu0 0.0
  %1736 = vmatprep.subr.mxu0 0.0
  %1737 = vmatpush2.msra.mxu0 0.0
  %1738 = vmatprep.subr.mxu0 0.0
  %1739 = vmatpush2.msra.mxu0 0.0
  %1740 = vmatprep.subr.mxu0 0.0
  %1741 = vmatpush2.msra.mxu0 0.0
  %1742 = vmatprep.subr.mxu0 0.0
  %1743 = vmatpush2.msra.mxu0 0.0
  %1744 = vmatprep.subr.mxu0 0.0
  %1745 = vmatpush2.msra.mxu0 0.0
  %1746 = vmatprep.subr.mxu0 0.0
  %1747 = vmatpush2.msra.mxu0 0.0
  %1748 = vmatprep.mubr.f32.mxu0 0.0
  %v1749 = vand.u32 %v1504, 4294901760
  %v1750 = vsub.f32 %v1504, %v1749
  %1751 = vmatmul.mubr.f32.gmra.mxu0 %v1750
  %v1752 = vpop.f32.mrf.mxu0
  %v1753 = vadd.f32 %v1673, %v1752
  %v1754 = vpop.f32.mrf.mxu0
  %1755 = vdwg.mxu0
  %1756 = vmatprep.subr.mxu0 0.0
  %1757 = vmatpush1.msra.mxu0 0.0
  %1758 = vmatprep.subr.mxu0 0.0
  %1759 = vmatpush1.msra.mxu0 0.0
  %1760 = vmatprep.subr.mxu0 0.0
  %1761 = vmatpush1.msra.mxu0 0.0
  %1762 = vmatprep.subr.mxu0 0.0
  %1763 = vmatpush1.msra.mxu0 0.0
  %1764 = vmatprep.subr.mxu0 0.0
  %1765 = vmatpush1.msra.mxu0 0.0
  %1766 = vmatprep.subr.mxu0 0.0
  %1767 = vmatpush1.msra.mxu0 0.0
  %1768 = vmatprep.subr.mxu0 0.0
  %1769 = vmatpush1.msra.mxu0 0.0
  %1770 = vmatprep.subr.mxu0 0.0
  %1771 = vmatpush1.msra.mxu0 0.0
  %1772 = vmatprep.subr.mxu0 0.0
  %1773 = vmatpush1.msra.mxu0 0.0
  %1774 = vmatprep.subr.mxu0 0.0
  %1775 = vmatpush1.msra.mxu0 0.0
  %1776 = vmatprep.subr.mxu0 0.0
  %1777 = vmatpush1.msra.mxu0 0.0
  %1778 = vmatprep.subr.mxu0 0.0
  %1779 = vmatpush1.msra.mxu0 0.0
  %1780 = vmatprep.subr.mxu0 0.0
  %v1781 = vand.u32 %v28, 4294901760
  %1782 = vmatpush1.msra.mxu0 %v1781
  %1783 = vmatprep.subr.mxu0 0.0
  %v1784 = vand.u32 %v27, 4294901760
  %1785 = vmatpush1.msra.mxu0 %v1784
  %1786 = vmatprep.subr.mxu0 0.0
  %v1787 = vand.u32 %v26, 4294901760
  %1788 = vmatpush1.msra.mxu0 %v1787
  %1789 = vmatprep.subr.mxu0 0.0
  %v1790 = vand.u32 %v25, 4294901760
  %1791 = vmatpush1.msra.mxu0 %v1790
  %1792 = vmatprep.subr.mxu0 0.0
  %1793 = vmatpush2.msra.mxu0 0.0
  %1794 = vmatprep.subr.mxu0 0.0
  %1795 = vmatpush2.msra.mxu0 0.0
  %1796 = vmatprep.subr.mxu0 0.0
  %1797 = vmatpush2.msra.mxu0 0.0
  %1798 = vmatprep.subr.mxu0 0.0
  %1799 = vmatpush2.msra.mxu0 0.0
  %1800 = vmatprep.subr.mxu0 0.0
  %1801 = vmatpush2.msra.mxu0 0.0
  %1802 = vmatprep.subr.mxu0 0.0
  %1803 = vmatpush2.msra.mxu0 0.0
  %1804 = vmatprep.subr.mxu0 0.0
  %1805 = vmatpush2.msra.mxu0 0.0
  %1806 = vmatprep.subr.mxu0 0.0
  %1807 = vmatpush2.msra.mxu0 0.0
  %1808 = vmatprep.subr.mxu0 0.0
  %1809 = vmatpush2.msra.mxu0 0.0
  %1810 = vmatprep.subr.mxu0 0.0
  %1811 = vmatpush2.msra.mxu0 0.0
  %1812 = vmatprep.subr.mxu0 0.0
  %1813 = vmatpush2.msra.mxu0 0.0
  %1814 = vmatprep.subr.mxu0 0.0
  %1815 = vmatpush2.msra.mxu0 0.0
  %1816 = vmatprep.subr.mxu0 0.0
  %1817 = vmatpush2.msra.mxu0 0.0
  %1818 = vmatprep.subr.mxu0 0.0
  %1819 = vmatpush2.msra.mxu0 0.0
  %1820 = vmatprep.subr.mxu0 0.0
  %1821 = vmatpush2.msra.mxu0 0.0
  %1822 = vmatprep.subr.mxu0 0.0
  %1823 = vmatpush2.msra.mxu0 0.0
  %1824 = vmatprep.mubr.f32.mxu0 0.0
  %v1825 = vand.u32 %v1504, 4294901760
  %v1826 = vsub.f32 %v1504, %v1825
  %v1827 = vand.u32 %v1826, 4294901760
  %1828 = vmatmul.mubr.f32.gmra.mxu0 %v1827
  %v1829 = vpop.f32.mrf.mxu0
  %v1830 = vadd.f32 %v1753, %v1829
  %v1831 = vpop.f32.mrf.mxu0
  %1832 = vdwg.mxu0
  %1833 = vmatprep.subr.mxu0 0.0
  %1834 = vmatpush1.msra.mxu0 0.0
  %1835 = vmatprep.subr.mxu0 0.0
  %1836 = vmatpush1.msra.mxu0 0.0
  %1837 = vmatprep.subr.mxu0 0.0
  %1838 = vmatpush1.msra.mxu0 0.0
  %1839 = vmatprep.subr.mxu0 0.0
  %1840 = vmatpush1.msra.mxu0 0.0
  %1841 = vmatprep.subr.mxu0 0.0
  %1842 = vmatpush1.msra.mxu0 0.0
  %1843 = vmatprep.subr.mxu0 0.0
  %1844 = vmatpush1.msra.mxu0 0.0
  %1845 = vmatprep.subr.mxu0 0.0
  %1846 = vmatpush1.msra.mxu0 0.0
  %1847 = vmatprep.subr.mxu0 0.0
  %1848 = vmatpush1.msra.mxu0 0.0
  %1849 = vmatprep.subr.mxu0 0.0
  %1850 = vmatpush1.msra.mxu0 0.0
  %1851 = vmatprep.subr.mxu0 0.0
  %1852 = vmatpush1.msra.mxu0 0.0
  %1853 = vmatprep.subr.mxu0 0.0
  %1854 = vmatpush1.msra.mxu0 0.0
  %1855 = vmatprep.subr.mxu0 0.0
  %1856 = vmatpush1.msra.mxu0 0.0
  %1857 = vmatprep.subr.mxu0 0.0
  %v1858 = vand.u32 %v28, 4294901760
  %v1859 = vsub.f32 %v28, %v1858
  %v1860 = vand.u32 %v1859, 4294901760
  %1861 = vmatpush1.msra.mxu0 %v1860
  %1862 = vmatprep.subr.mxu0 0.0
  %v1863 = vand.u32 %v27, 4294901760
  %v1864 = vsub.f32 %v27, %v1863
  %v1865 = vand.u32 %v1864, 4294901760
  %1866 = vmatpush1.msra.mxu0 %v1865
  %1867 = vmatprep.subr.mxu0 0.0
  %v1868 = vand.u32 %v26, 4294901760
  %v1869 = vsub.f32 %v26, %v1868
  %v1870 = vand.u32 %v1869, 4294901760
  %1871 = vmatpush1.msra.mxu0 %v1870
  %1872 = vmatprep.subr.mxu0 0.0
  %v1873 = vand.u32 %v25, 4294901760
  %v1874 = vsub.f32 %v25, %v1873
  %v1875 = vand.u32 %v1874, 4294901760
  %1876 = vmatpush1.msra.mxu0 %v1875
  %1877 = vmatprep.subr.mxu0 0.0
  %1878 = vmatpush2.msra.mxu0 0.0
  %1879 = vmatprep.subr.mxu0 0.0
  %1880 = vmatpush2.msra.mxu0 0.0
  %1881 = vmatprep.subr.mxu0 0.0
  %1882 = vmatpush2.msra.mxu0 0.0
  %1883 = vmatprep.subr.mxu0 0.0
  %1884 = vmatpush2.msra.mxu0 0.0
  %1885 = vmatprep.subr.mxu0 0.0
  %1886 = vmatpush2.msra.mxu0 0.0
  %1887 = vmatprep.subr.mxu0 0.0
  %1888 = vmatpush2.msra.mxu0 0.0
  %1889 = vmatprep.subr.mxu0 0.0
  %1890 = vmatpush2.msra.mxu0 0.0
  %1891 = vmatprep.subr.mxu0 0.0
  %1892 = vmatpush2.msra.mxu0 0.0
  %1893 = vmatprep.subr.mxu0 0.0
  %1894 = vmatpush2.msra.mxu0 0.0
  %1895 = vmatprep.subr.mxu0 0.0
  %1896 = vmatpush2.msra.mxu0 0.0
  %1897 = vmatprep.subr.mxu0 0.0
  %1898 = vmatpush2.msra.mxu0 0.0
  %1899 = vmatprep.subr.mxu0 0.0
  %1900 = vmatpush2.msra.mxu0 0.0
  %1901 = vmatprep.subr.mxu0 0.0
  %1902 = vmatpush2.msra.mxu0 0.0
  %1903 = vmatprep.subr.mxu0 0.0
  %1904 = vmatpush2.msra.mxu0 0.0
  %1905 = vmatprep.subr.mxu0 0.0
  %1906 = vmatpush2.msra.mxu0 0.0
  %1907 = vmatprep.subr.mxu0 0.0
  %1908 = vmatpush2.msra.mxu0 0.0
  %1909 = vmatprep.mubr.f32.mxu0 0.0
  %v1910 = vand.u32 %v1504, 4294901760
  %1911 = vmatmul.mubr.f32.gmra.mxu0 %v1910
  %v1912 = vpop.f32.mrf.mxu0
  %v1913 = vadd.f32 %v1830, %v1912
  %v1914 = vpop.f32.mrf.mxu0
  %1915 = vdwg.mxu0
  %1916 = vmatprep.subr.mxu0 0.0
  %1917 = vmatpush1.msra.mxu0 0.0
  %1918 = vmatprep.subr.mxu0 0.0
  %1919 = vmatpush1.msra.mxu0 0.0
  %1920 = vmatprep.subr.mxu0 0.0
  %1921 = vmatpush1.msra.mxu0 0.0
  %1922 = vmatprep.subr.mxu0 0.0
  %1923 = vmatpush1.msra.mxu0 0.0
  %1924 = vmatprep.subr.mxu0 0.0
  %1925 = vmatpush1.msra.mxu0 0.0
  %1926 = vmatprep.subr.mxu0 0.0
  %1927 = vmatpush1.msra.mxu0 0.0
  %1928 = vmatprep.subr.mxu0 0.0
  %1929 = vmatpush1.msra.mxu0 0.0
  %1930 = vmatprep.subr.mxu0 0.0
  %1931 = vmatpush1.msra.mxu0 0.0
  %1932 = vmatprep.subr.mxu0 0.0
  %1933 = vmatpush1.msra.mxu0 0.0
  %1934 = vmatprep.subr.mxu0 0.0
  %1935 = vmatpush1.msra.mxu0 0.0
  %1936 = vmatprep.subr.mxu0 0.0
  %1937 = vmatpush1.msra.mxu0 0.0
  %1938 = vmatprep.subr.mxu0 0.0
  %1939 = vmatpush1.msra.mxu0 0.0
  %1940 = vmatprep.subr.mxu0 0.0
  %v1941 = vand.u32 %v28, 4294901760
  %1942 = vmatpush1.msra.mxu0 %v1941
  %1943 = vmatprep.subr.mxu0 0.0
  %v1944 = vand.u32 %v27, 4294901760
  %1945 = vmatpush1.msra.mxu0 %v1944
  %1946 = vmatprep.subr.mxu0 0.0
  %v1947 = vand.u32 %v26, 4294901760
  %1948 = vmatpush1.msra.mxu0 %v1947
  %1949 = vmatprep.subr.mxu0 0.0
  %v1950 = vand.u32 %v25, 4294901760
  %1951 = vmatpush1.msra.mxu0 %v1950
  %1952 = vmatprep.subr.mxu0 0.0
  %1953 = vmatpush2.msra.mxu0 0.0
  %1954 = vmatprep.subr.mxu0 0.0
  %1955 = vmatpush2.msra.mxu0 0.0
  %1956 = vmatprep.subr.mxu0 0.0
  %1957 = vmatpush2.msra.mxu0 0.0
  %1958 = vmatprep.subr.mxu0 0.0
  %1959 = vmatpush2.msra.mxu0 0.0
  %1960 = vmatprep.subr.mxu0 0.0
  %1961 = vmatpush2.msra.mxu0 0.0
  %1962 = vmatprep.subr.mxu0 0.0
  %1963 = vmatpush2.msra.mxu0 0.0
  %1964 = vmatprep.subr.mxu0 0.0
  %1965 = vmatpush2.msra.mxu0 0.0
  %1966 = vmatprep.subr.mxu0 0.0
  %1967 = vmatpush2.msra.mxu0 0.0
  %1968 = vmatprep.subr.mxu0 0.0
  %1969 = vmatpush2.msra.mxu0 0.0
  %1970 = vmatprep.subr.mxu0 0.0
  %1971 = vmatpush2.msra.mxu0 0.0
  %1972 = vmatprep.subr.mxu0 0.0
  %1973 = vmatpush2.msra.mxu0 0.0
  %1974 = vmatprep.subr.mxu0 0.0
  %1975 = vmatpush2.msra.mxu0 0.0
  %1976 = vmatprep.subr.mxu0 0.0
  %1977 = vmatpush2.msra.mxu0 0.0
  %1978 = vmatprep.subr.mxu0 0.0
  %1979 = vmatpush2.msra.mxu0 0.0
  %1980 = vmatprep.subr.mxu0 0.0
  %1981 = vmatpush2.msra.mxu0 0.0
  %1982 = vmatprep.subr.mxu0 0.0
  %1983 = vmatpush2.msra.mxu0 0.0
  %1984 = vmatprep.mubr.f32.mxu0 0.0
  %v1985 = vand.u32 %v1504, 4294901760
  %1986 = vmatmul.mubr.f32.gmra.mxu0 %v1985
  %v1987 = vpop.f32.mrf.mxu0
  %v1988 = vadd.f32 %v1913, %v1987
  %v1989 = vpop.f32.mrf.mxu0
  %1990 = vdwg.mxu0
  %v1991 = vmul.f32 %v1988, 0.020833334
  %v1992 = vmul.f32 %v1502, %v1502
  %v1993 = vsub.f32 %v1991, %v1992
  %v1994 = vadd.f32 %v1993, 1e-05
  %v1995 = vrsqrt.pop %v1994
  %vm1996 = vcmask 31744
  %v1998 = vsel %vm1996, %v1502, 0
  %v2001 = vsel %vm86, %v29, 0
  %2003 = vmatprep.subr.mxu0 0.0
  %2004 = vmatpush1.msra.mxu0 0.0
  %2005 = vmatprep.subr.mxu0 0.0
  %2006 = vmatpush1.msra.mxu0 0.0
  %2007 = vmatprep.subr.mxu0 0.0
  %2008 = vmatpush1.msra.mxu0 0.0
  %2009 = vmatprep.subr.mxu0 0.0
  %2010 = vmatpush1.msra.mxu0 0.0
  %2011 = vmatprep.subr.mxu0 0.0
  %2012 = vmatpush1.msra.mxu0 0.0
  %2013 = vmatprep.subr.mxu0 0.0
  %2014 = vmatpush1.msra.mxu0 0.0
  %2015 = vmatprep.subr.mxu0 0.0
  %2016 = vmatpush1.msra.mxu0 0.0
  %2017 = vmatprep.subr.mxu0 0.0
  %2018 = vmatpush1.msra.mxu0 0.0
  %2019 = vmatprep.subr.mxu0 0.0
  %2020 = vmatpush1.msra.mxu0 0.0
  %2021 = vmatprep.subr.mxu0 0.0
  %2022 = vmatpush1.msra.mxu0 0.0
  %2023 = vmatprep.subr.mxu0 0.0
  %2024 = vmatpush1.msra.mxu0 0.0
  %2025 = vmatprep.subr.mxu0 0.0
  %2026 = vmatpush1.msra.mxu0 0.0
  %2027 = vmatprep.subr.mxu0 0.0
  %2028 = vmatpush1.msra.mxu0 0.0
  %2029 = vmatprep.subr.mxu0 0.0
  %2030 = vmatpush1.msra.mxu0 0.0
  %2031 = vmatprep.subr.mxu0 0.0
  %2032 = vmatpush1.msra.mxu0 0.0
  %2033 = vmatprep.subr.mxu0 0.0
  %v2034 = vand.u32 %v2001, 4294901760
  %2035 = vmatpush1.msra.mxu0 %v2034
  %2036 = vmatprep.subr.mxu0 0.0
  %2037 = vmatpush2.msra.mxu0 0.0
  %2038 = vmatprep.subr.mxu0 0.0
  %2039 = vmatpush2.msra.mxu0 0.0
  %2040 = vmatprep.subr.mxu0 0.0
  %2041 = vmatpush2.msra.mxu0 0.0
  %2042 = vmatprep.subr.mxu0 0.0
  %2043 = vmatpush2.msra.mxu0 0.0
  %2044 = vmatprep.subr.mxu0 0.0
  %2045 = vmatpush2.msra.mxu0 0.0
  %2046 = vmatprep.subr.mxu0 0.0
  %2047 = vmatpush2.msra.mxu0 0.0
  %2048 = vmatprep.subr.mxu0 0.0
  %2049 = vmatpush2.msra.mxu0 0.0
  %2050 = vmatprep.subr.mxu0 0.0
  %2051 = vmatpush2.msra.mxu0 0.0
  %2052 = vmatprep.subr.mxu0 0.0
  %2053 = vmatpush2.msra.mxu0 0.0
  %2054 = vmatprep.subr.mxu0 0.0
  %2055 = vmatpush2.msra.mxu0 0.0
  %2056 = vmatprep.subr.mxu0 0.0
  %2057 = vmatpush2.msra.mxu0 0.0
  %2058 = vmatprep.subr.mxu0 0.0
  %2059 = vmatpush2.msra.mxu0 0.0
  %2060 = vmatprep.subr.mxu0 0.0
  %2061 = vmatpush2.msra.mxu0 0.0
  %2062 = vmatprep.subr.mxu0 0.0
  %2063 = vmatpush2.msra.mxu0 0.0
  %2064 = vmatprep.subr.mxu0 0.0
  %2065 = vmatpush2.msra.mxu0 0.0
  %2066 = vmatprep.subr.mxu0 0.0
  %2067 = vmatpush2.msra.mxu0 0.0
  %2068 = vmatprep.mubr.f32.mxu0 0.0
  %v2069 = vand.u32 %v1998, 4294901760
  %v2070 = vsub.f32 %v1998, %v2069
  %v2071 = vand.u32 %v2070, 4294901760
  %v2072 = vsub.f32 %v2070, %v2071
  %v2073 = vand.u32 %v2072, 4294901760
  %2074 = vmatmul.mubr.f32.gmra.mxu0 %v2073
  %v2075 = vpop.f32.mrf.mxu0
  %v2076 = vadd.f32 0.0, %v2075
  %v2077 = vpop.f32.mrf.mxu0
  %2078 = vdwg.mxu0
  %2079 = vmatprep.subr.mxu0 0.0
  %2080 = vmatpush1.msra.mxu0 0.0
  %2081 = vmatprep.subr.mxu0 0.0
  %2082 = vmatpush1.msra.mxu0 0.0
  %2083 = vmatprep.subr.mxu0 0.0
  %2084 = vmatpush1.msra.mxu0 0.0
  %2085 = vmatprep.subr.mxu0 0.0
  %2086 = vmatpush1.msra.mxu0 0.0
  %2087 = vmatprep.subr.mxu0 0.0
  %2088 = vmatpush1.msra.mxu0 0.0
  %2089 = vmatprep.subr.mxu0 0.0
  %2090 = vmatpush1.msra.mxu0 0.0
  %2091 = vmatprep.subr.mxu0 0.0
  %2092 = vmatpush1.msra.mxu0 0.0
  %2093 = vmatprep.subr.mxu0 0.0
  %2094 = vmatpush1.msra.mxu0 0.0
  %2095 = vmatprep.subr.mxu0 0.0
  %2096 = vmatpush1.msra.mxu0 0.0
  %2097 = vmatprep.subr.mxu0 0.0
  %2098 = vmatpush1.msra.mxu0 0.0
  %2099 = vmatprep.subr.mxu0 0.0
  %2100 = vmatpush1.msra.mxu0 0.0
  %2101 = vmatprep.subr.mxu0 0.0
  %2102 = vmatpush1.msra.mxu0 0.0
  %2103 = vmatprep.subr.mxu0 0.0
  %2104 = vmatpush1.msra.mxu0 0.0
  %2105 = vmatprep.subr.mxu0 0.0
  %2106 = vmatpush1.msra.mxu0 0.0
  %2107 = vmatprep.subr.mxu0 0.0
  %2108 = vmatpush1.msra.mxu0 0.0
  %2109 = vmatprep.subr.mxu0 0.0
  %v2110 = vand.u32 %v2001, 4294901760
  %v2111 = vsub.f32 %v2001, %v2110
  %v2112 = vand.u32 %v2111, 4294901760
  %v2113 = vsub.f32 %v2111, %v2112
  %v2114 = vand.u32 %v2113, 4294901760
  %2115 = vmatpush1.msra.mxu0 %v2114
  %2116 = vmatprep.subr.mxu0 0.0
  %2117 = vmatpush2.msra.mxu0 0.0
  %2118 = vmatprep.subr.mxu0 0.0
  %2119 = vmatpush2.msra.mxu0 0.0
  %2120 = vmatprep.subr.mxu0 0.0
  %2121 = vmatpush2.msra.mxu0 0.0
  %2122 = vmatprep.subr.mxu0 0.0
  %2123 = vmatpush2.msra.mxu0 0.0
  %2124 = vmatprep.subr.mxu0 0.0
  %2125 = vmatpush2.msra.mxu0 0.0
  %2126 = vmatprep.subr.mxu0 0.0
  %2127 = vmatpush2.msra.mxu0 0.0
  %2128 = vmatprep.subr.mxu0 0.0
  %2129 = vmatpush2.msra.mxu0 0.0
  %2130 = vmatprep.subr.mxu0 0.0
  %2131 = vmatpush2.msra.mxu0 0.0
  %2132 = vmatprep.subr.mxu0 0.0
  %2133 = vmatpush2.msra.mxu0 0.0
  %2134 = vmatprep.subr.mxu0 0.0
  %2135 = vmatpush2.msra.mxu0 0.0
  %2136 = vmatprep.subr.mxu0 0.0
  %2137 = vmatpush2.msra.mxu0 0.0
  %2138 = vmatprep.subr.mxu0 0.0
  %2139 = vmatpush2.msra.mxu0 0.0
  %2140 = vmatprep.subr.mxu0 0.0
  %2141 = vmatpush2.msra.mxu0 0.0
  %2142 = vmatprep.subr.mxu0 0.0
  %2143 = vmatpush2.msra.mxu0 0.0
  %2144 = vmatprep.subr.mxu0 0.0
  %2145 = vmatpush2.msra.mxu0 0.0
  %2146 = vmatprep.subr.mxu0 0.0
  %2147 = vmatpush2.msra.mxu0 0.0
  %2148 = vmatprep.mubr.f32.mxu0 0.0
  %v2149 = vand.u32 %v1998, 4294901760
  %2150 = vmatmul.mubr.f32.gmra.mxu0 %v2149
  %v2151 = vpop.f32.mrf.mxu0
  %v2152 = vadd.f32 %v2076, %v2151
  %v2153 = vpop.f32.mrf.mxu0
  %2154 = vdwg.mxu0
  %2155 = vmatprep.subr.mxu0 0.0
  %2156 = vmatpush1.msra.mxu0 0.0
  %2157 = vmatprep.subr.mxu0 0.0
  %2158 = vmatpush1.msra.mxu0 0.0
  %2159 = vmatprep.subr.mxu0 0.0
  %2160 = vmatpush1.msra.mxu0 0.0
  %2161 = vmatprep.subr.mxu0 0.0
  %2162 = vmatpush1.msra.mxu0 0.0
  %2163 = vmatprep.subr.mxu0 0.0
  %2164 = vmatpush1.msra.mxu0 0.0
  %2165 = vmatprep.subr.mxu0 0.0
  %2166 = vmatpush1.msra.mxu0 0.0
  %2167 = vmatprep.subr.mxu0 0.0
  %2168 = vmatpush1.msra.mxu0 0.0
  %2169 = vmatprep.subr.mxu0 0.0
  %2170 = vmatpush1.msra.mxu0 0.0
  %2171 = vmatprep.subr.mxu0 0.0
  %2172 = vmatpush1.msra.mxu0 0.0
  %2173 = vmatprep.subr.mxu0 0.0
  %2174 = vmatpush1.msra.mxu0 0.0
  %2175 = vmatprep.subr.mxu0 0.0
  %2176 = vmatpush1.msra.mxu0 0.0
  %2177 = vmatprep.subr.mxu0 0.0
  %2178 = vmatpush1.msra.mxu0 0.0
  %2179 = vmatprep.subr.mxu0 0.0
  %2180 = vmatpush1.msra.mxu0 0.0
  %2181 = vmatprep.subr.mxu0 0.0
  %2182 = vmatpush1.msra.mxu0 0.0
  %2183 = vmatprep.subr.mxu0 0.0
  %2184 = vmatpush1.msra.mxu0 0.0
  %2185 = vmatprep.subr.mxu0 0.0
  %v2186 = vand.u32 %v2001, 4294901760
  %v2187 = vsub.f32 %v2001, %v2186
  %2188 = vmatpush1.msra.mxu0 %v2187
  %2189 = vmatprep.subr.mxu0 0.0
  %2190 = vmatpush2.msra.mxu0 0.0
  %2191 = vmatprep.subr.mxu0 0.0
  %2192 = vmatpush2.msra.mxu0 0.0
  %2193 = vmatprep.subr.mxu0 0.0
  %2194 = vmatpush2.msra.mxu0 0.0
  %2195 = vmatprep.subr.mxu0 0.0
  %2196 = vmatpush2.msra.mxu0 0.0
  %2197 = vmatprep.subr.mxu0 0.0
  %2198 = vmatpush2.msra.mxu0 0.0
  %2199 = vmatprep.subr.mxu0 0.0
  %2200 = vmatpush2.msra.mxu0 0.0
  %2201 = vmatprep.subr.mxu0 0.0
  %2202 = vmatpush2.msra.mxu0 0.0
  %2203 = vmatprep.subr.mxu0 0.0
  %2204 = vmatpush2.msra.mxu0 0.0
  %2205 = vmatprep.subr.mxu0 0.0
  %2206 = vmatpush2.msra.mxu0 0.0
  %2207 = vmatprep.subr.mxu0 0.0
  %2208 = vmatpush2.msra.mxu0 0.0
  %2209 = vmatprep.subr.mxu0 0.0
  %2210 = vmatpush2.msra.mxu0 0.0
  %2211 = vmatprep.subr.mxu0 0.0
  %2212 = vmatpush2.msra.mxu0 0.0
  %2213 = vmatprep.subr.mxu0 0.0
  %2214 = vmatpush2.msra.mxu0 0.0
  %2215 = vmatprep.subr.mxu0 0.0
  %2216 = vmatpush2.msra.mxu0 0.0
  %2217 = vmatprep.subr.mxu0 0.0
  %2218 = vmatpush2.msra.mxu0 0.0
  %2219 = vmatprep.subr.mxu0 0.0
  %2220 = vmatpush2.msra.mxu0 0.0
  %2221 = vmatprep.mubr.f32.mxu0 0.0
  %v2222 = vand.u32 %v1998, 4294901760
  %v2223 = vsub.f32 %v1998, %v2222
  %2224 = vmatmul.mubr.f32.gmra.mxu0 %v2223
  %v2225 = vpop.f32.mrf.mxu0
  %v2226 = vadd.f32 %v2152, %v2225
  %v2227 = vpop.f32.mrf.mxu0
  %2228 = vdwg.mxu0
  %2229 = vmatprep.subr.mxu0 0.0
  %2230 = vmatpush1.msra.mxu0 0.0
  %2231 = vmatprep.subr.mxu0 0.0
  %2232 = vmatpush1.msra.mxu0 0.0
  %2233 = vmatprep.subr.mxu0 0.0
  %2234 = vmatpush1.msra.mxu0 0.0
  %2235 = vmatprep.subr.mxu0 0.0
  %2236 = vmatpush1.msra.mxu0 0.0
  %2237 = vmatprep.subr.mxu0 0.0
  %2238 = vmatpush1.msra.mxu0 0.0
  %2239 = vmatprep.subr.mxu0 0.0
  %2240 = vmatpush1.msra.mxu0 0.0
  %2241 = vmatprep.subr.mxu0 0.0
  %2242 = vmatpush1.msra.mxu0 0.0
  %2243 = vmatprep.subr.mxu0 0.0
  %2244 = vmatpush1.msra.mxu0 0.0
  %2245 = vmatprep.subr.mxu0 0.0
  %2246 = vmatpush1.msra.mxu0 0.0
  %2247 = vmatprep.subr.mxu0 0.0
  %2248 = vmatpush1.msra.mxu0 0.0
  %2249 = vmatprep.subr.mxu0 0.0
  %2250 = vmatpush1.msra.mxu0 0.0
  %2251 = vmatprep.subr.mxu0 0.0
  %2252 = vmatpush1.msra.mxu0 0.0
  %2253 = vmatprep.subr.mxu0 0.0
  %2254 = vmatpush1.msra.mxu0 0.0
  %2255 = vmatprep.subr.mxu0 0.0
  %2256 = vmatpush1.msra.mxu0 0.0
  %2257 = vmatprep.subr.mxu0 0.0
  %2258 = vmatpush1.msra.mxu0 0.0
  %2259 = vmatprep.subr.mxu0 0.0
  %v2260 = vand.u32 %v2001, 4294901760
  %2261 = vmatpush1.msra.mxu0 %v2260
  %2262 = vmatprep.subr.mxu0 0.0
  %2263 = vmatpush2.msra.mxu0 0.0
  %2264 = vmatprep.subr.mxu0 0.0
  %2265 = vmatpush2.msra.mxu0 0.0
  %2266 = vmatprep.subr.mxu0 0.0
  %2267 = vmatpush2.msra.mxu0 0.0
  %2268 = vmatprep.subr.mxu0 0.0
  %2269 = vmatpush2.msra.mxu0 0.0
  %2270 = vmatprep.subr.mxu0 0.0
  %2271 = vmatpush2.msra.mxu0 0.0
  %2272 = vmatprep.subr.mxu0 0.0
  %2273 = vmatpush2.msra.mxu0 0.0
  %2274 = vmatprep.subr.mxu0 0.0
  %2275 = vmatpush2.msra.mxu0 0.0
  %2276 = vmatprep.subr.mxu0 0.0
  %2277 = vmatpush2.msra.mxu0 0.0
  %2278 = vmatprep.subr.mxu0 0.0
  %2279 = vmatpush2.msra.mxu0 0.0
  %2280 = vmatprep.subr.mxu0 0.0
  %2281 = vmatpush2.msra.mxu0 0.0
  %2282 = vmatprep.subr.mxu0 0.0
  %2283 = vmatpush2.msra.mxu0 0.0
  %2284 = vmatprep.subr.mxu0 0.0
  %2285 = vmatpush2.msra.mxu0 0.0
  %2286 = vmatprep.subr.mxu0 0.0
  %2287 = vmatpush2.msra.mxu0 0.0
  %2288 = vmatprep.subr.mxu0 0.0
  %2289 = vmatpush2.msra.mxu0 0.0
  %2290 = vmatprep.subr.mxu0 0.0
  %2291 = vmatpush2.msra.mxu0 0.0
  %2292 = vmatprep.subr.mxu0 0.0
  %2293 = vmatpush2.msra.mxu0 0.0
  %2294 = vmatprep.mubr.f32.mxu0 0.0
  %v2295 = vand.u32 %v1998, 4294901760
  %v2296 = vsub.f32 %v1998, %v2295
  %v2297 = vand.u32 %v2296, 4294901760
  %2298 = vmatmul.mubr.f32.gmra.mxu0 %v2297
  %v2299 = vpop.f32.mrf.mxu0
  %v2300 = vadd.f32 %v2226, %v2299
  %v2301 = vpop.f32.mrf.mxu0
  %2302 = vdwg.mxu0
  %2303 = vmatprep.subr.mxu0 0.0
  %2304 = vmatpush1.msra.mxu0 0.0
  %2305 = vmatprep.subr.mxu0 0.0
  %2306 = vmatpush1.msra.mxu0 0.0
  %2307 = vmatprep.subr.mxu0 0.0
  %2308 = vmatpush1.msra.mxu0 0.0
  %2309 = vmatprep.subr.mxu0 0.0
  %2310 = vmatpush1.msra.mxu0 0.0
  %2311 = vmatprep.subr.mxu0 0.0
  %2312 = vmatpush1.msra.mxu0 0.0
  %2313 = vmatprep.subr.mxu0 0.0
  %2314 = vmatpush1.msra.mxu0 0.0
  %2315 = vmatprep.subr.mxu0 0.0
  %2316 = vmatpush1.msra.mxu0 0.0
  %2317 = vmatprep.subr.mxu0 0.0
  %2318 = vmatpush1.msra.mxu0 0.0
  %2319 = vmatprep.subr.mxu0 0.0
  %2320 = vmatpush1.msra.mxu0 0.0
  %2321 = vmatprep.subr.mxu0 0.0
  %2322 = vmatpush1.msra.mxu0 0.0
  %2323 = vmatprep.subr.mxu0 0.0
  %2324 = vmatpush1.msra.mxu0 0.0
  %2325 = vmatprep.subr.mxu0 0.0
  %2326 = vmatpush1.msra.mxu0 0.0
  %2327 = vmatprep.subr.mxu0 0.0
  %2328 = vmatpush1.msra.mxu0 0.0
  %2329 = vmatprep.subr.mxu0 0.0
  %2330 = vmatpush1.msra.mxu0 0.0
  %2331 = vmatprep.subr.mxu0 0.0
  %2332 = vmatpush1.msra.mxu0 0.0
  %2333 = vmatprep.subr.mxu0 0.0
  %v2334 = vand.u32 %v2001, 4294901760
  %v2335 = vsub.f32 %v2001, %v2334
  %v2336 = vand.u32 %v2335, 4294901760
  %2337 = vmatpush1.msra.mxu0 %v2336
  %2338 = vmatprep.subr.mxu0 0.0
  %2339 = vmatpush2.msra.mxu0 0.0
  %2340 = vmatprep.subr.mxu0 0.0
  %2341 = vmatpush2.msra.mxu0 0.0
  %2342 = vmatprep.subr.mxu0 0.0
  %2343 = vmatpush2.msra.mxu0 0.0
  %2344 = vmatprep.subr.mxu0 0.0
  %2345 = vmatpush2.msra.mxu0 0.0
  %2346 = vmatprep.subr.mxu0 0.0
  %2347 = vmatpush2.msra.mxu0 0.0
  %2348 = vmatprep.subr.mxu0 0.0
  %2349 = vmatpush2.msra.mxu0 0.0
  %2350 = vmatprep.subr.mxu0 0.0
  %2351 = vmatpush2.msra.mxu0 0.0
  %2352 = vmatprep.subr.mxu0 0.0
  %2353 = vmatpush2.msra.mxu0 0.0
  %2354 = vmatprep.subr.mxu0 0.0
  %2355 = vmatpush2.msra.mxu0 0.0
  %2356 = vmatprep.subr.mxu0 0.0
  %2357 = vmatpush2.msra.mxu0 0.0
  %2358 = vmatprep.subr.mxu0 0.0
  %2359 = vmatpush2.msra.mxu0 0.0
  %2360 = vmatprep.subr.mxu0 0.0
  %2361 = vmatpush2.msra.mxu0 0.0
  %2362 = vmatprep.subr.mxu0 0.0
  %2363 = vmatpush2.msra.mxu0 0.0
  %2364 = vmatprep.subr.mxu0 0.0
  %2365 = vmatpush2.msra.mxu0 0.0
  %2366 = vmatprep.subr.mxu0 0.0
  %2367 = vmatpush2.msra.mxu0 0.0
  %2368 = vmatprep.subr.mxu0 0.0
  %2369 = vmatpush2.msra.mxu0 0.0
  %2370 = vmatprep.mubr.f32.mxu0 0.0
  %v2371 = vand.u32 %v1998, 4294901760
  %2372 = vmatmul.mubr.f32.gmra.mxu0 %v2371
  %v2373 = vpop.f32.mrf.mxu0
  %v2374 = vadd.f32 %v2300, %v2373
  %v2375 = vpop.f32.mrf.mxu0
  %2376 = vdwg.mxu0
  %2377 = vmatprep.subr.mxu0 0.0
  %2378 = vmatpush1.msra.mxu0 0.0
  %2379 = vmatprep.subr.mxu0 0.0
  %2380 = vmatpush1.msra.mxu0 0.0
  %2381 = vmatprep.subr.mxu0 0.0
  %2382 = vmatpush1.msra.mxu0 0.0
  %2383 = vmatprep.subr.mxu0 0.0
  %2384 = vmatpush1.msra.mxu0 0.0
  %2385 = vmatprep.subr.mxu0 0.0
  %2386 = vmatpush1.msra.mxu0 0.0
  %2387 = vmatprep.subr.mxu0 0.0
  %2388 = vmatpush1.msra.mxu0 0.0
  %2389 = vmatprep.subr.mxu0 0.0
  %2390 = vmatpush1.msra.mxu0 0.0
  %2391 = vmatprep.subr.mxu0 0.0
  %2392 = vmatpush1.msra.mxu0 0.0
  %2393 = vmatprep.subr.mxu0 0.0
  %2394 = vmatpush1.msra.mxu0 0.0
  %2395 = vmatprep.subr.mxu0 0.0
  %2396 = vmatpush1.msra.mxu0 0.0
  %2397 = vmatprep.subr.mxu0 0.0
  %2398 = vmatpush1.msra.mxu0 0.0
  %2399 = vmatprep.subr.mxu0 0.0
  %2400 = vmatpush1.msra.mxu0 0.0
  %2401 = vmatprep.subr.mxu0 0.0
  %2402 = vmatpush1.msra.mxu0 0.0
  %2403 = vmatprep.subr.mxu0 0.0
  %2404 = vmatpush1.msra.mxu0 0.0
  %2405 = vmatprep.subr.mxu0 0.0
  %2406 = vmatpush1.msra.mxu0 0.0
  %2407 = vmatprep.subr.mxu0 0.0
  %v2408 = vand.u32 %v2001, 4294901760
  %2409 = vmatpush1.msra.mxu0 %v2408
  %2410 = vmatprep.subr.mxu0 0.0
  %2411 = vmatpush2.msra.mxu0 0.0
  %2412 = vmatprep.subr.mxu0 0.0
  %2413 = vmatpush2.msra.mxu0 0.0
  %2414 = vmatprep.subr.mxu0 0.0
  %2415 = vmatpush2.msra.mxu0 0.0
  %2416 = vmatprep.subr.mxu0 0.0
  %2417 = vmatpush2.msra.mxu0 0.0
  %2418 = vmatprep.subr.mxu0 0.0
  %2419 = vmatpush2.msra.mxu0 0.0
  %2420 = vmatprep.subr.mxu0 0.0
  %2421 = vmatpush2.msra.mxu0 0.0
  %2422 = vmatprep.subr.mxu0 0.0
  %2423 = vmatpush2.msra.mxu0 0.0
  %2424 = vmatprep.subr.mxu0 0.0
  %2425 = vmatpush2.msra.mxu0 0.0
  %2426 = vmatprep.subr.mxu0 0.0
  %2427 = vmatpush2.msra.mxu0 0.0
  %2428 = vmatprep.subr.mxu0 0.0
  %2429 = vmatpush2.msra.mxu0 0.0
  %2430 = vmatprep.subr.mxu0 0.0
  %2431 = vmatpush2.msra.mxu0 0.0
  %2432 = vmatprep.subr.mxu0 0.0
  %2433 = vmatpush2.msra.mxu0 0.0
  %2434 = vmatprep.subr.mxu0 0.0
  %2435 = vmatpush2.msra.mxu0 0.0
  %2436 = vmatprep.subr.mxu0 0.0
  %2437 = vmatpush2.msra.mxu0 0.0
  %2438 = vmatprep.subr.mxu0 0.0
  %2439 = vmatpush2.msra.mxu0 0.0
  %2440 = vmatprep.subr.mxu0 0.0
  %2441 = vmatpush2.msra.mxu0 0.0
  %2442 = vmatprep.mubr.f32.mxu0 0.0
  %v2443 = vand.u32 %v1998, 4294901760
  %2444 = vmatmul.mubr.f32.gmra.mxu0 %v2443
  %v2445 = vpop.f32.mrf.mxu0
  %v2446 = vadd.f32 %v2374, %v2445
  %v2447 = vpop.f32.mrf.mxu0
  %2448 = vdwg.mxu0
  %v2450 = vsel %vm1996, %v1995, 0
  %v2453 = vsel %vm86, %v30, 0
  %2455 = vmatprep.subr.mxu0 0.0
  %2456 = vmatpush1.msra.mxu0 0.0
  %2457 = vmatprep.subr.mxu0 0.0
  %2458 = vmatpush1.msra.mxu0 0.0
  %2459 = vmatprep.subr.mxu0 0.0
  %2460 = vmatpush1.msra.mxu0 0.0
  %2461 = vmatprep.subr.mxu0 0.0
  %2462 = vmatpush1.msra.mxu0 0.0
  %2463 = vmatprep.subr.mxu0 0.0
  %2464 = vmatpush1.msra.mxu0 0.0
  %2465 = vmatprep.subr.mxu0 0.0
  %2466 = vmatpush1.msra.mxu0 0.0
  %2467 = vmatprep.subr.mxu0 0.0
  %2468 = vmatpush1.msra.mxu0 0.0
  %2469 = vmatprep.subr.mxu0 0.0
  %2470 = vmatpush1.msra.mxu0 0.0
  %2471 = vmatprep.subr.mxu0 0.0
  %2472 = vmatpush1.msra.mxu0 0.0
  %2473 = vmatprep.subr.mxu0 0.0
  %2474 = vmatpush1.msra.mxu0 0.0
  %2475 = vmatprep.subr.mxu0 0.0
  %2476 = vmatpush1.msra.mxu0 0.0
  %2477 = vmatprep.subr.mxu0 0.0
  %2478 = vmatpush1.msra.mxu0 0.0
  %2479 = vmatprep.subr.mxu0 0.0
  %2480 = vmatpush1.msra.mxu0 0.0
  %2481 = vmatprep.subr.mxu0 0.0
  %2482 = vmatpush1.msra.mxu0 0.0
  %2483 = vmatprep.subr.mxu0 0.0
  %2484 = vmatpush1.msra.mxu0 0.0
  %2485 = vmatprep.subr.mxu0 0.0
  %v2486 = vand.u32 %v2453, 4294901760
  %2487 = vmatpush1.msra.mxu0 %v2486
  %2488 = vmatprep.subr.mxu0 0.0
  %2489 = vmatpush2.msra.mxu0 0.0
  %2490 = vmatprep.subr.mxu0 0.0
  %2491 = vmatpush2.msra.mxu0 0.0
  %2492 = vmatprep.subr.mxu0 0.0
  %2493 = vmatpush2.msra.mxu0 0.0
  %2494 = vmatprep.subr.mxu0 0.0
  %2495 = vmatpush2.msra.mxu0 0.0
  %2496 = vmatprep.subr.mxu0 0.0
  %2497 = vmatpush2.msra.mxu0 0.0
  %2498 = vmatprep.subr.mxu0 0.0
  %2499 = vmatpush2.msra.mxu0 0.0
  %2500 = vmatprep.subr.mxu0 0.0
  %2501 = vmatpush2.msra.mxu0 0.0
  %2502 = vmatprep.subr.mxu0 0.0
  %2503 = vmatpush2.msra.mxu0 0.0
  %2504 = vmatprep.subr.mxu0 0.0
  %2505 = vmatpush2.msra.mxu0 0.0
  %2506 = vmatprep.subr.mxu0 0.0
  %2507 = vmatpush2.msra.mxu0 0.0
  %2508 = vmatprep.subr.mxu0 0.0
  %2509 = vmatpush2.msra.mxu0 0.0
  %2510 = vmatprep.subr.mxu0 0.0
  %2511 = vmatpush2.msra.mxu0 0.0
  %2512 = vmatprep.subr.mxu0 0.0
  %2513 = vmatpush2.msra.mxu0 0.0
  %2514 = vmatprep.subr.mxu0 0.0
  %2515 = vmatpush2.msra.mxu0 0.0
  %2516 = vmatprep.subr.mxu0 0.0
  %2517 = vmatpush2.msra.mxu0 0.0
  %2518 = vmatprep.subr.mxu0 0.0
  %2519 = vmatpush2.msra.mxu0 0.0
  %2520 = vmatprep.mubr.f32.mxu0 0.0
  %v2521 = vand.u32 %v2450, 4294901760
  %v2522 = vsub.f32 %v2450, %v2521
  %v2523 = vand.u32 %v2522, 4294901760
  %v2524 = vsub.f32 %v2522, %v2523
  %v2525 = vand.u32 %v2524, 4294901760
  %2526 = vmatmul.mubr.f32.gmra.mxu0 %v2525
  %v2527 = vpop.f32.mrf.mxu0
  %v2528 = vadd.f32 0.0, %v2527
  %v2529 = vpop.f32.mrf.mxu0
  %2530 = vdwg.mxu0
  %2531 = vmatprep.subr.mxu0 0.0
  %2532 = vmatpush1.msra.mxu0 0.0
  %2533 = vmatprep.subr.mxu0 0.0
  %2534 = vmatpush1.msra.mxu0 0.0
  %2535 = vmatprep.subr.mxu0 0.0
  %2536 = vmatpush1.msra.mxu0 0.0
  %2537 = vmatprep.subr.mxu0 0.0
  %2538 = vmatpush1.msra.mxu0 0.0
  %2539 = vmatprep.subr.mxu0 0.0
  %2540 = vmatpush1.msra.mxu0 0.0
  %2541 = vmatprep.subr.mxu0 0.0
  %2542 = vmatpush1.msra.mxu0 0.0
  %2543 = vmatprep.subr.mxu0 0.0
  %2544 = vmatpush1.msra.mxu0 0.0
  %2545 = vmatprep.subr.mxu0 0.0
  %2546 = vmatpush1.msra.mxu0 0.0
  %2547 = vmatprep.subr.mxu0 0.0
  %2548 = vmatpush1.msra.mxu0 0.0
  %2549 = vmatprep.subr.mxu0 0.0
  %2550 = vmatpush1.msra.mxu0 0.0
  %2551 = vmatprep.subr.mxu0 0.0
  %2552 = vmatpush1.msra.mxu0 0.0
  %2553 = vmatprep.subr.mxu0 0.0
  %2554 = vmatpush1.msra.mxu0 0.0
  %2555 = vmatprep.subr.mxu0 0.0
  %2556 = vmatpush1.msra.mxu0 0.0
  %2557 = vmatprep.subr.mxu0 0.0
  %2558 = vmatpush1.msra.mxu0 0.0
  %2559 = vmatprep.subr.mxu0 0.0
  %2560 = vmatpush1.msra.mxu0 0.0
  %2561 = vmatprep.subr.mxu0 0.0
  %v2562 = vand.u32 %v2453, 4294901760
  %v2563 = vsub.f32 %v2453, %v2562
  %v2564 = vand.u32 %v2563, 4294901760
  %v2565 = vsub.f32 %v2563, %v2564
  %v2566 = vand.u32 %v2565, 4294901760
  %2567 = vmatpush1.msra.mxu0 %v2566
  %2568 = vmatprep.subr.mxu0 0.0
  %2569 = vmatpush2.msra.mxu0 0.0
  %2570 = vmatprep.subr.mxu0 0.0
  %2571 = vmatpush2.msra.mxu0 0.0
  %2572 = vmatprep.subr.mxu0 0.0
  %2573 = vmatpush2.msra.mxu0 0.0
  %2574 = vmatprep.subr.mxu0 0.0
  %2575 = vmatpush2.msra.mxu0 0.0
  %2576 = vmatprep.subr.mxu0 0.0
  %2577 = vmatpush2.msra.mxu0 0.0
  %2578 = vmatprep.subr.mxu0 0.0
  %2579 = vmatpush2.msra.mxu0 0.0
  %2580 = vmatprep.subr.mxu0 0.0
  %2581 = vmatpush2.msra.mxu0 0.0
  %2582 = vmatprep.subr.mxu0 0.0
  %2583 = vmatpush2.msra.mxu0 0.0
  %2584 = vmatprep.subr.mxu0 0.0
  %2585 = vmatpush2.msra.mxu0 0.0
  %2586 = vmatprep.subr.mxu0 0.0
  %2587 = vmatpush2.msra.mxu0 0.0
  %2588 = vmatprep.subr.mxu0 0.0
  %2589 = vmatpush2.msra.mxu0 0.0
  %2590 = vmatprep.subr.mxu0 0.0
  %2591 = vmatpush2.msra.mxu0 0.0
  %2592 = vmatprep.subr.mxu0 0.0
  %2593 = vmatpush2.msra.mxu0 0.0
  %2594 = vmatprep.subr.mxu0 0.0
  %2595 = vmatpush2.msra.mxu0 0.0
  %2596 = vmatprep.subr.mxu0 0.0
  %2597 = vmatpush2.msra.mxu0 0.0
  %2598 = vmatprep.subr.mxu0 0.0
  %2599 = vmatpush2.msra.mxu0 0.0
  %2600 = vmatprep.mubr.f32.mxu0 0.0
  %v2601 = vand.u32 %v2450, 4294901760
  %2602 = vmatmul.mubr.f32.gmra.mxu0 %v2601
  %v2603 = vpop.f32.mrf.mxu0
  %v2604 = vadd.f32 %v2528, %v2603
  %v2605 = vpop.f32.mrf.mxu0
  %2606 = vdwg.mxu0
  %2607 = vmatprep.subr.mxu0 0.0
  %2608 = vmatpush1.msra.mxu0 0.0
  %2609 = vmatprep.subr.mxu0 0.0
  %2610 = vmatpush1.msra.mxu0 0.0
  %2611 = vmatprep.subr.mxu0 0.0
  %2612 = vmatpush1.msra.mxu0 0.0
  %2613 = vmatprep.subr.mxu0 0.0
  %2614 = vmatpush1.msra.mxu0 0.0
  %2615 = vmatprep.subr.mxu0 0.0
  %2616 = vmatpush1.msra.mxu0 0.0
  %2617 = vmatprep.subr.mxu0 0.0
  %2618 = vmatpush1.msra.mxu0 0.0
  %2619 = vmatprep.subr.mxu0 0.0
  %2620 = vmatpush1.msra.mxu0 0.0
  %2621 = vmatprep.subr.mxu0 0.0
  %2622 = vmatpush1.msra.mxu0 0.0
  %2623 = vmatprep.subr.mxu0 0.0
  %2624 = vmatpush1.msra.mxu0 0.0
  %2625 = vmatprep.subr.mxu0 0.0
  %2626 = vmatpush1.msra.mxu0 0.0
  %2627 = vmatprep.subr.mxu0 0.0
  %2628 = vmatpush1.msra.mxu0 0.0
  %2629 = vmatprep.subr.mxu0 0.0
  %2630 = vmatpush1.msra.mxu0 0.0
  %2631 = vmatprep.subr.mxu0 0.0
  %2632 = vmatpush1.msra.mxu0 0.0
  %2633 = vmatprep.subr.mxu0 0.0
  %2634 = vmatpush1.msra.mxu0 0.0
  %2635 = vmatprep.subr.mxu0 0.0
  %2636 = vmatpush1.msra.mxu0 0.0
  %2637 = vmatprep.subr.mxu0 0.0
  %v2638 = vand.u32 %v2453, 4294901760
  %v2639 = vsub.f32 %v2453, %v2638
  %2640 = vmatpush1.msra.mxu0 %v2639
  %2641 = vmatprep.subr.mxu0 0.0
  %2642 = vmatpush2.msra.mxu0 0.0
  %2643 = vmatprep.subr.mxu0 0.0
  %2644 = vmatpush2.msra.mxu0 0.0
  %2645 = vmatprep.subr.mxu0 0.0
  %2646 = vmatpush2.msra.mxu0 0.0
  %2647 = vmatprep.subr.mxu0 0.0
  %2648 = vmatpush2.msra.mxu0 0.0
  %2649 = vmatprep.subr.mxu0 0.0
  %2650 = vmatpush2.msra.mxu0 0.0
  %2651 = vmatprep.subr.mxu0 0.0
  %2652 = vmatpush2.msra.mxu0 0.0
  %2653 = vmatprep.subr.mxu0 0.0
  %2654 = vmatpush2.msra.mxu0 0.0
  %2655 = vmatprep.subr.mxu0 0.0
  %2656 = vmatpush2.msra.mxu0 0.0
  %2657 = vmatprep.subr.mxu0 0.0
  %2658 = vmatpush2.msra.mxu0 0.0
  %2659 = vmatprep.subr.mxu0 0.0
  %2660 = vmatpush2.msra.mxu0 0.0
  %2661 = vmatprep.subr.mxu0 0.0
  %2662 = vmatpush2.msra.mxu0 0.0
  %2663 = vmatprep.subr.mxu0 0.0
  %2664 = vmatpush2.msra.mxu0 0.0
  %2665 = vmatprep.subr.mxu0 0.0
  %2666 = vmatpush2.msra.mxu0 0.0
  %2667 = vmatprep.subr.mxu0 0.0
  %2668 = vmatpush2.msra.mxu0 0.0
  %2669 = vmatprep.subr.mxu0 0.0
  %2670 = vmatpush2.msra.mxu0 0.0
  %2671 = vmatprep.subr.mxu0 0.0
  %2672 = vmatpush2.msra.mxu0 0.0
  %2673 = vmatprep.mubr.f32.mxu0 0.0
  %v2674 = vand.u32 %v2450, 4294901760
  %v2675 = vsub.f32 %v2450, %v2674
  %2676 = vmatmul.mubr.f32.gmra.mxu0 %v2675
  %v2677 = vpop.f32.mrf.mxu0
  %v2678 = vadd.f32 %v2604, %v2677
  %v2679 = vpop.f32.mrf.mxu0
  %2680 = vdwg.mxu0
  %2681 = vmatprep.subr.mxu0 0.0
  %2682 = vmatpush1.msra.mxu0 0.0
  %2683 = vmatprep.subr.mxu0 0.0
  %2684 = vmatpush1.msra.mxu0 0.0
  %2685 = vmatprep.subr.mxu0 0.0
  %2686 = vmatpush1.msra.mxu0 0.0
  %2687 = vmatprep.subr.mxu0 0.0
  %2688 = vmatpush1.msra.mxu0 0.0
  %2689 = vmatprep.subr.mxu0 0.0
  %2690 = vmatpush1.msra.mxu0 0.0
  %2691 = vmatprep.subr.mxu0 0.0
  %2692 = vmatpush1.msra.mxu0 0.0
  %2693 = vmatprep.subr.mxu0 0.0
  %2694 = vmatpush1.msra.mxu0 0.0
  %2695 = vmatprep.subr.mxu0 0.0
  %2696 = vmatpush1.msra.mxu0 0.0
  %2697 = vmatprep.subr.mxu0 0.0
  %2698 = vmatpush1.msra.mxu0 0.0
  %2699 = vmatprep.subr.mxu0 0.0
  %2700 = vmatpush1.msra.mxu0 0.0
  %2701 = vmatprep.subr.mxu0 0.0
  %2702 = vmatpush1.msra.mxu0 0.0
  %2703 = vmatprep.subr.mxu0 0.0
  %2704 = vmatpush1.msra.mxu0 0.0
  %2705 = vmatprep.subr.mxu0 0.0
  %2706 = vmatpush1.msra.mxu0 0.0
  %2707 = vmatprep.subr.mxu0 0.0
  %2708 = vmatpush1.msra.mxu0 0.0
  %2709 = vmatprep.subr.mxu0 0.0
  %2710 = vmatpush1.msra.mxu0 0.0
  %2711 = vmatprep.subr.mxu0 0.0
  %v2712 = vand.u32 %v2453, 4294901760
  %2713 = vmatpush1.msra.mxu0 %v2712
  %2714 = vmatprep.subr.mxu0 0.0
  %2715 = vmatpush2.msra.mxu0 0.0
  %2716 = vmatprep.subr.mxu0 0.0
  %2717 = vmatpush2.msra.mxu0 0.0
  %2718 = vmatprep.subr.mxu0 0.0
  %2719 = vmatpush2.msra.mxu0 0.0
  %2720 = vmatprep.subr.mxu0 0.0
  %2721 = vmatpush2.msra.mxu0 0.0
  %2722 = vmatprep.subr.mxu0 0.0
  %2723 = vmatpush2.msra.mxu0 0.0
  %2724 = vmatprep.subr.mxu0 0.0
  %2725 = vmatpush2.msra.mxu0 0.0
  %2726 = vmatprep.subr.mxu0 0.0
  %2727 = vmatpush2.msra.mxu0 0.0
  %2728 = vmatprep.subr.mxu0 0.0
  %2729 = vmatpush2.msra.mxu0 0.0
  %2730 = vmatprep.subr.mxu0 0.0
  %2731 = vmatpush2.msra.mxu0 0.0
  %2732 = vmatprep.subr.mxu0 0.0
  %2733 = vmatpush2.msra.mxu0 0.0
  %2734 = vmatprep.subr.mxu0 0.0
  %2735 = vmatpush2.msra.mxu0 0.0
  %2736 = vmatprep.subr.mxu0 0.0
  %2737 = vmatpush2.msra.mxu0 0.0
  %2738 = vmatprep.subr.mxu0 0.0
  %2739 = vmatpush2.msra.mxu0 0.0
  %2740 = vmatprep.subr.mxu0 0.0
  %2741 = vmatpush2.msra.mxu0 0.0
  %2742 = vmatprep.subr.mxu0 0.0
  %2743 = vmatpush2.msra.mxu0 0.0
  %2744 = vmatprep.subr.mxu0 0.0
  %2745 = vmatpush2.msra.mxu0 0.0
  %2746 = vmatprep.mubr.f32.mxu0 0.0
  %v2747 = vand.u32 %v2450, 4294901760
  %v2748 = vsub.f32 %v2450, %v2747
  %v2749 = vand.u32 %v2748, 4294901760
  %2750 = vmatmul.mubr.f32.gmra.mxu0 %v2749
  %v2751 = vpop.f32.mrf.mxu0
  %v2752 = vadd.f32 %v2678, %v2751
  %v2753 = vpop.f32.mrf.mxu0
  %2754 = vdwg.mxu0
  %2755 = vmatprep.subr.mxu0 0.0
  %2756 = vmatpush1.msra.mxu0 0.0
  %2757 = vmatprep.subr.mxu0 0.0
  %2758 = vmatpush1.msra.mxu0 0.0
  %2759 = vmatprep.subr.mxu0 0.0
  %2760 = vmatpush1.msra.mxu0 0.0
  %2761 = vmatprep.subr.mxu0 0.0
  %2762 = vmatpush1.msra.mxu0 0.0
  %2763 = vmatprep.subr.mxu0 0.0
  %2764 = vmatpush1.msra.mxu0 0.0
  %2765 = vmatprep.subr.mxu0 0.0
  %2766 = vmatpush1.msra.mxu0 0.0
  %2767 = vmatprep.subr.mxu0 0.0
  %2768 = vmatpush1.msra.mxu0 0.0
  %2769 = vmatprep.subr.mxu0 0.0
  %2770 = vmatpush1.msra.mxu0 0.0
  %2771 = vmatprep.subr.mxu0 0.0
  %2772 = vmatpush1.msra.mxu0 0.0
  %2773 = vmatprep.subr.mxu0 0.0
  %2774 = vmatpush1.msra.mxu0 0.0
  %2775 = vmatprep.subr.mxu0 0.0
  %2776 = vmatpush1.msra.mxu0 0.0
  %2777 = vmatprep.subr.mxu0 0.0
  %2778 = vmatpush1.msra.mxu0 0.0
  %2779 = vmatprep.subr.mxu0 0.0
  %2780 = vmatpush1.msra.mxu0 0.0
  %2781 = vmatprep.subr.mxu0 0.0
  %2782 = vmatpush1.msra.mxu0 0.0
  %2783 = vmatprep.subr.mxu0 0.0
  %2784 = vmatpush1.msra.mxu0 0.0
  %2785 = vmatprep.subr.mxu0 0.0
  %v2786 = vand.u32 %v2453, 4294901760
  %v2787 = vsub.f32 %v2453, %v2786
  %v2788 = vand.u32 %v2787, 4294901760
  %2789 = vmatpush1.msra.mxu0 %v2788
  %2790 = vmatprep.subr.mxu0 0.0
  %2791 = vmatpush2.msra.mxu0 0.0
  %2792 = vmatprep.subr.mxu0 0.0
  %2793 = vmatpush2.msra.mxu0 0.0
  %2794 = vmatprep.subr.mxu0 0.0
  %2795 = vmatpush2.msra.mxu0 0.0
  %2796 = vmatprep.subr.mxu0 0.0
  %2797 = vmatpush2.msra.mxu0 0.0
  %2798 = vmatprep.subr.mxu0 0.0
  %2799 = vmatpush2.msra.mxu0 0.0
  %2800 = vmatprep.subr.mxu0 0.0
  %2801 = vmatpush2.msra.mxu0 0.0
  %2802 = vmatprep.subr.mxu0 0.0
  %2803 = vmatpush2.msra.mxu0 0.0
  %2804 = vmatprep.subr.mxu0 0.0
  %2805 = vmatpush2.msra.mxu0 0.0
  %2806 = vmatprep.subr.mxu0 0.0
  %2807 = vmatpush2.msra.mxu0 0.0
  %2808 = vmatprep.subr.mxu0 0.0
  %2809 = vmatpush2.msra.mxu0 0.0
  %2810 = vmatprep.subr.mxu0 0.0
  %2811 = vmatpush2.msra.mxu0 0.0
  %2812 = vmatprep.subr.mxu0 0.0
  %2813 = vmatpush2.msra.mxu0 0.0
  %2814 = vmatprep.subr.mxu0 0.0
  %2815 = vmatpush2.msra.mxu0 0.0
  %2816 = vmatprep.subr.mxu0 0.0
  %2817 = vmatpush2.msra.mxu0 0.0
  %2818 = vmatprep.subr.mxu0 0.0
  %2819 = vmatpush2.msra.mxu0 0.0
  %2820 = vmatprep.subr.mxu0 0.0
  %2821 = vmatpush2.msra.mxu0 0.0
  %2822 = vmatprep.mubr.f32.mxu0 0.0
  %v2823 = vand.u32 %v2450, 4294901760
  %2824 = vmatmul.mubr.f32.gmra.mxu0 %v2823
  %v2825 = vpop.f32.mrf.mxu0
  %v2826 = vadd.f32 %v2752, %v2825
  %v2827 = vpop.f32.mrf.mxu0
  %2828 = vdwg.mxu0
  %2829 = vmatprep.subr.mxu0 0.0
  %2830 = vmatpush1.msra.mxu0 0.0
  %2831 = vmatprep.subr.mxu0 0.0
  %2832 = vmatpush1.msra.mxu0 0.0
  %2833 = vmatprep.subr.mxu0 0.0
  %2834 = vmatpush1.msra.mxu0 0.0
  %2835 = vmatprep.subr.mxu0 0.0
  %2836 = vmatpush1.msra.mxu0 0.0
  %2837 = vmatprep.subr.mxu0 0.0
  %2838 = vmatpush1.msra.mxu0 0.0
  %2839 = vmatprep.subr.mxu0 0.0
  %2840 = vmatpush1.msra.mxu0 0.0
  %2841 = vmatprep.subr.mxu0 0.0
  %2842 = vmatpush1.msra.mxu0 0.0
  %2843 = vmatprep.subr.mxu0 0.0
  %2844 = vmatpush1.msra.mxu0 0.0
  %2845 = vmatprep.subr.mxu0 0.0
  %2846 = vmatpush1.msra.mxu0 0.0
  %2847 = vmatprep.subr.mxu0 0.0
  %2848 = vmatpush1.msra.mxu0 0.0
  %2849 = vmatprep.subr.mxu0 0.0
  %2850 = vmatpush1.msra.mxu0 0.0
  %2851 = vmatprep.subr.mxu0 0.0
  %2852 = vmatpush1.msra.mxu0 0.0
  %2853 = vmatprep.subr.mxu0 0.0
  %2854 = vmatpush1.msra.mxu0 0.0
  %2855 = vmatprep.subr.mxu0 0.0
  %2856 = vmatpush1.msra.mxu0 0.0
  %2857 = vmatprep.subr.mxu0 0.0
  %2858 = vmatpush1.msra.mxu0 0.0
  %2859 = vmatprep.subr.mxu0 0.0
  %v2860 = vand.u32 %v2453, 4294901760
  %2861 = vmatpush1.msra.mxu0 %v2860
  %2862 = vmatprep.subr.mxu0 0.0
  %2863 = vmatpush2.msra.mxu0 0.0
  %2864 = vmatprep.subr.mxu0 0.0
  %2865 = vmatpush2.msra.mxu0 0.0
  %2866 = vmatprep.subr.mxu0 0.0
  %2867 = vmatpush2.msra.mxu0 0.0
  %2868 = vmatprep.subr.mxu0 0.0
  %2869 = vmatpush2.msra.mxu0 0.0
  %2870 = vmatprep.subr.mxu0 0.0
  %2871 = vmatpush2.msra.mxu0 0.0
  %2872 = vmatprep.subr.mxu0 0.0
  %2873 = vmatpush2.msra.mxu0 0.0
  %2874 = vmatprep.subr.mxu0 0.0
  %2875 = vmatpush2.msra.mxu0 0.0
  %2876 = vmatprep.subr.mxu0 0.0
  %2877 = vmatpush2.msra.mxu0 0.0
  %2878 = vmatprep.subr.mxu0 0.0
  %2879 = vmatpush2.msra.mxu0 0.0
  %2880 = vmatprep.subr.mxu0 0.0
  %2881 = vmatpush2.msra.mxu0 0.0
  %2882 = vmatprep.subr.mxu0 0.0
  %2883 = vmatpush2.msra.mxu0 0.0
  %2884 = vmatprep.subr.mxu0 0.0
  %2885 = vmatpush2.msra.mxu0 0.0
  %2886 = vmatprep.subr.mxu0 0.0
  %2887 = vmatpush2.msra.mxu0 0.0
  %2888 = vmatprep.subr.mxu0 0.0
  %2889 = vmatpush2.msra.mxu0 0.0
  %2890 = vmatprep.subr.mxu0 0.0
  %2891 = vmatpush2.msra.mxu0 0.0
  %2892 = vmatprep.subr.mxu0 0.0
  %2893 = vmatpush2.msra.mxu0 0.0
  %2894 = vmatprep.mubr.f32.mxu0 0.0
  %v2895 = vand.u32 %v2450, 4294901760
  %2896 = vmatmul.mubr.f32.gmra.mxu0 %v2895
  %v2897 = vpop.f32.mrf.mxu0
  %v2898 = vadd.f32 %v2826, %v2897
  %v2899 = vpop.f32.mrf.mxu0
  %2900 = vdwg.mxu0
  %v2901 = vmul.f32 %v2446, %v2898
  %v2902 = vlaneseq
  %v2903 = vshrl.u32 %v2902, 7
  %v2904 = vsub.s32 0, %v2903
  %v2905 = vrot.slane %v10, %v2904
  %v2906 = vsub.f32 %v2905, %v2901
  %vm2907 = vcmask 15360
  %v2909 = vsel %vm2907, %v23, 0
  %v2912 = vsel %vm2907, %v24, 0
  %vm2914 = vcmask 1041408
  %v2916 = vsel %vm2914, %v2898, 0
  %2918 = vmatprep.subr.mxu0 0.0
  %2919 = vmatpush1.msra.mxu0 0.0
  %2920 = vmatprep.subr.mxu0 0.0
  %2921 = vmatpush1.msra.mxu0 0.0
  %2922 = vmatprep.subr.mxu0 0.0
  %2923 = vmatpush1.msra.mxu0 0.0
  %2924 = vmatprep.subr.mxu0 0.0
  %2925 = vmatpush1.msra.mxu0 0.0
  %2926 = vmatprep.subr.mxu0 0.0
  %2927 = vmatpush1.msra.mxu0 0.0
  %2928 = vmatprep.subr.mxu0 0.0
  %2929 = vmatpush1.msra.mxu0 0.0
  %2930 = vmatprep.subr.mxu0 0.0
  %2931 = vmatpush1.msra.mxu0 0.0
  %2932 = vmatprep.subr.mxu0 0.0
  %2933 = vmatpush1.msra.mxu0 0.0
  %2934 = vmatprep.subr.mxu0 0.0
  %2935 = vmatpush1.msra.mxu0 0.0
  %2936 = vmatprep.subr.mxu0 0.0
  %2937 = vmatpush1.msra.mxu0 0.0
  %2938 = vmatprep.subr.mxu0 0.0
  %2939 = vmatpush1.msra.mxu0 0.0
  %2940 = vmatprep.subr.mxu0 0.0
  %2941 = vmatpush1.msra.mxu0 0.0
  %2942 = vmatprep.subr.mxu0 0.0
  %2943 = vmatpush1.msra.mxu0 0.0
  %2944 = vmatprep.subr.mxu0 0.0
  %2945 = vmatpush1.msra.mxu0 0.0
  %2946 = vmatprep.subr.mxu0 0.0
  %2947 = vmatpush1.msra.mxu0 0.0
  %2948 = vmatprep.subr.mxu0 0.0
  %v2949 = vand.u32 %v2916, 4294901760
  %2950 = vmatpush1.msra.mxu0 %v2949
  %2951 = vmatprep.subr.mxu0 0.0
  %2952 = vmatpush2.msra.mxu0 0.0
  %2953 = vmatprep.subr.mxu0 0.0
  %2954 = vmatpush2.msra.mxu0 0.0
  %2955 = vmatprep.subr.mxu0 0.0
  %2956 = vmatpush2.msra.mxu0 0.0
  %2957 = vmatprep.subr.mxu0 0.0
  %2958 = vmatpush2.msra.mxu0 0.0
  %2959 = vmatprep.subr.mxu0 0.0
  %2960 = vmatpush2.msra.mxu0 0.0
  %2961 = vmatprep.subr.mxu0 0.0
  %2962 = vmatpush2.msra.mxu0 0.0
  %2963 = vmatprep.subr.mxu0 0.0
  %2964 = vmatpush2.msra.mxu0 0.0
  %2965 = vmatprep.subr.mxu0 0.0
  %2966 = vmatpush2.msra.mxu0 0.0
  %2967 = vmatprep.subr.mxu0 0.0
  %2968 = vmatpush2.msra.mxu0 0.0
  %2969 = vmatprep.subr.mxu0 0.0
  %2970 = vmatpush2.msra.mxu0 0.0
  %2971 = vmatprep.subr.mxu0 0.0
  %2972 = vmatpush2.msra.mxu0 0.0
  %2973 = vmatprep.subr.mxu0 0.0
  %2974 = vmatpush2.msra.mxu0 0.0
  %2975 = vmatprep.subr.mxu0 0.0
  %2976 = vmatpush2.msra.mxu0 0.0
  %2977 = vmatprep.subr.mxu0 0.0
  %2978 = vmatpush2.msra.mxu0 0.0
  %2979 = vmatprep.subr.mxu0 0.0
  %2980 = vmatpush2.msra.mxu0 0.0
  %2981 = vmatprep.subr.mxu0 0.0
  %2982 = vmatpush2.msra.mxu0 0.0
  %2983 = vmatprep.mubr.f32.mxu0 0.0
  %v2984 = vand.u32 %v2909, 4294901760
  %v2985 = vsub.f32 %v2909, %v2984
  %v2986 = vand.u32 %v2985, 4294901760
  %v2987 = vsub.f32 %v2985, %v2986
  %v2988 = vand.u32 %v2987, 4294901760
  %2989 = vmatmul.mubr.f32.gmra.mxu0 %v2988
  %v2990 = vpop.f32.mrf.mxu0
  %v2991 = vadd.f32 0.0, %v2990
  %v2992 = vpop.f32.mrf.mxu0
  %2993 = vmatprep.mubr.f32.mxu0 0.0
  %v2994 = vand.u32 %v2912, 4294901760
  %v2995 = vsub.f32 %v2912, %v2994
  %v2996 = vand.u32 %v2995, 4294901760
  %v2997 = vsub.f32 %v2995, %v2996
  %v2998 = vand.u32 %v2997, 4294901760
  %2999 = vmatmul.mubr.f32.gmra.mxu0 %v2998
  %v3000 = vpop.f32.mrf.mxu0
  %v3001 = vadd.f32 0.0, %v3000
  %v3002 = vpop.f32.mrf.mxu0
  %3003 = vdwg.mxu0
  %3004 = vmatprep.subr.mxu0 0.0
  %3005 = vmatpush1.msra.mxu0 0.0
  %3006 = vmatprep.subr.mxu0 0.0
  %3007 = vmatpush1.msra.mxu0 0.0
  %3008 = vmatprep.subr.mxu0 0.0
  %3009 = vmatpush1.msra.mxu0 0.0
  %3010 = vmatprep.subr.mxu0 0.0
  %3011 = vmatpush1.msra.mxu0 0.0
  %3012 = vmatprep.subr.mxu0 0.0
  %3013 = vmatpush1.msra.mxu0 0.0
  %3014 = vmatprep.subr.mxu0 0.0
  %3015 = vmatpush1.msra.mxu0 0.0
  %3016 = vmatprep.subr.mxu0 0.0
  %3017 = vmatpush1.msra.mxu0 0.0
  %3018 = vmatprep.subr.mxu0 0.0
  %3019 = vmatpush1.msra.mxu0 0.0
  %3020 = vmatprep.subr.mxu0 0.0
  %3021 = vmatpush1.msra.mxu0 0.0
  %3022 = vmatprep.subr.mxu0 0.0
  %3023 = vmatpush1.msra.mxu0 0.0
  %3024 = vmatprep.subr.mxu0 0.0
  %3025 = vmatpush1.msra.mxu0 0.0
  %3026 = vmatprep.subr.mxu0 0.0
  %3027 = vmatpush1.msra.mxu0 0.0
  %3028 = vmatprep.subr.mxu0 0.0
  %3029 = vmatpush1.msra.mxu0 0.0
  %3030 = vmatprep.subr.mxu0 0.0
  %3031 = vmatpush1.msra.mxu0 0.0
  %3032 = vmatprep.subr.mxu0 0.0
  %3033 = vmatpush1.msra.mxu0 0.0
  %3034 = vmatprep.subr.mxu0 0.0
  %v3035 = vand.u32 %v2916, 4294901760
  %v3036 = vsub.f32 %v2916, %v3035
  %v3037 = vand.u32 %v3036, 4294901760
  %v3038 = vsub.f32 %v3036, %v3037
  %v3039 = vand.u32 %v3038, 4294901760
  %3040 = vmatpush1.msra.mxu0 %v3039
  %3041 = vmatprep.subr.mxu0 0.0
  %3042 = vmatpush2.msra.mxu0 0.0
  %3043 = vmatprep.subr.mxu0 0.0
  %3044 = vmatpush2.msra.mxu0 0.0
  %3045 = vmatprep.subr.mxu0 0.0
  %3046 = vmatpush2.msra.mxu0 0.0
  %3047 = vmatprep.subr.mxu0 0.0
  %3048 = vmatpush2.msra.mxu0 0.0
  %3049 = vmatprep.subr.mxu0 0.0
  %3050 = vmatpush2.msra.mxu0 0.0
  %3051 = vmatprep.subr.mxu0 0.0
  %3052 = vmatpush2.msra.mxu0 0.0
  %3053 = vmatprep.subr.mxu0 0.0
  %3054 = vmatpush2.msra.mxu0 0.0
  %3055 = vmatprep.subr.mxu0 0.0
  %3056 = vmatpush2.msra.mxu0 0.0
  %3057 = vmatprep.subr.mxu0 0.0
  %3058 = vmatpush2.msra.mxu0 0.0
  %3059 = vmatprep.subr.mxu0 0.0
  %3060 = vmatpush2.msra.mxu0 0.0
  %3061 = vmatprep.subr.mxu0 0.0
  %3062 = vmatpush2.msra.mxu0 0.0
  %3063 = vmatprep.subr.mxu0 0.0
  %3064 = vmatpush2.msra.mxu0 0.0
  %3065 = vmatprep.subr.mxu0 0.0
  %3066 = vmatpush2.msra.mxu0 0.0
  %3067 = vmatprep.subr.mxu0 0.0
  %3068 = vmatpush2.msra.mxu0 0.0
  %3069 = vmatprep.subr.mxu0 0.0
  %3070 = vmatpush2.msra.mxu0 0.0
  %3071 = vmatprep.subr.mxu0 0.0
  %3072 = vmatpush2.msra.mxu0 0.0
  %3073 = vmatprep.mubr.f32.mxu0 0.0
  %v3074 = vand.u32 %v2909, 4294901760
  %3075 = vmatmul.mubr.f32.gmra.mxu0 %v3074
  %v3076 = vpop.f32.mrf.mxu0
  %v3077 = vadd.f32 %v2991, %v3076
  %v3078 = vpop.f32.mrf.mxu0
  %3079 = vmatprep.mubr.f32.mxu0 0.0
  %v3080 = vand.u32 %v2912, 4294901760
  %3081 = vmatmul.mubr.f32.gmra.mxu0 %v3080
  %v3082 = vpop.f32.mrf.mxu0
  %v3083 = vadd.f32 %v3001, %v3082
  %v3084 = vpop.f32.mrf.mxu0
  %3085 = vdwg.mxu0
  %3086 = vmatprep.subr.mxu0 0.0
  %3087 = vmatpush1.msra.mxu0 0.0
  %3088 = vmatprep.subr.mxu0 0.0
  %3089 = vmatpush1.msra.mxu0 0.0
  %3090 = vmatprep.subr.mxu0 0.0
  %3091 = vmatpush1.msra.mxu0 0.0
  %3092 = vmatprep.subr.mxu0 0.0
  %3093 = vmatpush1.msra.mxu0 0.0
  %3094 = vmatprep.subr.mxu0 0.0
  %3095 = vmatpush1.msra.mxu0 0.0
  %3096 = vmatprep.subr.mxu0 0.0
  %3097 = vmatpush1.msra.mxu0 0.0
  %3098 = vmatprep.subr.mxu0 0.0
  %3099 = vmatpush1.msra.mxu0 0.0
  %3100 = vmatprep.subr.mxu0 0.0
  %3101 = vmatpush1.msra.mxu0 0.0
  %3102 = vmatprep.subr.mxu0 0.0
  %3103 = vmatpush1.msra.mxu0 0.0
  %3104 = vmatprep.subr.mxu0 0.0
  %3105 = vmatpush1.msra.mxu0 0.0
  %3106 = vmatprep.subr.mxu0 0.0
  %3107 = vmatpush1.msra.mxu0 0.0
  %3108 = vmatprep.subr.mxu0 0.0
  %3109 = vmatpush1.msra.mxu0 0.0
  %3110 = vmatprep.subr.mxu0 0.0
  %3111 = vmatpush1.msra.mxu0 0.0
  %3112 = vmatprep.subr.mxu0 0.0
  %3113 = vmatpush1.msra.mxu0 0.0
  %3114 = vmatprep.subr.mxu0 0.0
  %3115 = vmatpush1.msra.mxu0 0.0
  %3116 = vmatprep.subr.mxu0 0.0
  %v3117 = vand.u32 %v2916, 4294901760
  %v3118 = vsub.f32 %v2916, %v3117
  %3119 = vmatpush1.msra.mxu0 %v3118
  %3120 = vmatprep.subr.mxu0 0.0
  %3121 = vmatpush2.msra.mxu0 0.0
  %3122 = vmatprep.subr.mxu0 0.0
  %3123 = vmatpush2.msra.mxu0 0.0
  %3124 = vmatprep.subr.mxu0 0.0
  %3125 = vmatpush2.msra.mxu0 0.0
  %3126 = vmatprep.subr.mxu0 0.0
  %3127 = vmatpush2.msra.mxu0 0.0
  %3128 = vmatprep.subr.mxu0 0.0
  %3129 = vmatpush2.msra.mxu0 0.0
  %3130 = vmatprep.subr.mxu0 0.0
  %3131 = vmatpush2.msra.mxu0 0.0
  %3132 = vmatprep.subr.mxu0 0.0
  %3133 = vmatpush2.msra.mxu0 0.0
  %3134 = vmatprep.subr.mxu0 0.0
  %3135 = vmatpush2.msra.mxu0 0.0
  %3136 = vmatprep.subr.mxu0 0.0
  %3137 = vmatpush2.msra.mxu0 0.0
  %3138 = vmatprep.subr.mxu0 0.0
  %3139 = vmatpush2.msra.mxu0 0.0
  %3140 = vmatprep.subr.mxu0 0.0
  %3141 = vmatpush2.msra.mxu0 0.0
  %3142 = vmatprep.subr.mxu0 0.0
  %3143 = vmatpush2.msra.mxu0 0.0
  %3144 = vmatprep.subr.mxu0 0.0
  %3145 = vmatpush2.msra.mxu0 0.0
  %3146 = vmatprep.subr.mxu0 0.0
  %3147 = vmatpush2.msra.mxu0 0.0
  %3148 = vmatprep.subr.mxu0 0.0
  %3149 = vmatpush2.msra.mxu0 0.0
  %3150 = vmatprep.subr.mxu0 0.0
  %3151 = vmatpush2.msra.mxu0 0.0
  %3152 = vmatprep.mubr.f32.mxu0 0.0
  %v3153 = vand.u32 %v2909, 4294901760
  %v3154 = vsub.f32 %v2909, %v3153
  %3155 = vmatmul.mubr.f32.gmra.mxu0 %v3154
  %v3156 = vpop.f32.mrf.mxu0
  %v3157 = vadd.f32 %v3077, %v3156
  %v3158 = vpop.f32.mrf.mxu0
  %3159 = vmatprep.mubr.f32.mxu0 0.0
  %v3160 = vand.u32 %v2912, 4294901760
  %v3161 = vsub.f32 %v2912, %v3160
  %3162 = vmatmul.mubr.f32.gmra.mxu0 %v3161
  %v3163 = vpop.f32.mrf.mxu0
  %v3164 = vadd.f32 %v3083, %v3163
  %v3165 = vpop.f32.mrf.mxu0
  %3166 = vdwg.mxu0
  %3167 = vmatprep.subr.mxu0 0.0
  %3168 = vmatpush1.msra.mxu0 0.0
  %3169 = vmatprep.subr.mxu0 0.0
  %3170 = vmatpush1.msra.mxu0 0.0
  %3171 = vmatprep.subr.mxu0 0.0
  %3172 = vmatpush1.msra.mxu0 0.0
  %3173 = vmatprep.subr.mxu0 0.0
  %3174 = vmatpush1.msra.mxu0 0.0
  %3175 = vmatprep.subr.mxu0 0.0
  %3176 = vmatpush1.msra.mxu0 0.0
  %3177 = vmatprep.subr.mxu0 0.0
  %3178 = vmatpush1.msra.mxu0 0.0
  %3179 = vmatprep.subr.mxu0 0.0
  %3180 = vmatpush1.msra.mxu0 0.0
  %3181 = vmatprep.subr.mxu0 0.0
  %3182 = vmatpush1.msra.mxu0 0.0
  %3183 = vmatprep.subr.mxu0 0.0
  %3184 = vmatpush1.msra.mxu0 0.0
  %3185 = vmatprep.subr.mxu0 0.0
  %3186 = vmatpush1.msra.mxu0 0.0
  %3187 = vmatprep.subr.mxu0 0.0
  %3188 = vmatpush1.msra.mxu0 0.0
  %3189 = vmatprep.subr.mxu0 0.0
  %3190 = vmatpush1.msra.mxu0 0.0
  %3191 = vmatprep.subr.mxu0 0.0
  %3192 = vmatpush1.msra.mxu0 0.0
  %3193 = vmatprep.subr.mxu0 0.0
  %3194 = vmatpush1.msra.mxu0 0.0
  %3195 = vmatprep.subr.mxu0 0.0
  %3196 = vmatpush1.msra.mxu0 0.0
  %3197 = vmatprep.subr.mxu0 0.0
  %v3198 = vand.u32 %v2916, 4294901760
  %3199 = vmatpush1.msra.mxu0 %v3198
  %3200 = vmatprep.subr.mxu0 0.0
  %3201 = vmatpush2.msra.mxu0 0.0
  %3202 = vmatprep.subr.mxu0 0.0
  %3203 = vmatpush2.msra.mxu0 0.0
  %3204 = vmatprep.subr.mxu0 0.0
  %3205 = vmatpush2.msra.mxu0 0.0
  %3206 = vmatprep.subr.mxu0 0.0
  %3207 = vmatpush2.msra.mxu0 0.0
  %3208 = vmatprep.subr.mxu0 0.0
  %3209 = vmatpush2.msra.mxu0 0.0
  %3210 = vmatprep.subr.mxu0 0.0
  %3211 = vmatpush2.msra.mxu0 0.0
  %3212 = vmatprep.subr.mxu0 0.0
  %3213 = vmatpush2.msra.mxu0 0.0
  %3214 = vmatprep.subr.mxu0 0.0
  %3215 = vmatpush2.msra.mxu0 0.0
  %3216 = vmatprep.subr.mxu0 0.0
  %3217 = vmatpush2.msra.mxu0 0.0
  %3218 = vmatprep.subr.mxu0 0.0
  %3219 = vmatpush2.msra.mxu0 0.0
  %3220 = vmatprep.subr.mxu0 0.0
  %3221 = vmatpush2.msra.mxu0 0.0
  %3222 = vmatprep.subr.mxu0 0.0
  %3223 = vmatpush2.msra.mxu0 0.0
  %3224 = vmatprep.subr.mxu0 0.0
  %3225 = vmatpush2.msra.mxu0 0.0
  %3226 = vmatprep.subr.mxu0 0.0
  %3227 = vmatpush2.msra.mxu0 0.0
  %3228 = vmatprep.subr.mxu0 0.0
  %3229 = vmatpush2.msra.mxu0 0.0
  %3230 = vmatprep.subr.mxu0 0.0
  %3231 = vmatpush2.msra.mxu0 0.0
  %3232 = vmatprep.mubr.f32.mxu0 0.0
  %v3233 = vand.u32 %v2909, 4294901760
  %v3234 = vsub.f32 %v2909, %v3233
  %v3235 = vand.u32 %v3234, 4294901760
  %3236 = vmatmul.mubr.f32.gmra.mxu0 %v3235
  %v3237 = vpop.f32.mrf.mxu0
  %v3238 = vadd.f32 %v3157, %v3237
  %v3239 = vpop.f32.mrf.mxu0
  %3240 = vmatprep.mubr.f32.mxu0 0.0
  %v3241 = vand.u32 %v2912, 4294901760
  %v3242 = vsub.f32 %v2912, %v3241
  %v3243 = vand.u32 %v3242, 4294901760
  %3244 = vmatmul.mubr.f32.gmra.mxu0 %v3243
  %v3245 = vpop.f32.mrf.mxu0
  %v3246 = vadd.f32 %v3164, %v3245
  %v3247 = vpop.f32.mrf.mxu0
  %3248 = vdwg.mxu0
  %3249 = vmatprep.subr.mxu0 0.0
  %3250 = vmatpush1.msra.mxu0 0.0
  %3251 = vmatprep.subr.mxu0 0.0
  %3252 = vmatpush1.msra.mxu0 0.0
  %3253 = vmatprep.subr.mxu0 0.0
  %3254 = vmatpush1.msra.mxu0 0.0
  %3255 = vmatprep.subr.mxu0 0.0
  %3256 = vmatpush1.msra.mxu0 0.0
  %3257 = vmatprep.subr.mxu0 0.0
  %3258 = vmatpush1.msra.mxu0 0.0
  %3259 = vmatprep.subr.mxu0 0.0
  %3260 = vmatpush1.msra.mxu0 0.0
  %3261 = vmatprep.subr.mxu0 0.0
  %3262 = vmatpush1.msra.mxu0 0.0
  %3263 = vmatprep.subr.mxu0 0.0
  %3264 = vmatpush1.msra.mxu0 0.0
  %3265 = vmatprep.subr.mxu0 0.0
  %3266 = vmatpush1.msra.mxu0 0.0
  %3267 = vmatprep.subr.mxu0 0.0
  %3268 = vmatpush1.msra.mxu0 0.0
  %3269 = vmatprep.subr.mxu0 0.0
  %3270 = vmatpush1.msra.mxu0 0.0
  %3271 = vmatprep.subr.mxu0 0.0
  %3272 = vmatpush1.msra.mxu0 0.0
  %3273 = vmatprep.subr.mxu0 0.0
  %3274 = vmatpush1.msra.mxu0 0.0
  %3275 = vmatprep.subr.mxu0 0.0
  %3276 = vmatpush1.msra.mxu0 0.0
  %3277 = vmatprep.subr.mxu0 0.0
  %3278 = vmatpush1.msra.mxu0 0.0
  %3279 = vmatprep.subr.mxu0 0.0
  %v3280 = vand.u32 %v2916, 4294901760
  %v3281 = vsub.f32 %v2916, %v3280
  %v3282 = vand.u32 %v3281, 4294901760
  %3283 = vmatpush1.msra.mxu0 %v3282
  %3284 = vmatprep.subr.mxu0 0.0
  %3285 = vmatpush2.msra.mxu0 0.0
  %3286 = vmatprep.subr.mxu0 0.0
  %3287 = vmatpush2.msra.mxu0 0.0
  %3288 = vmatprep.subr.mxu0 0.0
  %3289 = vmatpush2.msra.mxu0 0.0
  %3290 = vmatprep.subr.mxu0 0.0
  %3291 = vmatpush2.msra.mxu0 0.0
  %3292 = vmatprep.subr.mxu0 0.0
  %3293 = vmatpush2.msra.mxu0 0.0
  %3294 = vmatprep.subr.mxu0 0.0
  %3295 = vmatpush2.msra.mxu0 0.0
  %3296 = vmatprep.subr.mxu0 0.0
  %3297 = vmatpush2.msra.mxu0 0.0
  %3298 = vmatprep.subr.mxu0 0.0
  %3299 = vmatpush2.msra.mxu0 0.0
  %3300 = vmatprep.subr.mxu0 0.0
  %3301 = vmatpush2.msra.mxu0 0.0
  %3302 = vmatprep.subr.mxu0 0.0
  %3303 = vmatpush2.msra.mxu0 0.0
  %3304 = vmatprep.subr.mxu0 0.0
  %3305 = vmatpush2.msra.mxu0 0.0
  %3306 = vmatprep.subr.mxu0 0.0
  %3307 = vmatpush2.msra.mxu0 0.0
  %3308 = vmatprep.subr.mxu0 0.0
  %3309 = vmatpush2.msra.mxu0 0.0
  %3310 = vmatprep.subr.mxu0 0.0
  %3311 = vmatpush2.msra.mxu0 0.0
  %3312 = vmatprep.subr.mxu0 0.0
  %3313 = vmatpush2.msra.mxu0 0.0
  %3314 = vmatprep.subr.mxu0 0.0
  %3315 = vmatpush2.msra.mxu0 0.0
  %3316 = vmatprep.mubr.f32.mxu0 0.0
  %v3317 = vand.u32 %v2909, 4294901760
  %3318 = vmatmul.mubr.f32.gmra.mxu0 %v3317
  %v3319 = vpop.f32.mrf.mxu0
  %v3320 = vadd.f32 %v3238, %v3319
  %v3321 = vpop.f32.mrf.mxu0
  %3322 = vmatprep.mubr.f32.mxu0 0.0
  %v3323 = vand.u32 %v2912, 4294901760
  %3324 = vmatmul.mubr.f32.gmra.mxu0 %v3323
  %v3325 = vpop.f32.mrf.mxu0
  %v3326 = vadd.f32 %v3246, %v3325
  %v3327 = vpop.f32.mrf.mxu0
  %3328 = vdwg.mxu0
  %3329 = vmatprep.subr.mxu0 0.0
  %3330 = vmatpush1.msra.mxu0 0.0
  %3331 = vmatprep.subr.mxu0 0.0
  %3332 = vmatpush1.msra.mxu0 0.0
  %3333 = vmatprep.subr.mxu0 0.0
  %3334 = vmatpush1.msra.mxu0 0.0
  %3335 = vmatprep.subr.mxu0 0.0
  %3336 = vmatpush1.msra.mxu0 0.0
  %3337 = vmatprep.subr.mxu0 0.0
  %3338 = vmatpush1.msra.mxu0 0.0
  %3339 = vmatprep.subr.mxu0 0.0
  %3340 = vmatpush1.msra.mxu0 0.0
  %3341 = vmatprep.subr.mxu0 0.0
  %3342 = vmatpush1.msra.mxu0 0.0
  %3343 = vmatprep.subr.mxu0 0.0
  %3344 = vmatpush1.msra.mxu0 0.0
  %3345 = vmatprep.subr.mxu0 0.0
  %3346 = vmatpush1.msra.mxu0 0.0
  %3347 = vmatprep.subr.mxu0 0.0
  %3348 = vmatpush1.msra.mxu0 0.0
  %3349 = vmatprep.subr.mxu0 0.0
  %3350 = vmatpush1.msra.mxu0 0.0
  %3351 = vmatprep.subr.mxu0 0.0
  %3352 = vmatpush1.msra.mxu0 0.0
  %3353 = vmatprep.subr.mxu0 0.0
  %3354 = vmatpush1.msra.mxu0 0.0
  %3355 = vmatprep.subr.mxu0 0.0
  %3356 = vmatpush1.msra.mxu0 0.0
  %3357 = vmatprep.subr.mxu0 0.0
  %3358 = vmatpush1.msra.mxu0 0.0
  %3359 = vmatprep.subr.mxu0 0.0
  %v3360 = vand.u32 %v2916, 4294901760
  %3361 = vmatpush1.msra.mxu0 %v3360
  %3362 = vmatprep.subr.mxu0 0.0
  %3363 = vmatpush2.msra.mxu0 0.0
  %3364 = vmatprep.subr.mxu0 0.0
  %3365 = vmatpush2.msra.mxu0 0.0
  %3366 = vmatprep.subr.mxu0 0.0
  %3367 = vmatpush2.msra.mxu0 0.0
  %3368 = vmatprep.subr.mxu0 0.0
  %3369 = vmatpush2.msra.mxu0 0.0
  %3370 = vmatprep.subr.mxu0 0.0
  %3371 = vmatpush2.msra.mxu0 0.0
  %3372 = vmatprep.subr.mxu0 0.0
  %3373 = vmatpush2.msra.mxu0 0.0
  %3374 = vmatprep.subr.mxu0 0.0
  %3375 = vmatpush2.msra.mxu0 0.0
  %3376 = vmatprep.subr.mxu0 0.0
  %3377 = vmatpush2.msra.mxu0 0.0
  %3378 = vmatprep.subr.mxu0 0.0
  %3379 = vmatpush2.msra.mxu0 0.0
  %3380 = vmatprep.subr.mxu0 0.0
  %3381 = vmatpush2.msra.mxu0 0.0
  %3382 = vmatprep.subr.mxu0 0.0
  %3383 = vmatpush2.msra.mxu0 0.0
  %3384 = vmatprep.subr.mxu0 0.0
  %3385 = vmatpush2.msra.mxu0 0.0
  %3386 = vmatprep.subr.mxu0 0.0
  %3387 = vmatpush2.msra.mxu0 0.0
  %3388 = vmatprep.subr.mxu0 0.0
  %3389 = vmatpush2.msra.mxu0 0.0
  %3390 = vmatprep.subr.mxu0 0.0
  %3391 = vmatpush2.msra.mxu0 0.0
  %3392 = vmatprep.subr.mxu0 0.0
  %3393 = vmatpush2.msra.mxu0 0.0
  %3394 = vmatprep.mubr.f32.mxu0 0.0
  %v3395 = vand.u32 %v2909, 4294901760
  %3396 = vmatmul.mubr.f32.gmra.mxu0 %v3395
  %v3397 = vpop.f32.mrf.mxu0
  %v3398 = vadd.f32 %v3320, %v3397
  %v3399 = vpop.f32.mrf.mxu0
  %3400 = vmatprep.mubr.f32.mxu0 0.0
  %v3401 = vand.u32 %v2912, 4294901760
  %3402 = vmatmul.mubr.f32.gmra.mxu0 %v3401
  %v3403 = vpop.f32.mrf.mxu0
  %v3404 = vadd.f32 %v3326, %v3403
  %v3405 = vpop.f32.mrf.mxu0
  %3406 = vdwg.mxu0
  %v3408 = vsel %vm2914, %v2906, 0
  %3410 = vmatprep.subr.mxu0 0.0
  %3411 = vmatpush1.msra.mxu0 0.0
  %3412 = vmatprep.subr.mxu0 0.0
  %3413 = vmatpush1.msra.mxu0 0.0
  %3414 = vmatprep.subr.mxu0 0.0
  %3415 = vmatpush1.msra.mxu0 0.0
  %3416 = vmatprep.subr.mxu0 0.0
  %3417 = vmatpush1.msra.mxu0 0.0
  %3418 = vmatprep.subr.mxu0 0.0
  %3419 = vmatpush1.msra.mxu0 0.0
  %3420 = vmatprep.subr.mxu0 0.0
  %3421 = vmatpush1.msra.mxu0 0.0
  %3422 = vmatprep.subr.mxu0 0.0
  %3423 = vmatpush1.msra.mxu0 0.0
  %3424 = vmatprep.subr.mxu0 0.0
  %3425 = vmatpush1.msra.mxu0 0.0
  %3426 = vmatprep.subr.mxu0 0.0
  %3427 = vmatpush1.msra.mxu0 0.0
  %3428 = vmatprep.subr.mxu0 0.0
  %3429 = vmatpush1.msra.mxu0 0.0
  %3430 = vmatprep.subr.mxu0 0.0
  %3431 = vmatpush1.msra.mxu0 0.0
  %3432 = vmatprep.subr.mxu0 0.0
  %3433 = vmatpush1.msra.mxu0 0.0
  %3434 = vmatprep.subr.mxu0 0.0
  %3435 = vmatpush1.msra.mxu0 0.0
  %3436 = vmatprep.subr.mxu0 0.0
  %3437 = vmatpush1.msra.mxu0 0.0
  %3438 = vmatprep.subr.mxu0 0.0
  %3439 = vmatpush1.msra.mxu0 0.0
  %3440 = vmatprep.subr.mxu0 0.0
  %v3441 = vand.u32 %v3408, 4294901760
  %3442 = vmatpush1.msra.mxu0 %v3441
  %3443 = vmatprep.subr.mxu0 0.0
  %3444 = vmatpush2.msra.mxu0 0.0
  %3445 = vmatprep.subr.mxu0 0.0
  %3446 = vmatpush2.msra.mxu0 0.0
  %3447 = vmatprep.subr.mxu0 0.0
  %3448 = vmatpush2.msra.mxu0 0.0
  %3449 = vmatprep.subr.mxu0 0.0
  %3450 = vmatpush2.msra.mxu0 0.0
  %3451 = vmatprep.subr.mxu0 0.0
  %3452 = vmatpush2.msra.mxu0 0.0
  %3453 = vmatprep.subr.mxu0 0.0
  %3454 = vmatpush2.msra.mxu0 0.0
  %3455 = vmatprep.subr.mxu0 0.0
  %3456 = vmatpush2.msra.mxu0 0.0
  %3457 = vmatprep.subr.mxu0 0.0
  %3458 = vmatpush2.msra.mxu0 0.0
  %3459 = vmatprep.subr.mxu0 0.0
  %3460 = vmatpush2.msra.mxu0 0.0
  %3461 = vmatprep.subr.mxu0 0.0
  %3462 = vmatpush2.msra.mxu0 0.0
  %3463 = vmatprep.subr.mxu0 0.0
  %3464 = vmatpush2.msra.mxu0 0.0
  %3465 = vmatprep.subr.mxu0 0.0
  %3466 = vmatpush2.msra.mxu0 0.0
  %3467 = vmatprep.subr.mxu0 0.0
  %3468 = vmatpush2.msra.mxu0 0.0
  %3469 = vmatprep.subr.mxu0 0.0
  %3470 = vmatpush2.msra.mxu0 0.0
  %3471 = vmatprep.subr.mxu0 0.0
  %3472 = vmatpush2.msra.mxu0 0.0
  %3473 = vmatprep.subr.mxu0 0.0
  %3474 = vmatpush2.msra.mxu0 0.0
  %3475 = vmatprep.mubr.f32.mxu0 0.0
  %v3476 = vand.u32 %v2909, 4294901760
  %v3477 = vsub.f32 %v2909, %v3476
  %v3478 = vand.u32 %v3477, 4294901760
  %v3479 = vsub.f32 %v3477, %v3478
  %v3480 = vand.u32 %v3479, 4294901760
  %3481 = vmatmul.mubr.f32.gmra.mxu0 %v3480
  %v3482 = vpop.f32.mrf.mxu0
  %v3483 = vadd.f32 0.0, %v3482
  %v3484 = vpop.f32.mrf.mxu0
  %3485 = vmatprep.mubr.f32.mxu0 0.0
  %v3486 = vand.u32 %v2912, 4294901760
  %v3487 = vsub.f32 %v2912, %v3486
  %v3488 = vand.u32 %v3487, 4294901760
  %v3489 = vsub.f32 %v3487, %v3488
  %v3490 = vand.u32 %v3489, 4294901760
  %3491 = vmatmul.mubr.f32.gmra.mxu0 %v3490
  %v3492 = vpop.f32.mrf.mxu0
  %v3493 = vadd.f32 0.0, %v3492
  %v3494 = vpop.f32.mrf.mxu0
  %3495 = vdwg.mxu0
  %3496 = vmatprep.subr.mxu0 0.0
  %3497 = vmatpush1.msra.mxu0 0.0
  %3498 = vmatprep.subr.mxu0 0.0
  %3499 = vmatpush1.msra.mxu0 0.0
  %3500 = vmatprep.subr.mxu0 0.0
  %3501 = vmatpush1.msra.mxu0 0.0
  %3502 = vmatprep.subr.mxu0 0.0
  %3503 = vmatpush1.msra.mxu0 0.0
  %3504 = vmatprep.subr.mxu0 0.0
  %3505 = vmatpush1.msra.mxu0 0.0
  %3506 = vmatprep.subr.mxu0 0.0
  %3507 = vmatpush1.msra.mxu0 0.0
  %3508 = vmatprep.subr.mxu0 0.0
  %3509 = vmatpush1.msra.mxu0 0.0
  %3510 = vmatprep.subr.mxu0 0.0
  %3511 = vmatpush1.msra.mxu0 0.0
  %3512 = vmatprep.subr.mxu0 0.0
  %3513 = vmatpush1.msra.mxu0 0.0
  %3514 = vmatprep.subr.mxu0 0.0
  %3515 = vmatpush1.msra.mxu0 0.0
  %3516 = vmatprep.subr.mxu0 0.0
  %3517 = vmatpush1.msra.mxu0 0.0
  %3518 = vmatprep.subr.mxu0 0.0
  %3519 = vmatpush1.msra.mxu0 0.0
  %3520 = vmatprep.subr.mxu0 0.0
  %3521 = vmatpush1.msra.mxu0 0.0
  %3522 = vmatprep.subr.mxu0 0.0
  %3523 = vmatpush1.msra.mxu0 0.0
  %3524 = vmatprep.subr.mxu0 0.0
  %3525 = vmatpush1.msra.mxu0 0.0
  %3526 = vmatprep.subr.mxu0 0.0
  %v3527 = vand.u32 %v3408, 4294901760
  %v3528 = vsub.f32 %v3408, %v3527
  %v3529 = vand.u32 %v3528, 4294901760
  %v3530 = vsub.f32 %v3528, %v3529
  %v3531 = vand.u32 %v3530, 4294901760
  %3532 = vmatpush1.msra.mxu0 %v3531
  %3533 = vmatprep.subr.mxu0 0.0
  %3534 = vmatpush2.msra.mxu0 0.0
  %3535 = vmatprep.subr.mxu0 0.0
  %3536 = vmatpush2.msra.mxu0 0.0
  %3537 = vmatprep.subr.mxu0 0.0
  %3538 = vmatpush2.msra.mxu0 0.0
  %3539 = vmatprep.subr.mxu0 0.0
  %3540 = vmatpush2.msra.mxu0 0.0
  %3541 = vmatprep.subr.mxu0 0.0
  %3542 = vmatpush2.msra.mxu0 0.0
  %3543 = vmatprep.subr.mxu0 0.0
  %3544 = vmatpush2.msra.mxu0 0.0
  %3545 = vmatprep.subr.mxu0 0.0
  %3546 = vmatpush2.msra.mxu0 0.0
  %3547 = vmatprep.subr.mxu0 0.0
  %3548 = vmatpush2.msra.mxu0 0.0
  %3549 = vmatprep.subr.mxu0 0.0
  %3550 = vmatpush2.msra.mxu0 0.0
  %3551 = vmatprep.subr.mxu0 0.0
  %3552 = vmatpush2.msra.mxu0 0.0
  %3553 = vmatprep.subr.mxu0 0.0
  %3554 = vmatpush2.msra.mxu0 0.0
  %3555 = vmatprep.subr.mxu0 0.0
  %3556 = vmatpush2.msra.mxu0 0.0
  %3557 = vmatprep.subr.mxu0 0.0
  %3558 = vmatpush2.msra.mxu0 0.0
  %3559 = vmatprep.subr.mxu0 0.0
  %3560 = vmatpush2.msra.mxu0 0.0
  %3561 = vmatprep.subr.mxu0 0.0
  %3562 = vmatpush2.msra.mxu0 0.0
  %3563 = vmatprep.subr.mxu0 0.0
  %3564 = vmatpush2.msra.mxu0 0.0
  %3565 = vmatprep.mubr.f32.mxu0 0.0
  %v3566 = vand.u32 %v2909, 4294901760
  %3567 = vmatmul.mubr.f32.gmra.mxu0 %v3566
  %v3568 = vpop.f32.mrf.mxu0
  %v3569 = vadd.f32 %v3483, %v3568
  %v3570 = vpop.f32.mrf.mxu0
  %3571 = vmatprep.mubr.f32.mxu0 0.0
  %v3572 = vand.u32 %v2912, 4294901760
  %3573 = vmatmul.mubr.f32.gmra.mxu0 %v3572
  %v3574 = vpop.f32.mrf.mxu0
  %v3575 = vadd.f32 %v3493, %v3574
  %v3576 = vpop.f32.mrf.mxu0
  %3577 = vdwg.mxu0
  %3578 = vmatprep.subr.mxu0 0.0
  %3579 = vmatpush1.msra.mxu0 0.0
  %3580 = vmatprep.subr.mxu0 0.0
  %3581 = vmatpush1.msra.mxu0 0.0
  %3582 = vmatprep.subr.mxu0 0.0
  %3583 = vmatpush1.msra.mxu0 0.0
  %3584 = vmatprep.subr.mxu0 0.0
  %3585 = vmatpush1.msra.mxu0 0.0
  %3586 = vmatprep.subr.mxu0 0.0
  %3587 = vmatpush1.msra.mxu0 0.0
  %3588 = vmatprep.subr.mxu0 0.0
  %3589 = vmatpush1.msra.mxu0 0.0
  %3590 = vmatprep.subr.mxu0 0.0
  %3591 = vmatpush1.msra.mxu0 0.0
  %3592 = vmatprep.subr.mxu0 0.0
  %3593 = vmatpush1.msra.mxu0 0.0
  %3594 = vmatprep.subr.mxu0 0.0
  %3595 = vmatpush1.msra.mxu0 0.0
  %3596 = vmatprep.subr.mxu0 0.0
  %3597 = vmatpush1.msra.mxu0 0.0
  %3598 = vmatprep.subr.mxu0 0.0
  %3599 = vmatpush1.msra.mxu0 0.0
  %3600 = vmatprep.subr.mxu0 0.0
  %3601 = vmatpush1.msra.mxu0 0.0
  %3602 = vmatprep.subr.mxu0 0.0
  %3603 = vmatpush1.msra.mxu0 0.0
  %3604 = vmatprep.subr.mxu0 0.0
  %3605 = vmatpush1.msra.mxu0 0.0
  %3606 = vmatprep.subr.mxu0 0.0
  %3607 = vmatpush1.msra.mxu0 0.0
  %3608 = vmatprep.subr.mxu0 0.0
  %v3609 = vand.u32 %v3408, 4294901760
  %v3610 = vsub.f32 %v3408, %v3609
  %3611 = vmatpush1.msra.mxu0 %v3610
  %3612 = vmatprep.subr.mxu0 0.0
  %3613 = vmatpush2.msra.mxu0 0.0
  %3614 = vmatprep.subr.mxu0 0.0
  %3615 = vmatpush2.msra.mxu0 0.0
  %3616 = vmatprep.subr.mxu0 0.0
  %3617 = vmatpush2.msra.mxu0 0.0
  %3618 = vmatprep.subr.mxu0 0.0
  %3619 = vmatpush2.msra.mxu0 0.0
  %3620 = vmatprep.subr.mxu0 0.0
  %3621 = vmatpush2.msra.mxu0 0.0
  %3622 = vmatprep.subr.mxu0 0.0
  %3623 = vmatpush2.msra.mxu0 0.0
  %3624 = vmatprep.subr.mxu0 0.0
  %3625 = vmatpush2.msra.mxu0 0.0
  %3626 = vmatprep.subr.mxu0 0.0
  %3627 = vmatpush2.msra.mxu0 0.0
  %3628 = vmatprep.subr.mxu0 0.0
  %3629 = vmatpush2.msra.mxu0 0.0
  %3630 = vmatprep.subr.mxu0 0.0
  %3631 = vmatpush2.msra.mxu0 0.0
  %3632 = vmatprep.subr.mxu0 0.0
  %3633 = vmatpush2.msra.mxu0 0.0
  %3634 = vmatprep.subr.mxu0 0.0
  %3635 = vmatpush2.msra.mxu0 0.0
  %3636 = vmatprep.subr.mxu0 0.0
  %3637 = vmatpush2.msra.mxu0 0.0
  %3638 = vmatprep.subr.mxu0 0.0
  %3639 = vmatpush2.msra.mxu0 0.0
  %3640 = vmatprep.subr.mxu0 0.0
  %3641 = vmatpush2.msra.mxu0 0.0
  %3642 = vmatprep.subr.mxu0 0.0
  %3643 = vmatpush2.msra.mxu0 0.0
  %3644 = vmatprep.mubr.f32.mxu0 0.0
  %v3645 = vand.u32 %v2909, 4294901760
  %v3646 = vsub.f32 %v2909, %v3645
  %3647 = vmatmul.mubr.f32.gmra.mxu0 %v3646
  %v3648 = vpop.f32.mrf.mxu0
  %v3649 = vadd.f32 %v3569, %v3648
  %v3650 = vpop.f32.mrf.mxu0
  %3651 = vmatprep.mubr.f32.mxu0 0.0
  %v3652 = vand.u32 %v2912, 4294901760
  %v3653 = vsub.f32 %v2912, %v3652
  %3654 = vmatmul.mubr.f32.gmra.mxu0 %v3653
  %v3655 = vpop.f32.mrf.mxu0
  %v3656 = vadd.f32 %v3575, %v3655
  %v3657 = vpop.f32.mrf.mxu0
  %3658 = vdwg.mxu0
  %3659 = vmatprep.subr.mxu0 0.0
  %3660 = vmatpush1.msra.mxu0 0.0
  %3661 = vmatprep.subr.mxu0 0.0
  %3662 = vmatpush1.msra.mxu0 0.0
  %3663 = vmatprep.subr.mxu0 0.0
  %3664 = vmatpush1.msra.mxu0 0.0
  %3665 = vmatprep.subr.mxu0 0.0
  %3666 = vmatpush1.msra.mxu0 0.0
  %3667 = vmatprep.subr.mxu0 0.0
  %3668 = vmatpush1.msra.mxu0 0.0
  %3669 = vmatprep.subr.mxu0 0.0
  %3670 = vmatpush1.msra.mxu0 0.0
  %3671 = vmatprep.subr.mxu0 0.0
  %3672 = vmatpush1.msra.mxu0 0.0
  %3673 = vmatprep.subr.mxu0 0.0
  %3674 = vmatpush1.msra.mxu0 0.0
  %3675 = vmatprep.subr.mxu0 0.0
  %3676 = vmatpush1.msra.mxu0 0.0
  %3677 = vmatprep.subr.mxu0 0.0
  %3678 = vmatpush1.msra.mxu0 0.0
  %3679 = vmatprep.subr.mxu0 0.0
  %3680 = vmatpush1.msra.mxu0 0.0
  %3681 = vmatprep.subr.mxu0 0.0
  %3682 = vmatpush1.msra.mxu0 0.0
  %3683 = vmatprep.subr.mxu0 0.0
  %3684 = vmatpush1.msra.mxu0 0.0
  %3685 = vmatprep.subr.mxu0 0.0
  %3686 = vmatpush1.msra.mxu0 0.0
  %3687 = vmatprep.subr.mxu0 0.0
  %3688 = vmatpush1.msra.mxu0 0.0
  %3689 = vmatprep.subr.mxu0 0.0
  %v3690 = vand.u32 %v3408, 4294901760
  %3691 = vmatpush1.msra.mxu0 %v3690
  %3692 = vmatprep.subr.mxu0 0.0
  %3693 = vmatpush2.msra.mxu0 0.0
  %3694 = vmatprep.subr.mxu0 0.0
  %3695 = vmatpush2.msra.mxu0 0.0
  %3696 = vmatprep.subr.mxu0 0.0
  %3697 = vmatpush2.msra.mxu0 0.0
  %3698 = vmatprep.subr.mxu0 0.0
  %3699 = vmatpush2.msra.mxu0 0.0
  %3700 = vmatprep.subr.mxu0 0.0
  %3701 = vmatpush2.msra.mxu0 0.0
  %3702 = vmatprep.subr.mxu0 0.0
  %3703 = vmatpush2.msra.mxu0 0.0
  %3704 = vmatprep.subr.mxu0 0.0
  %3705 = vmatpush2.msra.mxu0 0.0
  %3706 = vmatprep.subr.mxu0 0.0
  %3707 = vmatpush2.msra.mxu0 0.0
  %3708 = vmatprep.subr.mxu0 0.0
  %3709 = vmatpush2.msra.mxu0 0.0
  %3710 = vmatprep.subr.mxu0 0.0
  %3711 = vmatpush2.msra.mxu0 0.0
  %3712 = vmatprep.subr.mxu0 0.0
  %3713 = vmatpush2.msra.mxu0 0.0
  %3714 = vmatprep.subr.mxu0 0.0
  %3715 = vmatpush2.msra.mxu0 0.0
  %3716 = vmatprep.subr.mxu0 0.0
  %3717 = vmatpush2.msra.mxu0 0.0
  %3718 = vmatprep.subr.mxu0 0.0
  %3719 = vmatpush2.msra.mxu0 0.0
  %3720 = vmatprep.subr.mxu0 0.0
  %3721 = vmatpush2.msra.mxu0 0.0
  %3722 = vmatprep.subr.mxu0 0.0
  %3723 = vmatpush2.msra.mxu0 0.0
  %3724 = vmatprep.mubr.f32.mxu0 0.0
  %v3725 = vand.u32 %v2909, 4294901760
  %v3726 = vsub.f32 %v2909, %v3725
  %v3727 = vand.u32 %v3726, 4294901760
  %3728 = vmatmul.mubr.f32.gmra.mxu0 %v3727
  %v3729 = vpop.f32.mrf.mxu0
  %v3730 = vadd.f32 %v3649, %v3729
  %v3731 = vpop.f32.mrf.mxu0
  %3732 = vmatprep.mubr.f32.mxu0 0.0
  %v3733 = vand.u32 %v2912, 4294901760
  %v3734 = vsub.f32 %v2912, %v3733
  %v3735 = vand.u32 %v3734, 4294901760
  %3736 = vmatmul.mubr.f32.gmra.mxu0 %v3735
  %v3737 = vpop.f32.mrf.mxu0
  %v3738 = vadd.f32 %v3656, %v3737
  %v3739 = vpop.f32.mrf.mxu0
  %3740 = vdwg.mxu0
  %3741 = vmatprep.subr.mxu0 0.0
  %3742 = vmatpush1.msra.mxu0 0.0
  %3743 = vmatprep.subr.mxu0 0.0
  %3744 = vmatpush1.msra.mxu0 0.0
  %3745 = vmatprep.subr.mxu0 0.0
  %3746 = vmatpush1.msra.mxu0 0.0
  %3747 = vmatprep.subr.mxu0 0.0
  %3748 = vmatpush1.msra.mxu0 0.0
  %3749 = vmatprep.subr.mxu0 0.0
  %3750 = vmatpush1.msra.mxu0 0.0
  %3751 = vmatprep.subr.mxu0 0.0
  %3752 = vmatpush1.msra.mxu0 0.0
  %3753 = vmatprep.subr.mxu0 0.0
  %3754 = vmatpush1.msra.mxu0 0.0
  %3755 = vmatprep.subr.mxu0 0.0
  %3756 = vmatpush1.msra.mxu0 0.0
  %3757 = vmatprep.subr.mxu0 0.0
  %3758 = vmatpush1.msra.mxu0 0.0
  %3759 = vmatprep.subr.mxu0 0.0
  %3760 = vmatpush1.msra.mxu0 0.0
  %3761 = vmatprep.subr.mxu0 0.0
  %3762 = vmatpush1.msra.mxu0 0.0
  %3763 = vmatprep.subr.mxu0 0.0
  %3764 = vmatpush1.msra.mxu0 0.0
  %3765 = vmatprep.subr.mxu0 0.0
  %3766 = vmatpush1.msra.mxu0 0.0
  %3767 = vmatprep.subr.mxu0 0.0
  %3768 = vmatpush1.msra.mxu0 0.0
  %3769 = vmatprep.subr.mxu0 0.0
  %3770 = vmatpush1.msra.mxu0 0.0
  %3771 = vmatprep.subr.mxu0 0.0
  %v3772 = vand.u32 %v3408, 4294901760
  %v3773 = vsub.f32 %v3408, %v3772
  %v3774 = vand.u32 %v3773, 4294901760
  %3775 = vmatpush1.msra.mxu0 %v3774
  %3776 = vmatprep.subr.mxu0 0.0
  %3777 = vmatpush2.msra.mxu0 0.0
  %3778 = vmatprep.subr.mxu0 0.0
  %3779 = vmatpush2.msra.mxu0 0.0
  %3780 = vmatprep.subr.mxu0 0.0
  %3781 = vmatpush2.msra.mxu0 0.0
  %3782 = vmatprep.subr.mxu0 0.0
  %3783 = vmatpush2.msra.mxu0 0.0
  %3784 = vmatprep.subr.mxu0 0.0
  %3785 = vmatpush2.msra.mxu0 0.0
  %3786 = vmatprep.subr.mxu0 0.0
  %3787 = vmatpush2.msra.mxu0 0.0
  %3788 = vmatprep.subr.mxu0 0.0
  %3789 = vmatpush2.msra.mxu0 0.0
  %3790 = vmatprep.subr.mxu0 0.0
  %3791 = vmatpush2.msra.mxu0 0.0
  %3792 = vmatprep.subr.mxu0 0.0
  %3793 = vmatpush2.msra.mxu0 0.0
  %3794 = vmatprep.subr.mxu0 0.0
  %3795 = vmatpush2.msra.mxu0 0.0
  %3796 = vmatprep.subr.mxu0 0.0
  %3797 = vmatpush2.msra.mxu0 0.0
  %3798 = vmatprep.subr.mxu0 0.0
  %3799 = vmatpush2.msra.mxu0 0.0
  %3800 = vmatprep.subr.mxu0 0.0
  %3801 = vmatpush2.msra.mxu0 0.0
  %3802 = vmatprep.subr.mxu0 0.0
  %3803 = vmatpush2.msra.mxu0 0.0
  %3804 = vmatprep.subr.mxu0 0.0
  %3805 = vmatpush2.msra.mxu0 0.0
  %3806 = vmatprep.subr.mxu0 0.0
  %3807 = vmatpush2.msra.mxu0 0.0
  %3808 = vmatprep.mubr.f32.mxu0 0.0
  %v3809 = vand.u32 %v2909, 4294901760
  %3810 = vmatmul.mubr.f32.gmra.mxu0 %v3809
  %v3811 = vpop.f32.mrf.mxu0
  %v3812 = vadd.f32 %v3730, %v3811
  %v3813 = vpop.f32.mrf.mxu0
  %3814 = vmatprep.mubr.f32.mxu0 0.0
  %v3815 = vand.u32 %v2912, 4294901760
  %3816 = vmatmul.mubr.f32.gmra.mxu0 %v3815
  %v3817 = vpop.f32.mrf.mxu0
  %v3818 = vadd.f32 %v3738, %v3817
  %v3819 = vpop.f32.mrf.mxu0
  %3820 = vdwg.mxu0
  %3821 = vmatprep.subr.mxu0 0.0
  %3822 = vmatpush1.msra.mxu0 0.0
  %3823 = vmatprep.subr.mxu0 0.0
  %3824 = vmatpush1.msra.mxu0 0.0
  %3825 = vmatprep.subr.mxu0 0.0
  %3826 = vmatpush1.msra.mxu0 0.0
  %3827 = vmatprep.subr.mxu0 0.0
  %3828 = vmatpush1.msra.mxu0 0.0
  %3829 = vmatprep.subr.mxu0 0.0
  %3830 = vmatpush1.msra.mxu0 0.0
  %3831 = vmatprep.subr.mxu0 0.0
  %3832 = vmatpush1.msra.mxu0 0.0
  %3833 = vmatprep.subr.mxu0 0.0
  %3834 = vmatpush1.msra.mxu0 0.0
  %3835 = vmatprep.subr.mxu0 0.0
  %3836 = vmatpush1.msra.mxu0 0.0
  %3837 = vmatprep.subr.mxu0 0.0
  %3838 = vmatpush1.msra.mxu0 0.0
  %3839 = vmatprep.subr.mxu0 0.0
  %3840 = vmatpush1.msra.mxu0 0.0
  %3841 = vmatprep.subr.mxu0 0.0
  %3842 = vmatpush1.msra.mxu0 0.0
  %3843 = vmatprep.subr.mxu0 0.0
  %3844 = vmatpush1.msra.mxu0 0.0
  %3845 = vmatprep.subr.mxu0 0.0
  %3846 = vmatpush1.msra.mxu0 0.0
  %3847 = vmatprep.subr.mxu0 0.0
  %3848 = vmatpush1.msra.mxu0 0.0
  %3849 = vmatprep.subr.mxu0 0.0
  %3850 = vmatpush1.msra.mxu0 0.0
  %3851 = vmatprep.subr.mxu0 0.0
  %v3852 = vand.u32 %v3408, 4294901760
  %3853 = vmatpush1.msra.mxu0 %v3852
  %3854 = vmatprep.subr.mxu0 0.0
  %3855 = vmatpush2.msra.mxu0 0.0
  %3856 = vmatprep.subr.mxu0 0.0
  %3857 = vmatpush2.msra.mxu0 0.0
  %3858 = vmatprep.subr.mxu0 0.0
  %3859 = vmatpush2.msra.mxu0 0.0
  %3860 = vmatprep.subr.mxu0 0.0
  %3861 = vmatpush2.msra.mxu0 0.0
  %3862 = vmatprep.subr.mxu0 0.0
  %3863 = vmatpush2.msra.mxu0 0.0
  %3864 = vmatprep.subr.mxu0 0.0
  %3865 = vmatpush2.msra.mxu0 0.0
  %3866 = vmatprep.subr.mxu0 0.0
  %3867 = vmatpush2.msra.mxu0 0.0
  %3868 = vmatprep.subr.mxu0 0.0
  %3869 = vmatpush2.msra.mxu0 0.0
  %3870 = vmatprep.subr.mxu0 0.0
  %3871 = vmatpush2.msra.mxu0 0.0
  %3872 = vmatprep.subr.mxu0 0.0
  %3873 = vmatpush2.msra.mxu0 0.0
  %3874 = vmatprep.subr.mxu0 0.0
  %3875 = vmatpush2.msra.mxu0 0.0
  %3876 = vmatprep.subr.mxu0 0.0
  %3877 = vmatpush2.msra.mxu0 0.0
  %3878 = vmatprep.subr.mxu0 0.0
  %3879 = vmatpush2.msra.mxu0 0.0
  %3880 = vmatprep.subr.mxu0 0.0
  %3881 = vmatpush2.msra.mxu0 0.0
  %3882 = vmatprep.subr.mxu0 0.0
  %3883 = vmatpush2.msra.mxu0 0.0
  %3884 = vmatprep.subr.mxu0 0.0
  %3885 = vmatpush2.msra.mxu0 0.0
  %3886 = vmatprep.mubr.f32.mxu0 0.0
  %v3887 = vand.u32 %v2909, 4294901760
  %3888 = vmatmul.mubr.f32.gmra.mxu0 %v3887
  %v3889 = vpop.f32.mrf.mxu0
  %v3890 = vadd.f32 %v3812, %v3889
  %v3891 = vpop.f32.mrf.mxu0
  %3892 = vmatprep.mubr.f32.mxu0 0.0
  %v3893 = vand.u32 %v2912, 4294901760
  %3894 = vmatmul.mubr.f32.gmra.mxu0 %v3893
  %v3895 = vpop.f32.mrf.mxu0
  %v3896 = vadd.f32 %v3818, %v3895
  %v3897 = vpop.f32.mrf.mxu0
  %3898 = vdwg.mxu0
  %v3899 = vmul.f32 %v76, %v3398
  %v3900 = vmul.f32 %v79, %v3404
  %v3901 = vadd.f32 %v3899, %v3890
  %v3902 = vadd.f32 %v3900, %v3896
  %v3903 = vmul.f32 %v3901, 0.1
  %v3904 = vmul.f32 %v3902, 0.1
  %v3905 = vmax.f32 %v3901, %v3903
  %v3906 = vmax.f32 %v3902, %v3904
  %v3907 = vpack.c.bf16 %v3906, %v3905
  %v3908 = vpack.c.bf16 %v15, %v14
  %v3909 = vpack.c.bf16 %v17, %v16
  %v3910 = vlaneseq
  %v3911 = vshrl.u32 %v3910, 7
  %v3912 = vsub.s32 0, %v3911
  %v3913 = vrot.slane %v9, %v3912
  %v3915 = vsel %vm1013, %v3907, 0
  %3917 = vmatprep.subr.bf16.mxu0 0
  %3918 = vmatpush1.bf16.msra.mxu0 0
  %3919 = vmatprep.subr.bf16.mxu0 0
  %3920 = vmatpush1.bf16.msra.mxu0 0
  %3921 = vmatprep.subr.bf16.mxu0 0
  %3922 = vmatpush1.bf16.msra.mxu0 0
  %3923 = vmatprep.subr.bf16.mxu0 0
  %3924 = vmatpush1.bf16.msra.mxu0 0
  %3925 = vmatprep.subr.bf16.mxu0 0
  %3926 = vmatpush1.bf16.msra.mxu0 0
  %3927 = vmatprep.subr.bf16.mxu0 0
  %3928 = vmatpush1.bf16.msra.mxu0 0
  %3929 = vmatprep.subr.bf16.mxu0 0
  %3930 = vmatpush1.bf16.msra.mxu0 %v3909
  %3931 = vmatprep.subr.bf16.mxu0 0
  %3932 = vmatpush1.bf16.msra.mxu0 %v3908
  %3933 = vmatprep.subr.bf16.mxu0 0
  %3934 = vmatpush2.bf16.msra.mxu0 0
  %3935 = vmatprep.subr.bf16.mxu0 0
  %3936 = vmatpush2.bf16.msra.mxu0 0
  %3937 = vmatprep.subr.bf16.mxu0 0
  %3938 = vmatpush2.bf16.msra.mxu0 0
  %3939 = vmatprep.subr.bf16.mxu0 0
  %3940 = vmatpush2.bf16.msra.mxu0 0
  %3941 = vmatprep.subr.bf16.mxu0 0
  %3942 = vmatpush2.bf16.msra.mxu0 0
  %3943 = vmatprep.subr.bf16.mxu0 0
  %3944 = vmatpush2.bf16.msra.mxu0 0
  %3945 = vmatprep.subr.bf16.mxu0 0
  %3946 = vmatpush2.bf16.msra.mxu0 0
  %3947 = vmatprep.subr.bf16.mxu0 0
  %3948 = vmatpush2.bf16.msra.mxu0 0
  %3949 = vmatprep.mubr.bf16.mxu0 0
  %3950 = vmatmul.mubr.bf16.gmra.mxu0 %v3915
  %v3951 = vpop.f32.mrf.mxu0
  %v3952 = vadd.f32 %v3913, %v3951
  %v3953 = vpop.f32.mrf.mxu0
  %v3954 = vpop.f32.mrf.mxu0
  %v3955 = vadd.f32 %v3913, %v3954
  %v3956 = vpop.f32.mrf.mxu0
  %3957 = vdwg.mxu0
  %v3958 = vpack.c.bf16 %v19, %v18
  %v3959 = vpack.c.bf16 %v21, %v20
  %v3960 = vlaneseq
  %v3961 = vand.u32 %v3960, 127
  %v3962 = vand.u32 %v3961, 31
  %vm3963 = vcmp.lt.s32.totalorder %v3962, 16
  %vm3964 = vcmp.ge.s32.totalorder %v3961, 64
  %vm3965 = vcmp.lt.s32.totalorder %v3961, 96
  %vm3966 = vmand %vm3964, %vm3965
  %v3968 = vrot.slane %v3955, 2
  %v3970 = vsel %vm3963, %v3952, %v3968
  %v3972 = vsel %vm1013, 0, 0
  %3974 = vmatprep.subr.bf16.mxu0 0
  %3975 = vmatpush1.bf16.msra.mxu0 0
  %3976 = vmatprep.subr.bf16.mxu0 0
  %3977 = vmatpush1.bf16.msra.mxu0 0
  %3978 = vmatprep.subr.bf16.mxu0 0
  %3979 = vmatpush1.bf16.msra.mxu0 0
  %3980 = vmatprep.subr.bf16.mxu0 0
  %3981 = vmatpush1.bf16.msra.mxu0 0
  %3982 = vmatprep.subr.bf16.mxu0 0
  %3983 = vmatpush1.bf16.msra.mxu0 0
  %3984 = vmatprep.subr.bf16.mxu0 0
  %3985 = vmatpush1.bf16.msra.mxu0 0
  %3986 = vmatprep.subr.bf16.mxu0 0
  %3987 = vmatpush1.bf16.msra.mxu0 %v3959
  %3988 = vmatprep.subr.bf16.mxu0 0
  %3989 = vmatpush1.bf16.msra.mxu0 %v3958
  %3990 = vmatprep.subr.bf16.mxu0 0
  %3991 = vmatpush2.bf16.msra.mxu0 0
  %3992 = vmatprep.subr.bf16.mxu0 0
  %3993 = vmatpush2.bf16.msra.mxu0 0
  %3994 = vmatprep.subr.bf16.mxu0 0
  %3995 = vmatpush2.bf16.msra.mxu0 0
  %3996 = vmatprep.subr.bf16.mxu0 0
  %3997 = vmatpush2.bf16.msra.mxu0 0
  %3998 = vmatprep.subr.bf16.mxu0 0
  %3999 = vmatpush2.bf16.msra.mxu0 0
  %4000 = vmatprep.subr.bf16.mxu0 0
  %4001 = vmatpush2.bf16.msra.mxu0 0
  %4002 = vmatprep.subr.bf16.mxu0 0
  %4003 = vmatpush2.bf16.msra.mxu0 0
  %4004 = vmatprep.subr.bf16.mxu0 0
  %4005 = vmatpush2.bf16.msra.mxu0 0
  %4006 = vmatprep.mubr.bf16.mxu0 0
  %4007 = vmatmul.mubr.bf16.gmra.mxu0 %v3972
  %v4008 = vpop.f32.mrf.mxu0
  %v4009 = vadd.f32 0.0, %v4008
  %v4010 = vpop.f32.mrf.mxu0
  %v4011 = vpop.f32.mrf.mxu0
  %v4012 = vpop.f32.mrf.mxu0
  %4013 = vdwg.mxu0
  %v4014 = vadd.f32 %v3970, %v4009
  %v4015 = vtanh.pop %v4014
  %v4016 = vxor.u32 %v4014, 2147483648
  %v4017 = vmul.f32 %v4016, 1.442695
  %v4018 = vpow.pop %v4017
  %v4019 = vadd.f32 %v4018, 1.0
  %v4020 = vrcp.pop %v4019
  %v4021 = vmul.f32 1.0, %v4020
  %v4022 = vsel %vm3966, %v4015, %v4021
  %v4023 = vmul.f32 %v4022, 0.0
  %4025 = vrot.lane.b32.xlu0 %v4022, 64
  %v4026 = vpop.permute.xlu0 %4025
  %v4028 = vmul.f32 %v4022, %v4026
  %4030 = vrot.lane.b32.xlu0 %v4028, 32
  %v4031 = vpop.permute.xlu0 %4030
  %v4033 = vadd.f32 %v4023, %v4031
  %v4034 = vtanh.pop %v4033
  %4036 = vrot.lane.b32.xlu0 %v4034, 64
  %v4037 = vpop.permute.xlu0 %4036
  %v4039 = vmul.f32 %v4022, %v4037
  %v4040 = vrot.slane %v3955, 6
  %v4042 = vsel %vm3963, %v3952, %v4040
  %v4043 = vpack.c.bf16 %v4039, %v4039
  %4045 = vrot.lane.b32.xlu0 %v4043, 32
  %v4046 = vpop.permute.xlu0 %4045
  %v4048 = vsel %vm1013, %v4046, 0
  %4050 = vmatprep.subr.bf16.mxu0 0
  %4051 = vmatpush1.bf16.msra.mxu0 0
  %4052 = vmatprep.subr.bf16.mxu0 0
  %4053 = vmatpush1.bf16.msra.mxu0 0
  %4054 = vmatprep.subr.bf16.mxu0 0
  %4055 = vmatpush1.bf16.msra.mxu0 0
  %4056 = vmatprep.subr.bf16.mxu0 0
  %4057 = vmatpush1.bf16.msra.mxu0 0
  %4058 = vmatprep.subr.bf16.mxu0 0
  %4059 = vmatpush1.bf16.msra.mxu0 0
  %4060 = vmatprep.subr.bf16.mxu0 0
  %4061 = vmatpush1.bf16.msra.mxu0 0
  %4062 = vmatprep.subr.bf16.mxu0 0
  %4063 = vmatpush1.bf16.msra.mxu0 %v3959
  %4064 = vmatprep.subr.bf16.mxu0 0
  %4065 = vmatpush1.bf16.msra.mxu0 %v3958
  %4066 = vmatprep.subr.bf16.mxu0 0
  %4067 = vmatpush2.bf16.msra.mxu0 0
  %4068 = vmatprep.subr.bf16.mxu0 0
  %4069 = vmatpush2.bf16.msra.mxu0 0
  %4070 = vmatprep.subr.bf16.mxu0 0
  %4071 = vmatpush2.bf16.msra.mxu0 0
  %4072 = vmatprep.subr.bf16.mxu0 0
  %4073 = vmatpush2.bf16.msra.mxu0 0
  %4074 = vmatprep.subr.bf16.mxu0 0
  %4075 = vmatpush2.bf16.msra.mxu0 0
  %4076 = vmatprep.subr.bf16.mxu0 0
  %4077 = vmatpush2.bf16.msra.mxu0 0
  %4078 = vmatprep.subr.bf16.mxu0 0
  %4079 = vmatpush2.bf16.msra.mxu0 0
  %4080 = vmatprep.subr.bf16.mxu0 0
  %4081 = vmatpush2.bf16.msra.mxu0 0
  %4082 = vmatprep.mubr.bf16.mxu0 0
  %4083 = vmatmul.mubr.bf16.gmra.mxu0 %v4048
  %v4084 = vpop.f32.mrf.mxu0
  %v4085 = vadd.f32 0.0, %v4084
  %v4086 = vpop.f32.mrf.mxu0
  %v4087 = vpop.f32.mrf.mxu0
  %v4088 = vpop.f32.mrf.mxu0
  %4089 = vdwg.mxu0
  %v4091 = vrot.slane %v4085, 6
  %v4093 = vadd.f32 %v4042, %v4091
  %v4094 = vtanh.pop %v4093
  %v4095 = vxor.u32 %v4093, 2147483648
  %v4096 = vmul.f32 %v4095, 1.442695
  %v4097 = vpow.pop %v4096
  %v4098 = vadd.f32 %v4097, 1.0
  %v4099 = vrcp.pop %v4098
  %v4100 = vmul.f32 1.0, %v4099
  %v4101 = vsel %vm3966, %v4094, %v4100
  %v4103 = vrot.slane %v4033, 6
  %v4105 = vmul.f32 %v4101, %v4103
  %4107 = vrot.lane.b32.xlu0 %v4101, 64
  %v4108 = vpop.permute.xlu0 %4107
  %v4110 = vmul.f32 %v4101, %v4108
  %4112 = vrot.lane.b32.xlu0 %v4110, 32
  %v4113 = vpop.permute.xlu0 %4112
  %v4115 = vadd.f32 %v4105, %v4113
  %v4116 = vtanh.pop %v4115
  %4118 = vrot.lane.b32.xlu0 %v4116, 64
  %v4119 = vpop.permute.xlu0 %4118
  %v4121 = vmul.f32 %v4101, %v4119
  %v4123 = vrot.slane %v3952, 2
  %v4125 = vsel %vm3963, %v3952, %v4123
  %v4126 = vpack.c.bf16 %v4121, %v4121
  %v4128 = vrot.slane %v4126, 1
  %4129 = vrot.lane.b32.xlu0 %v4128, 32
  %v4130 = vpop.permute.xlu0 %4129
  %v4132 = vsel %vm1013, %v4130, 0
  %4134 = vmatprep.subr.bf16.mxu0 0
  %4135 = vmatpush1.bf16.msra.mxu0 0
  %4136 = vmatprep.subr.bf16.mxu0 0
  %4137 = vmatpush1.bf16.msra.mxu0 0
  %4138 = vmatprep.subr.bf16.mxu0 0
  %4139 = vmatpush1.bf16.msra.mxu0 0
  %4140 = vmatprep.subr.bf16.mxu0 0
  %4141 = vmatpush1.bf16.msra.mxu0 0
  %4142 = vmatprep.subr.bf16.mxu0 0
  %4143 = vmatpush1.bf16.msra.mxu0 0
  %4144 = vmatprep.subr.bf16.mxu0 0
  %4145 = vmatpush1.bf16.msra.mxu0 0
  %4146 = vmatprep.subr.bf16.mxu0 0
  %4147 = vmatpush1.bf16.msra.mxu0 %v3959
  %4148 = vmatprep.subr.bf16.mxu0 0
  %4149 = vmatpush1.bf16.msra.mxu0 %v3958
  %4150 = vmatprep.subr.bf16.mxu0 0
  %4151 = vmatpush2.bf16.msra.mxu0 0
  %4152 = vmatprep.subr.bf16.mxu0 0
  %4153 = vmatpush2.bf16.msra.mxu0 0
  %4154 = vmatprep.subr.bf16.mxu0 0
  %4155 = vmatpush2.bf16.msra.mxu0 0
  %4156 = vmatprep.subr.bf16.mxu0 0
  %4157 = vmatpush2.bf16.msra.mxu0 0
  %4158 = vmatprep.subr.bf16.mxu0 0
  %4159 = vmatpush2.bf16.msra.mxu0 0
  %4160 = vmatprep.subr.bf16.mxu0 0
  %4161 = vmatpush2.bf16.msra.mxu0 0
  %4162 = vmatprep.subr.bf16.mxu0 0
  %4163 = vmatpush2.bf16.msra.mxu0 0
  %4164 = vmatprep.subr.bf16.mxu0 0
  %4165 = vmatpush2.bf16.msra.mxu0 0
  %4166 = vmatprep.mubr.bf16.mxu0 0
  %4167 = vmatmul.mubr.bf16.gmra.mxu0 %v4132
  %v4168 = vpop.f32.mrf.mxu0
  %v4169 = vadd.f32 0.0, %v4168
  %v4170 = vpop.f32.mrf.mxu0
  %v4171 = vpop.f32.mrf.mxu0
  %v4172 = vpop.f32.mrf.mxu0
  %4173 = vdwg.mxu0
  %v4175 = vrot.slane %v4169, 4
  %v4177 = vadd.f32 %v4125, %v4175
  %v4178 = vtanh.pop %v4177
  %v4179 = vxor.u32 %v4177, 2147483648
  %v4180 = vmul.f32 %v4179, 1.442695
  %v4181 = vpow.pop %v4180
  %v4182 = vadd.f32 %v4181, 1.0
  %v4183 = vrcp.pop %v4182
  %v4184 = vmul.f32 1.0, %v4183
  %v4185 = vsel %vm3966, %v4178, %v4184
  %v4187 = vrot.slane %v4115, 6
  %v4189 = vmul.f32 %v4185, %v4187
  %4191 = vrot.lane.b32.xlu0 %v4185, 64
  %v4192 = vpop.permute.xlu0 %4191
  %v4194 = vmul.f32 %v4185, %v4192
  %4196 = vrot.lane.b32.xlu0 %v4194, 32
  %v4197 = vpop.permute.xlu0 %4196
  %v4199 = vadd.f32 %v4189, %v4197
  %v4200 = vtanh.pop %v4199
  %4202 = vrot.lane.b32.xlu0 %v4200, 64
  %v4203 = vpop.permute.xlu0 %4202
  %v4205 = vmul.f32 %v4185, %v4203
  %v4206 = vrot.slane %v3952, 6
  %v4208 = vsel %vm3963, %v3952, %v4206
  %v4209 = vpack.c.bf16 %v4205, %v4205
  %v4211 = vrot.slane %v4209, 2
  %4212 = vrot.lane.b32.xlu0 %v4211, 32
  %v4213 = vpop.permute.xlu0 %4212
  %v4215 = vsel %vm1013, %v4213, 0
  %4217 = vmatprep.subr.bf16.mxu0 0
  %4218 = vmatpush1.bf16.msra.mxu0 0
  %4219 = vmatprep.subr.bf16.mxu0 0
  %4220 = vmatpush1.bf16.msra.mxu0 0
  %4221 = vmatprep.subr.bf16.mxu0 0
  %4222 = vmatpush1.bf16.msra.mxu0 0
  %4223 = vmatprep.subr.bf16.mxu0 0
  %4224 = vmatpush1.bf16.msra.mxu0 0
  %4225 = vmatprep.subr.bf16.mxu0 0
  %4226 = vmatpush1.bf16.msra.mxu0 0
  %4227 = vmatprep.subr.bf16.mxu0 0
  %4228 = vmatpush1.bf16.msra.mxu0 0
  %4229 = vmatprep.subr.bf16.mxu0 0
  %4230 = vmatpush1.bf16.msra.mxu0 %v3959
  %4231 = vmatprep.subr.bf16.mxu0 0
  %4232 = vmatpush1.bf16.msra.mxu0 %v3958
  %4233 = vmatprep.subr.bf16.mxu0 0
  %4234 = vmatpush2.bf16.msra.mxu0 0
  %4235 = vmatprep.subr.bf16.mxu0 0
  %4236 = vmatpush2.bf16.msra.mxu0 0
  %4237 = vmatprep.subr.bf16.mxu0 0
  %4238 = vmatpush2.bf16.msra.mxu0 0
  %4239 = vmatprep.subr.bf16.mxu0 0
  %4240 = vmatpush2.bf16.msra.mxu0 0
  %4241 = vmatprep.subr.bf16.mxu0 0
  %4242 = vmatpush2.bf16.msra.mxu0 0
  %4243 = vmatprep.subr.bf16.mxu0 0
  %4244 = vmatpush2.bf16.msra.mxu0 0
  %4245 = vmatprep.subr.bf16.mxu0 0
  %4246 = vmatpush2.bf16.msra.mxu0 0
  %4247 = vmatprep.subr.bf16.mxu0 0
  %4248 = vmatpush2.bf16.msra.mxu0 0
  %4249 = vmatprep.mubr.bf16.mxu0 0
  %4250 = vmatmul.mubr.bf16.gmra.mxu0 %v4215
  %v4251 = vpop.f32.mrf.mxu0
  %v4252 = vadd.f32 0.0, %v4251
  %v4253 = vpop.f32.mrf.mxu0
  %v4254 = vpop.f32.mrf.mxu0
  %v4255 = vpop.f32.mrf.mxu0
  %4256 = vdwg.mxu0
  %v4258 = vrot.slane %v4252, 2
  %v4260 = vadd.f32 %v4208, %v4258
  %v4261 = vtanh.pop %v4260
  %v4262 = vxor.u32 %v4260, 2147483648
  %v4263 = vmul.f32 %v4262, 1.442695
  %v4264 = vpow.pop %v4263
  %v4265 = vadd.f32 %v4264, 1.0
  %v4266 = vrcp.pop %v4265
  %v4267 = vmul.f32 1.0, %v4266
  %v4268 = vsel %vm3966, %v4261, %v4267
  %v4270 = vrot.slane %v4199, 6
  %v4272 = vmul.f32 %v4268, %v4270
  %4274 = vrot.lane.b32.xlu0 %v4268, 64
  %v4275 = vpop.permute.xlu0 %4274
  %v4277 = vmul.f32 %v4268, %v4275
  %4279 = vrot.lane.b32.xlu0 %v4277, 32
  %v4280 = vpop.permute.xlu0 %4279
  %v4282 = vadd.f32 %v4272, %v4280
  %v4283 = vtanh.pop %v4282
  %4285 = vrot.lane.b32.xlu0 %v4283, 64
  %v4286 = vpop.permute.xlu0 %4285
  %v4288 = vmul.f32 %v4268, %v4286
  %v4289 = vsel %vm3963, %v3955, %v4123
  %v4290 = vpack.c.bf16 %v4288, %v4288
  %v4292 = vrot.slane %v4290, 3
  %4293 = vrot.lane.b32.xlu0 %v4292, 32
  %v4294 = vpop.permute.xlu0 %4293
  %v4296 = vsel %vm1013, %v4294, 0
  %4298 = vmatprep.subr.bf16.mxu0 0
  %4299 = vmatpush1.bf16.msra.mxu0 0
  %4300 = vmatprep.subr.bf16.mxu0 0
  %4301 = vmatpush1.bf16.msra.mxu0 0
  %4302 = vmatprep.subr.bf16.mxu0 0
  %4303 = vmatpush1.bf16.msra.mxu0 0
  %4304 = vmatprep.subr.bf16.mxu0 0
  %4305 = vmatpush1.bf16.msra.mxu0 0
  %4306 = vmatprep.subr.bf16.mxu0 0
  %4307 = vmatpush1.bf16.msra.mxu0 0
  %4308 = vmatprep.subr.bf16.mxu0 0
  %4309 = vmatpush1.bf16.msra.mxu0 0
  %4310 = vmatprep.subr.bf16.mxu0 0
  %4311 = vmatpush1.bf16.msra.mxu0 %v3959
  %4312 = vmatprep.subr.bf16.mxu0 0
  %4313 = vmatpush1.bf16.msra.mxu0 %v3958
  %4314 = vmatprep.subr.bf16.mxu0 0
  %4315 = vmatpush2.bf16.msra.mxu0 0
  %4316 = vmatprep.subr.bf16.mxu0 0
  %4317 = vmatpush2.bf16.msra.mxu0 0
  %4318 = vmatprep.subr.bf16.mxu0 0
  %4319 = vmatpush2.bf16.msra.mxu0 0
  %4320 = vmatprep.subr.bf16.mxu0 0
  %4321 = vmatpush2.bf16.msra.mxu0 0
  %4322 = vmatprep.subr.bf16.mxu0 0
  %4323 = vmatpush2.bf16.msra.mxu0 0
  %4324 = vmatprep.subr.bf16.mxu0 0
  %4325 = vmatpush2.bf16.msra.mxu0 0
  %4326 = vmatprep.subr.bf16.mxu0 0
  %4327 = vmatpush2.bf16.msra.mxu0 0
  %4328 = vmatprep.subr.bf16.mxu0 0
  %4329 = vmatpush2.bf16.msra.mxu0 0
  %4330 = vmatprep.mubr.bf16.mxu0 0
  %4331 = vmatmul.mubr.bf16.gmra.mxu0 %v4296
  %v4332 = vpop.f32.mrf.mxu0
  %v4333 = vadd.f32 0.0, %v4332
  %v4334 = vpop.f32.mrf.mxu0
  %v4335 = vpop.f32.mrf.mxu0
  %v4336 = vpop.f32.mrf.mxu0
  %4337 = vdwg.mxu0
  %v4338 = vadd.f32 %v4289, %v4333
  %v4339 = vtanh.pop %v4338
  %v4340 = vxor.u32 %v4338, 2147483648
  %v4341 = vmul.f32 %v4340, 1.442695
  %v4342 = vpow.pop %v4341
  %v4343 = vadd.f32 %v4342, 1.0
  %v4344 = vrcp.pop %v4343
  %v4345 = vmul.f32 1.0, %v4344
  %v4346 = vsel %vm3966, %v4339, %v4345
  %v4348 = vrot.slane %v4282, 6
  %v4350 = vmul.f32 %v4346, %v4348
  %4352 = vrot.lane.b32.xlu0 %v4346, 64
  %v4353 = vpop.permute.xlu0 %4352
  %v4355 = vmul.f32 %v4346, %v4353
  %4357 = vrot.lane.b32.xlu0 %v4355, 32
  %v4358 = vpop.permute.xlu0 %4357
  %v4360 = vadd.f32 %v4350, %v4358
  %v4361 = vtanh.pop %v4360
  %4363 = vrot.lane.b32.xlu0 %v4361, 64
  %v4364 = vpop.permute.xlu0 %4363
  %v4366 = vmul.f32 %v4346, %v4364
  %v4367 = vsel %vm3963, %v3955, %v4206
  %v4368 = vpack.c.bf16 %v4366, %v4366
  %4370 = vrot.lane.b32.xlu0 %v4368, 32
  %v4371 = vpop.permute.xlu0 %4370
  %v4373 = vsel %vm1013, %v4371, 0
  %4375 = vmatprep.subr.bf16.mxu0 0
  %4376 = vmatpush1.bf16.msra.mxu0 0
  %4377 = vmatprep.subr.bf16.mxu0 0
  %4378 = vmatpush1.bf16.msra.mxu0 0
  %4379 = vmatprep.subr.bf16.mxu0 0
  %4380 = vmatpush1.bf16.msra.mxu0 0
  %4381 = vmatprep.subr.bf16.mxu0 0
  %4382 = vmatpush1.bf16.msra.mxu0 0
  %4383 = vmatprep.subr.bf16.mxu0 0
  %4384 = vmatpush1.bf16.msra.mxu0 0
  %4385 = vmatprep.subr.bf16.mxu0 0
  %4386 = vmatpush1.bf16.msra.mxu0 0
  %4387 = vmatprep.subr.bf16.mxu0 0
  %4388 = vmatpush1.bf16.msra.mxu0 %v3959
  %4389 = vmatprep.subr.bf16.mxu0 0
  %4390 = vmatpush1.bf16.msra.mxu0 %v3958
  %4391 = vmatprep.subr.bf16.mxu0 0
  %4392 = vmatpush2.bf16.msra.mxu0 0
  %4393 = vmatprep.subr.bf16.mxu0 0
  %4394 = vmatpush2.bf16.msra.mxu0 0
  %4395 = vmatprep.subr.bf16.mxu0 0
  %4396 = vmatpush2.bf16.msra.mxu0 0
  %4397 = vmatprep.subr.bf16.mxu0 0
  %4398 = vmatpush2.bf16.msra.mxu0 0
  %4399 = vmatprep.subr.bf16.mxu0 0
  %4400 = vmatpush2.bf16.msra.mxu0 0
  %4401 = vmatprep.subr.bf16.mxu0 0
  %4402 = vmatpush2.bf16.msra.mxu0 0
  %4403 = vmatprep.subr.bf16.mxu0 0
  %4404 = vmatpush2.bf16.msra.mxu0 0
  %4405 = vmatprep.subr.bf16.mxu0 0
  %4406 = vmatpush2.bf16.msra.mxu0 0
  %4407 = vmatprep.mubr.bf16.mxu0 0
  %4408 = vmatmul.mubr.bf16.gmra.mxu0 %v4373
  %v4409 = vpop.f32.mrf.mxu0
  %v4410 = vadd.f32 0.0, %v4409
  %v4411 = vpop.f32.mrf.mxu0
  %v4412 = vpop.f32.mrf.mxu0
  %v4413 = vpop.f32.mrf.mxu0
  %4414 = vdwg.mxu0
  %v4416 = vrot.slane %v4410, 6
  %v4418 = vadd.f32 %v4367, %v4416
  %v4419 = vtanh.pop %v4418
  %v4420 = vxor.u32 %v4418, 2147483648
  %v4421 = vmul.f32 %v4420, 1.442695
  %v4422 = vpow.pop %v4421
  %v4423 = vadd.f32 %v4422, 1.0
  %v4424 = vrcp.pop %v4423
  %v4425 = vmul.f32 1.0, %v4424
  %v4426 = vsel %vm3966, %v4419, %v4425
  %v4428 = vrot.slane %v4360, 6
  %v4430 = vmul.f32 %v4426, %v4428
  %4432 = vrot.lane.b32.xlu0 %v4426, 64
  %v4433 = vpop.permute.xlu0 %4432
  %v4435 = vmul.f32 %v4426, %v4433
  %4437 = vrot.lane.b32.xlu0 %v4435, 32
  %v4438 = vpop.permute.xlu0 %4437
  %v4440 = vadd.f32 %v4430, %v4438
  %v4441 = vtanh.pop %v4440
  %4443 = vrot.lane.b32.xlu0 %v4441, 64
  %v4444 = vpop.permute.xlu0 %4443
  %v4446 = vmul.f32 %v4426, %v4444
  %vm4447 = vcmp.lt.s32.totalorder %v3961, 16
  %4449 = vrot.lane.b32.xlu0 %v4039, 32
  %v4450 = vpop.permute.xlu0 %4449
  %v4453 = vrot.slane %v4446, 2
  %4454 = vrot.lane.b32.xlu0 %v4453, 32
  %v4455 = vpop.permute.xlu0 %4454
  %v4457 = vsel %vm4447, %v4450, %v4455
  %vm4458 = vcmask 254976
  %4459 = vst.msk [vmem:[%s1] sm:$0x3] %vm4458, %v4457
  %v4461 = vrot.slane %v4121, 2
  %4462 = vrot.lane.b32.xlu0 %v4461, 32
  %v4463 = vpop.permute.xlu0 %4462
  %4466 = vrot.lane.b32.xlu0 %v4366, 32
  %v4467 = vpop.permute.xlu0 %4466
  %v4469 = vsel %vm4447, %v4463, %v4467
  %4470 = vst.msk [vmem:[%s1 + $0x2] sm:$0x3] %vm4458, %v4469
  %v4472 = vrot.slane %v4205, 4
  %4473 = vrot.lane.b32.xlu0 %v4472, 32
  %v4474 = vpop.permute.xlu0 %4473
  %v4477 = vrot.slane %v4288, 6
  %4478 = vrot.lane.b32.xlu0 %v4477, 32
  %v4479 = vpop.permute.xlu0 %4478
  %v4481 = vsel %vm4447, %v4474, %v4479
  %4482 = vst.msk [vmem:[%s1 + $0x4] sm:$0x3] %vm4458, %v4481
  %v4483 = vsel %vm4447, %v4479, %v4474
  %4484 = vst.msk [vmem:[%s1 + $0x6] sm:$0x3] %vm4458, %v4483
  %v4485 = vsel %vm4447, %v4467, %v4463
  %4486 = vst.msk [vmem:[%s1 + $0x8] sm:$0x3] %vm4458, %v4485
  %v4487 = vsel %vm4447, %v4455, %v4450
  %4488 = vst.msk [vmem:[%s1 + $0xa] sm:$0x3] %vm4458, %v4487
  // Predicated region
  $region6: #{lane_encoder.1} parent=0 // pred_check
    _
  $region7: #{lane_encoder.1} parent=0 // pred_check_branch
    %4490 = sbr.rel (0) target = $region9
  $region8: #{lane_encoder.1} parent=0 // pred_region
    _
  $region9: #{lane_encoder.1} parent=0 // pred_fallthru
    _
  // Predicated region
  $region10: #{lane_encoder.1} parent=0 // pred_check
    _
  $region11: #{lane_encoder.1} parent=0 // pred_check_branch
    %4492 = sbr.rel (0) target = $region13
  $region12: #{lane_encoder.1} parent=0 // pred_region
    _
  $region13: #{lane_encoder.1} parent=0 // pred_fallthru
    _

</llo_original>
